<compile_context>
chip_gen: v5e
topology: v5e:2x2
jax: 0.10.0
libtpu: 0.0.40
codegen_flags: <defaults>
</compile_context>

<pallas_src>
import jax
import jax.numpy as jnp
import numpy as np
from jax.experimental import pallas as pl
from jax.experimental.pallas import tpu as pltpu

# Hyper-parameters consistent with WordEmbedTransformerQA(input_dim=D, n_head=H).
D = 48            # d_model (input_dim), divisible by n_head
H = 6             # n_head (module default)
HD = D // H       # per-head dim
FF = 2048         # dim_feedforward (nn.TransformerEncoderLayer default)
S = 8             # sequence length  (dim 0 of x)
B = 2             # batch size       (dim 1 of x)
N = S * B         # fused token count
W3 = 3 * D        # fused qkv projection width (144)
HW = 3 * HD       # per-head qkv column-block width (24)
EPS = 1e-5        # LayerNorm eps (PyTorch default)
NEG = -1e9        # additive mask for cross-batch attention pairs
PACK_ROWS = 32    # small-parameter pack rows


def _ln(x, w, b):
    mu = jnp.mean(x, axis=-1, keepdims=True)
    var = jnp.mean((x - mu) ** 2, axis=-1, keepdims=True)
    return (x - mu) * jax.lax.rsqrt(var + EPS) * w + b


def qa_kernel(x_ref, pack_ref, wqkv_ref, wo_ref, b1_ref, w1_hbm, w2_hbm,
              out_ref, w1_vmem, w2_vmem, sem):
    # --- kick off FF weight DMAs first so they overlap the attention phase ---
    cp1 = pltpu.make_async_copy(w1_hbm, w1_vmem, sem.at[0])
    cp2 = pltpu.make_async_copy(w2_hbm, w2_vmem, sem.at[1])
    cp1.start()
    cp2.start()

    x = x_ref[...]                                   # (N, D), rows ordered (s, b)

    # --- unpack the small-parameter pack (one DMA'd (32, 144) buffer) --------
    sp = pack_ref[...]
    bqkv = sp[0:1, :]                                # (1, 3D)   (q part pre-scaled)
    bo   = sp[1:2, 0:D]
    ln1w = sp[2:3, 0:D]
    ln1b = sp[3:4, 0:D]
    b2   = sp[4:5, 0:D]
    ln2w = sp[5:6, 0:D]
    ln2b = sp[6:7, 0:D]
    wqa  = sp[7:9, 0:D]                              # (2, D), PyTorch (out, in)
    bqa  = sp[9:10, 0:2]                             # (1, 2)
    pick = sp[16:32, 0:2]                            # (N, 2) one-hot CE targets

    # ---------------- self-attention ----------------------------------------
    # Fused q|k|v projection: single 2-D matmul; per-head 24-wide column blocks.
    qkv = jnp.dot(x, wqkv_ref[...], preferred_element_type=jnp.float32) + bqkv  # (N, 3D)
    qkvh = jnp.stack([qkv[:, h * HW:(h + 1) * HW] for h in range(H)], axis=0)   # (H, N, 3HD)
    q = qkvh[:, :, 0:HD]
    k = qkvh[:, :, HD:2 * HD]
    v = qkvh[:, :, 2 * HD:3 * HD]

    # Additive mask built in-kernel: 0 inside a batch element, NEG across.
    # Same batch element  <=>  (row - col) is a multiple of B (rows are (s, b)).
    ri = jax.lax.broadcasted_iota(jnp.int32, (N, N), 0)
    ci = jax.lax.broadcasted_iota(jnp.int32, (N, N), 1)
    dd = (ri - ci).astype(jnp.float32) * (1.0 / B)
    nmask = jnp.where(dd == jnp.floor(dd), 0.0, NEG)                             # (N, N)

    s = jnp.einsum('hnf,hmf->hnm', q, k, preferred_element_type=jnp.float32) + nmask
    m = jnp.max(s, axis=-1, keepdims=True)
    e = jnp.exp(s - m)
    p = e / jnp.sum(e, axis=-1, keepdims=True)       # exact softmax denominator

    ctx = jnp.einsum('hnm,hmf->hnf', p, v, preferred_element_type=jnp.float32)   # (H,N,HD)
    # Concat heads along lanes -> one (N,D)@(D,D) out-projection; the
    # cross-head reduction happens inside the MXU contraction.
    ctx_flat = jnp.concatenate([ctx[h] for h in range(H)], axis=1)                # (N, D)
    attn = jnp.dot(ctx_flat, wo_ref[...], preferred_element_type=jnp.float32) + bo

    x1 = _ln(x + attn, ln1w, ln1b)

    # ---------------- feed-forward (weights arrive via the overlapped DMA) ---
    cp1.wait()
    h1 = jnp.maximum(
        jnp.dot(x1, w1_vmem[...], preferred_element_type=jnp.float32) + b1_ref[...],
        0.0)                                                                      # (N, FF)
    cp2.wait()
    ff = jnp.dot(h1, w2_vmem[...], preferred_element_type=jnp.float32) + b2
    x2 = _ln(x1 + ff, ln2w, ln2b)

    # ---------------- QA head ------------------------------------------------
    logits = jnp.maximum(
        jnp.einsum('nd,cd->nc', x2, wqa, preferred_element_type=jnp.float32) + bqa,
        0.0)                                                                      # (N, 2)

    # ---------------- CrossEntropy (classes = batch index, samples = seq) ----
    # Per-sample logsumexp over its B rows via an iota-built (S, N) 0/1 matrix
    # on the MXU -> no reshape of the flat (N, 2) logits needed.
    m2 = jnp.max(logits, axis=0, keepdims=True)                                   # (1, 2)
    e2 = jnp.exp(logits - m2)
    rs = jax.lax.broadcasted_iota(jnp.int32, (S, N), 0)
    cs = jax.lax.broadcasted_iota(jnp.int32, (S, N), 1)
    seg = jnp.where((cs >= rs * B) & (cs < (rs + 1) * B), 1.0, 0.0)               # (S, N)
    lse = m2 + jnp.log(jnp.dot(seg, e2, preferred_element_type=jnp.float32))      # (S, 2)
    picked = jnp.sum(logits * pick, axis=0, keepdims=True)                        # (1, 2)
    per = (jnp.sum(lse, axis=0, keepdims=True) - picked) * (1.0 / S)              # (1, 2)
    loss = 0.5 * jnp.sum(per, axis=1, keepdims=True)                              # (1, 1)

    # Single lane-packed output: [start_logit | end_logit | loss].
    out_ref[...] = jnp.concatenate(
        [logits, jnp.broadcast_to(loss, (N, 1))], axis=1)                         # (N, 3)


def _prep_inputs(x, start_positions, end_positions, params):
    """PyTorch-layout params -> kernel layouts + packed small parameters."""
    scale = 1.0 / float(np.sqrt(HD))
    wi, bi = params['wi'], params['bi']                      # (3D, D), (3D,)
    Wq, Wk, Wv = wi[0:D].T, wi[D:2 * D].T, wi[2 * D:3 * D].T  # each (D_in, D_out)

    def ph(w):                                               # (D, D) -> (D, H, HD)
        return w.reshape(D, H, HD)

    # Fused qkv weight: columns ordered [head-major | q(scaled) | k | v].
    wqkv = jnp.concatenate([ph(Wq) * scale, ph(Wk), ph(Wv)], axis=2).reshape(D, W3)
    bqkv = jnp.concatenate([(bi[0:D] * scale).reshape(H, HD),
                            bi[D:2 * D].reshape(H, HD),
                            bi[2 * D:3 * D].reshape(H, HD)], axis=1).reshape(W3)

    # One-hot pick masks for CE per row (s, b): col 0 = start target, col 1 = end.
    cls = jnp.arange(B, dtype=jnp.int32)
    pick_s = (cls[None, :] == start_positions.astype(jnp.int32)[:, None]).astype(jnp.float32)
    pick_e = (cls[None, :] == end_positions.astype(jnp.int32)[:, None]).astype(jnp.float32)
    pick = jnp.stack([pick_s.reshape(N), pick_e.reshape(N)], axis=1)              # (N, 2)

    # Pack all tiny parameters into a single (32, 144) buffer (one DMA).
    pack = jnp.zeros((PACK_ROWS, W3), jnp.float32)
    pack = pack.at[0, :].set(bqkv)
    pack = pack.at[1, :D].set(params['bo'])
    pack = pack.at[2, :D].set(params['ln1w'])
    pack = pack.at[3, :D].set(params['ln1b'])
    pack = pack.at[4, :D].set(params['b2'])
    pack = pack.at[5, :D].set(params['ln2w'])
    pack = pack.at[6, :D].set(params['ln2b'])
    pack = pack.at[7:9, :D].set(params['wqa'])
    pack = pack.at[9, :2].set(params['bqa'])
    pack = pack.at[16:32, :2].set(pick)

    x_f = x.reshape(N, D)                                    # free row-major view (s, b)
    return (x_f, pack, wqkv, params['wo'].T,
            params['b1'].reshape(1, FF),
            params['w1'].T,                                  # (D, FF)  -> manual DMA
            params['w2'].T)                                  # (FF, D)  -> manual DMA


def wordembed_transformer_qa(x, start_positions, end_positions, params):
    """x: (S, B, D) f32; positions: (S,) int32 in [0, B).
    Returns (total_loss, start_logits (S,B), end_logits (S,B))."""
    inputs = _prep_inputs(x, start_positions, end_positions, params)

    vmem = pl.BlockSpec(memory_space=pltpu.MemorySpace.VMEM)
    hbm = pl.BlockSpec(memory_space=pl.ANY)                  # FF weights stay in HBM

    out = pl.pallas_call(
        qa_kernel,
        out_shape=jax.ShapeDtypeStruct((N, 3), jnp.float32),
        in_specs=[vmem, vmem, vmem, vmem, vmem, hbm, hbm],
        out_specs=vmem,
        scratch_shapes=[pltpu.VMEM((D, FF), jnp.float32),    # w1 landing buffer
                        pltpu.VMEM((FF, D), jnp.float32),    # w2 landing buffer
                        pltpu.SemaphoreType.DMA((2,))],
    )(*inputs)

    loss = out[0, 2]
    sl = out[:, 0].reshape(S, B)                             # PyTorch (S, B) layout
    el = out[:, 1].reshape(S, B)
    return loss, sl, el


# ---------------- pure-JAX reference (PyTorch semantics, eval mode) -------------
def ref_forward(x, start_positions, end_positions, p):
    S_, B_, D_ = x.shape
    qkv = x @ p['wi'].T + p['bi']                            # (S, B, 3D)
    q, k, v = jnp.split(qkv, 3, axis=-1)

    def heads(t):                                            # (S, B, D) -> (B, H, S, HD)
        return t.reshape(S_, B_, H, HD).transpose(1, 2, 0, 3)

    qh, kh, vh = heads(q), heads(k), heads(v)
    scores = jnp.einsum('bhqd,bhkd->bhqk', qh, kh) / np.sqrt(HD)
    probs = jax.nn.softmax(scores, axis=-1)
    o = jnp.einsum('bhqk,bhkd->bhqd', probs, vh)
    o = o.transpose(2, 0, 1, 3).reshape(S_, B_, D_)
    attn = o @ p['wo'].T + p['bo']

    def ln(t, w, b):
        mu = t.mean(-1, keepdims=True)
        var = ((t - mu) ** 2).mean(-1, keepdims=True)
        return (t - mu) / jnp.sqrt(var + EPS) * w + b

    x1 = ln(x + attn, p['ln1w'], p['ln1b'])
    ff = jax.nn.relu(x1 @ p['w1'].T + p['b1']) @ p['w2'].T + p['b2']
    x2 = ln(x1 + ff, p['ln2w'], p['ln2b'])
    logits = jax.nn.relu(x2 @ p['wqa'].T + p['bqa'])         # (S, B, 2)
    sl = logits[..., 0]
    el = logits[..., 1]

    def ce(lg, tgt):                                         # lg: (S, B), tgt: (S,)
        lse = jax.scipy.special.logsumexp(lg, axis=1)
        picked = lg[jnp.arange(S_), tgt]
        return jnp.mean(lse - picked)

    loss = 0.5 * (ce(sl, start_positions) + ce(el, end_positions))
    return loss, sl, el


if __name__ == "__main__":
    key = jax.random.PRNGKey(0)
    k = jax.random.split(key, 12)

    def uni(kk, shape, bound):
        return jax.random.uniform(kk, shape, jnp.float32, -bound, bound)

    params = {
        'wi': uni(k[0], (3 * D, D), (1.0 / D) ** 0.5),
        'bi': uni(k[1], (3 * D,), 0.1),
        'wo': uni(k[2], (D, D), (1.0 / D) ** 0.5),
        'bo': uni(k[3], (D,), 0.1),
        'ln1w': jnp.ones((D,), jnp.float32),
        'ln1b': jnp.zeros((D,), jnp.float32),
        'w1': uni(k[4], (FF, D), (1.0 / D) ** 0.5),
        'b1': uni(k[5], (FF,), 0.1),
        'w2': uni(k[6], (D, FF), (1.0 / FF) ** 0.5),
        'b2': uni(k[7], (D,), 0.1),
        'ln2w': jnp.ones((D,), jnp.float32),
        'ln2b': jnp.zeros((D,), jnp.float32),
        'wqa': uni(k[8], (2, D), (6.0 / (D + 2)) ** 0.5),    # xavier_uniform_
        'bqa': uni(k[9], (2,), (1.0 / D) ** 0.5),
    }

    x = jax.random.normal(k[10], (S, B, D), jnp.float32)
    kp1, kp2 = jax.random.split(k[11])
    start_positions = jax.random.randint(kp1, (S,), 0, B, dtype=jnp.int32)
    end_positions = jax.random.randint(kp2, (S,), 0, B, dtype=jnp.int32)

    loss, sl, el = wordembed_transformer_qa(x, start_positions, end_positions, params)
    jax.block_until_ready((loss, sl, el))

    ref_loss, ref_sl, ref_el = ref_forward(x, start_positions, end_positions, params)
    np.testing.assert_allclose(np.asarray(loss), np.asarray(ref_loss), rtol=2e-3, atol=2e-3)
    np.testing.assert_allclose(np.asarray(sl), np.asarray(ref_sl), rtol=2e-3, atol=2e-3)
    np.testing.assert_allclose(np.asarray(el), np.asarray(ref_el), rtol=2e-3, atol=2e-3)
    print("KERNEL_OK")
</pallas_src>

<mosaic_0001>
module attributes {stable_mosaic.version = 11 : i64} {
  func.func @qa_kernel(%arg0: memref<16x48xf32, #tpu.memory_space<vmem>>, %arg1: memref<32x144xf32, #tpu.memory_space<vmem>>, %arg2: memref<48x144xf32, #tpu.memory_space<vmem>>, %arg3: memref<48x48xf32, #tpu.memory_space<vmem>>, %arg4: memref<1x2048xf32, #tpu.memory_space<vmem>>, %arg5: memref<48x2048xf32, #tpu.memory_space<any>>, %arg6: memref<2048x48xf32, #tpu.memory_space<any>>, %arg7: memref<16x3xf32, #tpu.memory_space<vmem>>, %arg8: memref<48x2048xf32, #tpu.memory_space<vmem>>, %arg9: memref<2048x48xf32, #tpu.memory_space<vmem>>, %arg10: memref<2x!tpu.dma_semaphore, #tpu.memory_space<semaphore_mem>>) attributes {dimension_semantics = [], scalar_prefetch = 0 : i64, scratch_operands = 3 : i64, tpu.core_type = #tpu.core_type<tc>} {
    %c0_i32 = arith.constant 0 : i32
    %0 = tpu.memref_slice %arg10[%c0_i32] : memref<2x!tpu.dma_semaphore, #tpu.memory_space<semaphore_mem>> -> memref<1x!tpu.dma_semaphore, #tpu.memory_space<semaphore_mem>>
    %1 = tpu.memref_squeeze %0 : memref<1x!tpu.dma_semaphore, #tpu.memory_space<semaphore_mem>> -> memref<!tpu.dma_semaphore, #tpu.memory_space<semaphore_mem>>
    tpu.enqueue_dma source(%arg5 : memref<48x2048xf32, #tpu.memory_space<any>>) target(%arg8 : memref<48x2048xf32, #tpu.memory_space<vmem>>) target_semaphore(%1 : memref<!tpu.dma_semaphore, #tpu.memory_space<semaphore_mem>>)
    %c1_i32 = arith.constant 1 : i32
    %2 = tpu.memref_slice %arg10[%c1_i32] : memref<2x!tpu.dma_semaphore, #tpu.memory_space<semaphore_mem>> -> memref<1x!tpu.dma_semaphore, #tpu.memory_space<semaphore_mem>>
    %3 = tpu.memref_squeeze %2 : memref<1x!tpu.dma_semaphore, #tpu.memory_space<semaphore_mem>> -> memref<!tpu.dma_semaphore, #tpu.memory_space<semaphore_mem>>
    tpu.enqueue_dma source(%arg6 : memref<2048x48xf32, #tpu.memory_space<any>>) target(%arg9 : memref<2048x48xf32, #tpu.memory_space<vmem>>) target_semaphore(%3 : memref<!tpu.dma_semaphore, #tpu.memory_space<semaphore_mem>>)
    %c0 = arith.constant 0 : index
    %c0_0 = arith.constant 0 : index
    %4 = vector.load %arg0[%c0, %c0_0] : memref<16x48xf32, #tpu.memory_space<vmem>>, vector<16x48xf32>
    %c0_1 = arith.constant 0 : index
    %c0_2 = arith.constant 0 : index
    %5 = vector.load %arg1[%c0_1, %c0_2] : memref<32x144xf32, #tpu.memory_space<vmem>>, vector<32x144xf32>
    %6 = vector.extract_strided_slice %5 {offsets = [0, 0], sizes = [1, 144], strides = [1, 1]} : vector<32x144xf32> to vector<1x144xf32>
    %7 = vector.extract_strided_slice %5 {offsets = [1, 0], sizes = [1, 48], strides = [1, 1]} : vector<32x144xf32> to vector<1x48xf32>
    %8 = vector.extract_strided_slice %5 {offsets = [2, 0], sizes = [1, 48], strides = [1, 1]} : vector<32x144xf32> to vector<1x48xf32>
    %9 = vector.extract_strided_slice %5 {offsets = [3, 0], sizes = [1, 48], strides = [1, 1]} : vector<32x144xf32> to vector<1x48xf32>
    %10 = vector.extract_strided_slice %5 {offsets = [4, 0], sizes = [1, 48], strides = [1, 1]} : vector<32x144xf32> to vector<1x48xf32>
    %11 = vector.extract_strided_slice %5 {offsets = [5, 0], sizes = [1, 48], strides = [1, 1]} : vector<32x144xf32> to vector<1x48xf32>
    %12 = vector.extract_strided_slice %5 {offsets = [6, 0], sizes = [1, 48], strides = [1, 1]} : vector<32x144xf32> to vector<1x48xf32>
    %13 = vector.extract_strided_slice %5 {offsets = [7, 0], sizes = [2, 48], strides = [1, 1]} : vector<32x144xf32> to vector<2x48xf32>
    %14 = vector.extract_strided_slice %5 {offsets = [9, 0], sizes = [1, 2], strides = [1, 1]} : vector<32x144xf32> to vector<1x2xf32>
    %15 = vector.extract_strided_slice %5 {offsets = [16, 0], sizes = [16, 2], strides = [1, 1]} : vector<32x144xf32> to vector<16x2xf32>
    %c0_3 = arith.constant 0 : index
    %c0_4 = arith.constant 0 : index
    %16 = vector.load %arg2[%c0_3, %c0_4] : memref<48x144xf32, #tpu.memory_space<vmem>>, vector<48x144xf32>
    %cst = arith.constant dense<0.000000e+00> : vector<16x144xf32>
    %17 = tpu.matmul %4, %16, %cst {dimension_numbers = #tpu.dot_dimension_numbers<[1], [0], [0], [1], [0, 0, 1, 1], [], []>} : vector<16x48xf32>, vector<48x144xf32>, vector<16x144xf32> -> vector<16x144xf32>
    %18 = vector.broadcast %6 : vector<1x144xf32> to vector<16x144xf32>
    %19 = arith.addf %17, %18 : vector<16x144xf32>
    %20 = vector.extract_strided_slice %19 {offsets = [0, 0], sizes = [16, 24], strides = [1, 1]} : vector<16x144xf32> to vector<16x24xf32>
    %21 = vector.extract_strided_slice %19 {offsets = [0, 24], sizes = [16, 24], strides = [1, 1]} : vector<16x144xf32> to vector<16x24xf32>
    %22 = vector.extract_strided_slice %19 {offsets = [0, 48], sizes = [16, 24], strides = [1, 1]} : vector<16x144xf32> to vector<16x24xf32>
    %23 = vector.extract_strided_slice %19 {offsets = [0, 72], sizes = [16, 24], strides = [1, 1]} : vector<16x144xf32> to vector<16x24xf32>
    %24 = vector.extract_strided_slice %19 {offsets = [0, 96], sizes = [16, 24], strides = [1, 1]} : vector<16x144xf32> to vector<16x24xf32>
    %25 = vector.extract_strided_slice %19 {offsets = [0, 120], sizes = [16, 24], strides = [1, 1]} : vector<16x144xf32> to vector<16x24xf32>
    %26 = vector.shape_cast %20 : vector<16x24xf32> to vector<1x16x24xf32>
    %27 = vector.shape_cast %21 : vector<16x24xf32> to vector<1x16x24xf32>
    %28 = vector.shape_cast %22 : vector<16x24xf32> to vector<1x16x24xf32>
    %29 = vector.shape_cast %23 : vector<16x24xf32> to vector<1x16x24xf32>
    %30 = vector.shape_cast %24 : vector<16x24xf32> to vector<1x16x24xf32>
    %31 = vector.shape_cast %25 : vector<16x24xf32> to vector<1x16x24xf32>
    %32 = tpu.concatenate %26, %27, %28, %29, %30, %31 in 0 : vector<1x16x24xf32>, vector<1x16x24xf32>, vector<1x16x24xf32>, vector<1x16x24xf32>, vector<1x16x24xf32>, vector<1x16x24xf32> -> vector<6x16x24xf32>
    %33 = vector.extract_strided_slice %32 {offsets = [0, 0, 0], sizes = [6, 16, 8], strides = [1, 1, 1]} : vector<6x16x24xf32> to vector<6x16x8xf32>
    %34 = vector.extract_strided_slice %32 {offsets = [0, 0, 8], sizes = [6, 16, 8], strides = [1, 1, 1]} : vector<6x16x24xf32> to vector<6x16x8xf32>
    %35 = vector.extract_strided_slice %32 {offsets = [0, 0, 16], sizes = [6, 16, 8], strides = [1, 1, 1]} : vector<6x16x24xf32> to vector<6x16x8xf32>
    %36 = tpu.iota {dimensions = array<i32: 0>} : vector<16x16xi32>
    %37 = tpu.iota {dimensions = array<i32: 1>} : vector<16x16xi32>
    %38 = arith.subi %36, %37 : vector<16x16xi32>
    %39 = arith.sitofp %38 : vector<16x16xi32> to vector<16x16xf32>
    %cst_5 = arith.constant 5.000000e-01 : f32
    %40 = vector.broadcast %cst_5 : f32 to vector<16x16xf32>
    %41 = arith.mulf %39, %40 : vector<16x16xf32>
    %42 = math.floor %41 : vector<16x16xf32>
    %43 = arith.cmpf oeq, %41, %42 : vector<16x16xf32>
    %cst_6 = arith.constant 0.000000e+00 : f32
    %cst_7 = arith.constant -1.000000e+09 : f32
    %44 = vector.broadcast %cst_6 : f32 to vector<16x16xf32>
    %45 = vector.broadcast %cst_7 : f32 to vector<16x16xf32>
    %46 = arith.select %43, %44, %45 : vector<16x16xi1>, vector<16x16xf32>
    "tpu.trace_start"() <{level = 10 : i32, message = "hnf,hmf->hnm"}> : () -> ()
    %cst_8 = arith.constant dense<0.000000e+00> : vector<6x16x16xf32>
    %47 = tpu.matmul %33, %34, %cst_8 {dimension_numbers = #tpu.dot_dimension_numbers<[2], [2], [1], [1], [0, 0, 0, 1, 1, 1], [0], [0]>} : vector<6x16x8xf32>, vector<6x16x8xf32>, vector<6x16x16xf32> -> vector<6x16x16xf32>
    "tpu.trace_stop"() : () -> ()
    %48 = vector.shape_cast %46 : vector<16x16xf32> to vector<1x16x16xf32>
    %49 = vector.broadcast %48 : vector<1x16x16xf32> to vector<6x16x16xf32>
    %50 = arith.addf %47, %49 : vector<6x16x16xf32>
    %cst_9 = arith.constant dense<0xFF800000> : vector<6x16xf32>
    %51 = vector.multi_reduction <maximumf>, %50, %cst_9 [2] : vector<6x16x16xf32> to vector<6x16xf32>
    %52 = vector.shape_cast %51 : vector<6x16xf32> to vector<6x16x1xf32>
    %53 = vector.broadcast %52 : vector<6x16x1xf32> to vector<6x16x16xf32>
    %54 = arith.subf %50, %53 : vector<6x16x16xf32>
    %55 = math.exp %54 : vector<6x16x16xf32>
    %cst_10 = arith.constant dense<0.000000e+00> : vector<6x16xf32>
    %56 = vector.multi_reduction <add>, %55, %cst_10 [2] : vector<6x16x16xf32> to vector<6x16xf32>
    %57 = vector.shape_cast %56 : vector<6x16xf32> to vector<6x16x1xf32>
    %58 = vector.broadcast %57 : vector<6x16x1xf32> to vector<6x16x16xf32>
    %59 = arith.divf %55, %58 : vector<6x16x16xf32>
    "tpu.trace_start"() <{level = 10 : i32, message = "hnm,hmf->hnf"}> : () -> ()
    %cst_11 = arith.constant dense<0.000000e+00> : vector<6x16x8xf32>
    %60 = tpu.matmul %59, %35, %cst_11 {dimension_numbers = #tpu.dot_dimension_numbers<[2], [1], [1], [2], [0, 0, 0, 1, 1, 2], [0], [0]>} : vector<6x16x16xf32>, vector<6x16x8xf32>, vector<6x16x8xf32> -> vector<6x16x8xf32>
    "tpu.trace_stop"() : () -> ()
    %61 = vector.extract_strided_slice %60 {offsets = [0, 0, 0], sizes = [1, 16, 8], strides = [1, 1, 1]} : vector<6x16x8xf32> to vector<1x16x8xf32>
    %62 = vector.shape_cast %61 : vector<1x16x8xf32> to vector<16x8xf32>
    %63 = vector.extract_strided_slice %60 {offsets = [1, 0, 0], sizes = [1, 16, 8], strides = [1, 1, 1]} : vector<6x16x8xf32> to vector<1x16x8xf32>
    %64 = vector.shape_cast %63 : vector<1x16x8xf32> to vector<16x8xf32>
    %65 = vector.extract_strided_slice %60 {offsets = [2, 0, 0], sizes = [1, 16, 8], strides = [1, 1, 1]} : vector<6x16x8xf32> to vector<1x16x8xf32>
    %66 = vector.shape_cast %65 : vector<1x16x8xf32> to vector<16x8xf32>
    %67 = vector.extract_strided_slice %60 {offsets = [3, 0, 0], sizes = [1, 16, 8], strides = [1, 1, 1]} : vector<6x16x8xf32> to vector<1x16x8xf32>
    %68 = vector.shape_cast %67 : vector<1x16x8xf32> to vector<16x8xf32>
    %69 = vector.extract_strided_slice %60 {offsets = [4, 0, 0], sizes = [1, 16, 8], strides = [1, 1, 1]} : vector<6x16x8xf32> to vector<1x16x8xf32>
    %70 = vector.shape_cast %69 : vector<1x16x8xf32> to vector<16x8xf32>
    %71 = vector.extract_strided_slice %60 {offsets = [5, 0, 0], sizes = [1, 16, 8], strides = [1, 1, 1]} : vector<6x16x8xf32> to vector<1x16x8xf32>
    %72 = vector.shape_cast %71 : vector<1x16x8xf32> to vector<16x8xf32>
    %73 = tpu.concatenate %62, %64, %66, %68, %70, %72 in 1 : vector<16x8xf32>, vector<16x8xf32>, vector<16x8xf32>, vector<16x8xf32>, vector<16x8xf32>, vector<16x8xf32> -> vector<16x48xf32>
    %c0_12 = arith.constant 0 : index
    %c0_13 = arith.constant 0 : index
    %74 = vector.load %arg3[%c0_12, %c0_13] : memref<48x48xf32, #tpu.memory_space<vmem>>, vector<48x48xf32>
    %cst_14 = arith.constant dense<0.000000e+00> : vector<16x48xf32>
    %75 = tpu.matmul %73, %74, %cst_14 {dimension_numbers = #tpu.dot_dimension_numbers<[1], [0], [0], [1], [0, 0, 1, 1], [], []>} : vector<16x48xf32>, vector<48x48xf32>, vector<16x48xf32> -> vector<16x48xf32>
    %76 = vector.broadcast %7 : vector<1x48xf32> to vector<16x48xf32>
    %77 = arith.addf %75, %76 : vector<16x48xf32>
    %78 = arith.addf %4, %77 : vector<16x48xf32>
    %cst_15 = arith.constant dense<0.000000e+00> : vector<16xf32>
    %79 = vector.multi_reduction <add>, %78, %cst_15 [1] : vector<16x48xf32> to vector<16xf32>
    %80 = vector.shape_cast %79 : vector<16xf32> to vector<16x1xf32>
    %cst_16 = arith.constant 4.800000e+01 : f32
    %81 = vector.broadcast %cst_16 : f32 to vector<16x1xf32>
    %82 = arith.divf %80, %81 : vector<16x1xf32>
    %83 = vector.broadcast %82 : vector<16x1xf32> to vector<16x48xf32>
    %84 = arith.subf %78, %83 : vector<16x48xf32>
    %85 = arith.mulf %84, %84 : vector<16x48xf32>
    %cst_17 = arith.constant dense<0.000000e+00> : vector<16xf32>
    %86 = vector.multi_reduction <add>, %85, %cst_17 [1] : vector<16x48xf32> to vector<16xf32>
    %87 = vector.shape_cast %86 : vector<16xf32> to vector<16x1xf32>
    %cst_18 = arith.constant 4.800000e+01 : f32
    %88 = vector.broadcast %cst_18 : f32 to vector<16x1xf32>
    %89 = arith.divf %87, %88 : vector<16x1xf32>
    %90 = vector.broadcast %82 : vector<16x1xf32> to vector<16x48xf32>
    %91 = arith.subf %78, %90 : vector<16x48xf32>
    %cst_19 = arith.constant 9.99999974E-6 : f32
    %92 = vector.broadcast %cst_19 : f32 to vector<16x1xf32>
    %93 = arith.addf %89, %92 : vector<16x1xf32>
    %94 = math.rsqrt %93 : vector<16x1xf32>
    %95 = vector.broadcast %94 : vector<16x1xf32> to vector<16x48xf32>
    %96 = arith.mulf %91, %95 : vector<16x48xf32>
    %97 = vector.broadcast %8 : vector<1x48xf32> to vector<16x48xf32>
    %98 = arith.mulf %96, %97 : vector<16x48xf32>
    %99 = vector.broadcast %9 : vector<1x48xf32> to vector<16x48xf32>
    %100 = arith.addf %98, %99 : vector<16x48xf32>
    %c0_i32_20 = arith.constant 0 : i32
    %101 = tpu.memref_slice %arg10[%c0_i32_20] : memref<2x!tpu.dma_semaphore, #tpu.memory_space<semaphore_mem>> -> memref<1x!tpu.dma_semaphore, #tpu.memory_space<semaphore_mem>>
    %102 = tpu.memref_squeeze %101 : memref<1x!tpu.dma_semaphore, #tpu.memory_space<semaphore_mem>> -> memref<!tpu.dma_semaphore, #tpu.memory_space<semaphore_mem>>
    tpu.wait_dma2 semaphore(%102 : memref<!tpu.dma_semaphore, #tpu.memory_space<semaphore_mem>>) src(%arg5 : memref<48x2048xf32, #tpu.memory_space<any>>) dst(%arg8 : memref<48x2048xf32, #tpu.memory_space<vmem>>)
    %c0_21 = arith.constant 0 : index
    %c0_22 = arith.constant 0 : index
    %103 = vector.load %arg8[%c0_21, %c0_22] : memref<48x2048xf32, #tpu.memory_space<vmem>>, vector<48x2048xf32>
    %cst_23 = arith.constant dense<0.000000e+00> : vector<16x2048xf32>
    %104 = tpu.matmul %100, %103, %cst_23 {dimension_numbers = #tpu.dot_dimension_numbers<[1], [0], [0], [1], [0, 0, 1, 1], [], []>} : vector<16x48xf32>, vector<48x2048xf32>, vector<16x2048xf32> -> vector<16x2048xf32>
    %c0_24 = arith.constant 0 : index
    %c0_25 = arith.constant 0 : index
    %105 = vector.load %arg4[%c0_24, %c0_25] : memref<1x2048xf32, #tpu.memory_space<vmem>>, vector<1x2048xf32>
    %106 = vector.broadcast %105 : vector<1x2048xf32> to vector<16x2048xf32>
    %107 = arith.addf %104, %106 : vector<16x2048xf32>
    %cst_26 = arith.constant 0.000000e+00 : f32
    %108 = vector.broadcast %cst_26 : f32 to vector<16x2048xf32>
    %109 = arith.maximumf %107, %108 : vector<16x2048xf32>
    %c1_i32_27 = arith.constant 1 : i32
    %110 = tpu.memref_slice %arg10[%c1_i32_27] : memref<2x!tpu.dma_semaphore, #tpu.memory_space<semaphore_mem>> -> memref<1x!tpu.dma_semaphore, #tpu.memory_space<semaphore_mem>>
    %111 = tpu.memref_squeeze %110 : memref<1x!tpu.dma_semaphore, #tpu.memory_space<semaphore_mem>> -> memref<!tpu.dma_semaphore, #tpu.memory_space<semaphore_mem>>
    tpu.wait_dma2 semaphore(%111 : memref<!tpu.dma_semaphore, #tpu.memory_space<semaphore_mem>>) src(%arg6 : memref<2048x48xf32, #tpu.memory_space<any>>) dst(%arg9 : memref<2048x48xf32, #tpu.memory_space<vmem>>)
    %c0_28 = arith.constant 0 : index
    %c0_29 = arith.constant 0 : index
    %112 = vector.load %arg9[%c0_28, %c0_29] : memref<2048x48xf32, #tpu.memory_space<vmem>>, vector<2048x48xf32>
    %cst_30 = arith.constant dense<0.000000e+00> : vector<16x48xf32>
    %113 = tpu.matmul %109, %112, %cst_30 {dimension_numbers = #tpu.dot_dimension_numbers<[1], [0], [0], [1], [0, 0, 1, 1], [], []>} : vector<16x2048xf32>, vector<2048x48xf32>, vector<16x48xf32> -> vector<16x48xf32>
    %114 = vector.broadcast %10 : vector<1x48xf32> to vector<16x48xf32>
    %115 = arith.addf %113, %114 : vector<16x48xf32>
    %116 = arith.addf %100, %115 : vector<16x48xf32>
    %cst_31 = arith.constant dense<0.000000e+00> : vector<16xf32>
    %117 = vector.multi_reduction <add>, %116, %cst_31 [1] : vector<16x48xf32> to vector<16xf32>
    %118 = vector.shape_cast %117 : vector<16xf32> to vector<16x1xf32>
    %cst_32 = arith.constant 4.800000e+01 : f32
    %119 = vector.broadcast %cst_32 : f32 to vector<16x1xf32>
    %120 = arith.divf %118, %119 : vector<16x1xf32>
    %121 = vector.broadcast %120 : vector<16x1xf32> to vector<16x48xf32>
    %122 = arith.subf %116, %121 : vector<16x48xf32>
    %123 = arith.mulf %122, %122 : vector<16x48xf32>
    %cst_33 = arith.constant dense<0.000000e+00> : vector<16xf32>
    %124 = vector.multi_reduction <add>, %123, %cst_33 [1] : vector<16x48xf32> to vector<16xf32>
    %125 = vector.shape_cast %124 : vector<16xf32> to vector<16x1xf32>
    %cst_34 = arith.constant 4.800000e+01 : f32
    %126 = vector.broadcast %cst_34 : f32 to vector<16x1xf32>
    %127 = arith.divf %125, %126 : vector<16x1xf32>
    %128 = vector.broadcast %120 : vector<16x1xf32> to vector<16x48xf32>
    %129 = arith.subf %116, %128 : vector<16x48xf32>
    %cst_35 = arith.constant 9.99999974E-6 : f32
    %130 = vector.broadcast %cst_35 : f32 to vector<16x1xf32>
    %131 = arith.addf %127, %130 : vector<16x1xf32>
    %132 = math.rsqrt %131 : vector<16x1xf32>
    %133 = vector.broadcast %132 : vector<16x1xf32> to vector<16x48xf32>
    %134 = arith.mulf %129, %133 : vector<16x48xf32>
    %135 = vector.broadcast %11 : vector<1x48xf32> to vector<16x48xf32>
    %136 = arith.mulf %134, %135 : vector<16x48xf32>
    %137 = vector.broadcast %12 : vector<1x48xf32> to vector<16x48xf32>
    %138 = arith.addf %136, %137 : vector<16x48xf32>
    "tpu.trace_start"() <{level = 10 : i32, message = "nd,cd->nc"}> : () -> ()
    %cst_36 = arith.constant dense<0.000000e+00> : vector<16x2xf32>
    %139 = tpu.matmul %138, %13, %cst_36 {dimension_numbers = #tpu.dot_dimension_numbers<[1], [1], [0], [0], [0, 0, 1, 0], [], []>} : vector<16x48xf32>, vector<2x48xf32>, vector<16x2xf32> -> vector<16x2xf32>
    "tpu.trace_stop"() : () -> ()
    %140 = vector.broadcast %14 : vector<1x2xf32> to vector<16x2xf32>
    %141 = arith.addf %139, %140 : vector<16x2xf32>
    %cst_37 = arith.constant 0.000000e+00 : f32
    %142 = vector.broadcast %cst_37 : f32 to vector<16x2xf32>
    %143 = arith.maximumf %141, %142 : vector<16x2xf32>
    %cst_38 = arith.constant dense<0xFF800000> : vector<2xf32>
    %144 = vector.multi_reduction <maximumf>, %143, %cst_38 [0] : vector<16x2xf32> to vector<2xf32>
    %145 = vector.shape_cast %144 : vector<2xf32> to vector<1x2xf32>
    %146 = vector.broadcast %145 : vector<1x2xf32> to vector<16x2xf32>
    %147 = arith.subf %143, %146 : vector<16x2xf32>
    %148 = math.exp %147 : vector<16x2xf32>
    %149 = tpu.iota {dimensions = array<i32: 0>} : vector<8x16xi32>
    %150 = tpu.iota {dimensions = array<i32: 1>} : vector<8x16xi32>
    %c2_i32 = arith.constant 2 : i32
    %151 = vector.broadcast %c2_i32 : i32 to vector<8x16xi32>
    %152 = arith.muli %149, %151 : vector<8x16xi32>
    %153 = arith.cmpi sge, %150, %152 : vector<8x16xi32>
    %c1_i32_39 = arith.constant 1 : i32
    %154 = vector.broadcast %c1_i32_39 : i32 to vector<8x16xi32>
    %155 = arith.addi %149, %154 : vector<8x16xi32>
    %c2_i32_40 = arith.constant 2 : i32
    %156 = vector.broadcast %c2_i32_40 : i32 to vector<8x16xi32>
    %157 = arith.muli %155, %156 : vector<8x16xi32>
    %158 = arith.cmpi slt, %150, %157 : vector<8x16xi32>
    %159 = arith.andi %153, %158 : vector<8x16xi1>
    %cst_41 = arith.constant 1.000000e+00 : f32
    %cst_42 = arith.constant 0.000000e+00 : f32
    %160 = vector.broadcast %cst_41 : f32 to vector<8x16xf32>
    %161 = vector.broadcast %cst_42 : f32 to vector<8x16xf32>
    %162 = arith.select %159, %160, %161 : vector<8x16xi1>, vector<8x16xf32>
    %cst_43 = arith.constant dense<0.000000e+00> : vector<8x2xf32>
    %163 = tpu.matmul %162, %148, %cst_43 {dimension_numbers = #tpu.dot_dimension_numbers<[1], [0], [0], [1], [0, 0, 1, 1], [], []>} : vector<8x16xf32>, vector<16x2xf32>, vector<8x2xf32> -> vector<8x2xf32>
    %164 = math.log %163 : vector<8x2xf32>
    %165 = vector.broadcast %145 : vector<1x2xf32> to vector<8x2xf32>
    %166 = arith.addf %165, %164 : vector<8x2xf32>
    %167 = arith.mulf %143, %15 : vector<16x2xf32>
    %cst_44 = arith.constant dense<0.000000e+00> : vector<2xf32>
    %168 = vector.multi_reduction <add>, %167, %cst_44 [0] : vector<16x2xf32> to vector<2xf32>
    %169 = vector.shape_cast %168 : vector<2xf32> to vector<1x2xf32>
    %cst_45 = arith.constant dense<0.000000e+00> : vector<2xf32>
    %170 = vector.multi_reduction <add>, %166, %cst_45 [0] : vector<8x2xf32> to vector<2xf32>
    %171 = vector.shape_cast %170 : vector<2xf32> to vector<1x2xf32>
    %172 = arith.subf %171, %169 : vector<1x2xf32>
    %cst_46 = arith.constant 1.250000e-01 : f32
    %173 = vector.broadcast %cst_46 : f32 to vector<1x2xf32>
    %174 = arith.mulf %172, %173 : vector<1x2xf32>
    %cst_47 = arith.constant dense<0.000000e+00> : vector<1xf32>
    %175 = vector.multi_reduction <add>, %174, %cst_47 [1] : vector<1x2xf32> to vector<1xf32>
    %176 = vector.shape_cast %175 : vector<1xf32> to vector<1x1xf32>
    %cst_48 = arith.constant 5.000000e-01 : f32
    %177 = vector.broadcast %cst_48 : f32 to vector<1x1xf32>
    %178 = arith.mulf %177, %176 : vector<1x1xf32>
    %179 = vector.shape_cast %178 : vector<1x1xf32> to vector<1x1xf32>
    %180 = vector.broadcast %179 : vector<1x1xf32> to vector<16x1xf32>
    %181 = tpu.concatenate %143, %180 in 1 : vector<16x2xf32>, vector<16x1xf32> -> vector<16x3xf32>
    %c0_49 = arith.constant 0 : index
    %c0_50 = arith.constant 0 : index
    %182 = vector.load %arg7[%c0_49, %c0_50] : memref<16x3xf32, #tpu.memory_space<vmem>>, vector<16x3xf32>
    tpu.vector_store %arg7[%c0_49, %c0_50], %181 {strides = array<i32>} : memref<16x3xf32, #tpu.memory_space<vmem>>, vector<16x3xf32>,
    return
  }
}

</mosaic_0001>

<llo_original>
// kernel: tpu_custom_call.1
$region0: #{tpu_custom_call.1}
  #allocation0 [shape = 'u32[]', space=smem, size = 0x4, offset = 0x4, fixed_abs, tag = 'smem constant byte address 0x4 - core index']
  #allocation1 [shape = 'u32[72,128]{1,0:T(1,128)}', space=vmem, size = 0x9000, scoped, tag = 'internal scratch']
  #allocation2 [shape = 'f32[48,2048]{1,0:T(8,128)}', space=vmem, size = 0x60000, scoped, tag = 'scratch operand']
  #allocation3 [shape = 'f32[2048,48]{1,0:T(8,128)}', space=vmem, size = 0x100000, scoped, tag = 'scratch operand']
  #allocation4 [shape = 's32[2]{0}', space=sflag, size = 0x8, scoped, tag = 'scratch operand']
  #allocation5 [shape = 's32[]', space=sflag, size = 0x4, offset = 0, fixed_abs, tag = 'sflag constant byte address 0x0 - dummy sync flag']
  #allocation6 [shape = 's32[]', space=sflag, size = 0x4, offset = 0, fixed_abs, tag = 'sflag constant byte address 0x0 - dummy sync flag']
  %s0 = inlined_call_operand.vmem [shape: f32[16,48], index: 0, kind: input, shape index: {}]
  %s1 = inlined_call_operand.vmem [shape: f32[32,144], index: 1, kind: input, shape index: {}]
  %s2 = inlined_call_operand.vmem [shape: f32[48,144], index: 2, kind: input, shape index: {}]
  %s3 = inlined_call_operand.vmem [shape: f32[48,48], index: 3, kind: input, shape index: {}]
  %s4 = inlined_call_operand.vmem [shape: f32[1,2048], index: 4, kind: input, shape index: {}]
  %s5 = inlined_call_operand.vmem [shape: f32[48,2048], index: 5, kind: input, shape index: {}]
  %s6 = inlined_call_operand.vmem [shape: f32[2048,48], index: 6, kind: input, shape index: {}]
  %s7 = inlined_call_operand.vmem [shape: f32[16,3], index: 7, kind: output, shape index: {}]
  %s8 = sld [smem:[#allocation0]]
  $region68: #{tpu_custom_call.1} parent=0
    _
  %s10 = ssub.s32 1, %s8
  %s11 = scalar_select 0, %s10, %s8
  // Predicated region
  $region2: #{tpu_custom_call.1} parent=0 // pred_check
    _
  $region3: #{tpu_custom_call.1} parent=0 // pred_check_branch
    %13 = sbr.rel (0) target = $region5
  $region4: #{tpu_custom_call.1} parent=0 // pred_region
    _
  $region5: #{tpu_custom_call.1} parent=0 // pred_fallthru
    _
  // Predicated region
  $region6: #{tpu_custom_call.1} parent=0 // pred_check
    _
  $region7: #{tpu_custom_call.1} parent=0 // pred_check_branch
    %15 = sbr.rel (0) target = $region9
  $region8: #{tpu_custom_call.1} parent=0 // pred_region
    _
  $region9: #{tpu_custom_call.1} parent=0 // pred_fallthru
    _
  // Predicated region
  $region10: #{tpu_custom_call.1} parent=0 // pred_check
    _
  $region11: #{tpu_custom_call.1} parent=0 // pred_check_branch
    %17 = sbr.rel (0) target = $region13
  $region12: #{tpu_custom_call.1} parent=0 // pred_region
    _
  $region13: #{tpu_custom_call.1} parent=0 // pred_fallthru
    _
  // Predicated region
  $region14: #{tpu_custom_call.1} parent=0 // pred_check
    _
  $region15: #{tpu_custom_call.1} parent=0 // pred_check_branch
    %19 = sbr.rel (0) target = $region17
  $region16: #{tpu_custom_call.1} parent=0 // pred_region
    _
  $region17: #{tpu_custom_call.1} parent=0 // pred_fallthru
    _
  // Predicated region
  $region18: #{tpu_custom_call.1} parent=0 // pred_check
    _
  $region19: #{tpu_custom_call.1} parent=0 // pred_check_branch
    %21 = sbr.rel (0) target = $region21
  $region20: #{tpu_custom_call.1} parent=0 // pred_region
    _
  $region21: #{tpu_custom_call.1} parent=0 // pred_fallthru
    _
  // Predicated region
  $region22: #{tpu_custom_call.1} parent=0 // pred_check
    _
  $region23: #{tpu_custom_call.1} parent=0 // pred_check_branch
    %23 = sbr.rel (0) target = $region25
  $region24: #{tpu_custom_call.1} parent=0 // pred_region
    loop: start=0, step=1, limit=1
    $region26: #{tpu_custom_call.1} parent=24 // loop_pre_header
      _
    $region27: #{tpu_custom_call.1} parent=24 // loop_header
      %s25 = sphi 0, %s29
      %p26 = scmp.ge.s32.totalorder %s25, 1
      %s30 = sphi %s5, %s5
      %s31 = sphi [#allocation2], [#allocation2]
    $region28: #{tpu_custom_call.1} parent=24 // loop_header_branch
      %28 = sbr.rel (%p26) target = $region32
    $region29: #{tpu_custom_call.1} parent=24 // loop_body
      %v32 = vld [vmem:[%s30] sm:$0xff]
      %33 = vst [vmem:[%s31] sm:$0xff] %v32
      %v34 = vld [vmem:[%s30 + $0x8] sm:$0xff]
      %35 = vst [vmem:[%s31 + $0x8] sm:$0xff] %v34
      %v36 = vld [vmem:[%s30 + $0x10] sm:$0xff]
      %37 = vst [vmem:[%s31 + $0x10] sm:$0xff] %v36
      %v38 = vld [vmem:[%s30 + $0x18] sm:$0xff]
      %39 = vst [vmem:[%s31 + $0x18] sm:$0xff] %v38
      %v40 = vld [vmem:[%s30 + $0x20] sm:$0xff]
      %41 = vst [vmem:[%s31 + $0x20] sm:$0xff] %v40
      %v42 = vld [vmem:[%s30 + $0x28] sm:$0xff]
      %43 = vst [vmem:[%s31 + $0x28] sm:$0xff] %v42
      %v44 = vld [vmem:[%s30 + $0x30] sm:$0xff]
      %45 = vst [vmem:[%s31 + $0x30] sm:$0xff] %v44
      %v46 = vld [vmem:[%s30 + $0x38] sm:$0xff]
      %47 = vst [vmem:[%s31 + $0x38] sm:$0xff] %v46
      %v48 = vld [vmem:[%s30 + $0x40] sm:$0xff]
      %49 = vst [vmem:[%s31 + $0x40] sm:$0xff] %v48
      %v50 = vld [vmem:[%s30 + $0x48] sm:$0xff]
      %51 = vst [vmem:[%s31 + $0x48] sm:$0xff] %v50
      %v52 = vld [vmem:[%s30 + $0x50] sm:$0xff]
      %53 = vst [vmem:[%s31 + $0x50] sm:$0xff] %v52
      %v54 = vld [vmem:[%s30 + $0x58] sm:$0xff]
      %55 = vst [vmem:[%s31 + $0x58] sm:$0xff] %v54
      %v56 = vld [vmem:[%s30 + $0x60] sm:$0xff]
      %57 = vst [vmem:[%s31 + $0x60] sm:$0xff] %v56
      %v58 = vld [vmem:[%s30 + $0x68] sm:$0xff]
      %59 = vst [vmem:[%s31 + $0x68] sm:$0xff] %v58
      %v60 = vld [vmem:[%s30 + $0x70] sm:$0xff]
      %61 = vst [vmem:[%s31 + $0x70] sm:$0xff] %v60
      %v62 = vld [vmem:[%s30 + $0x78] sm:$0xff]
      %63 = vst [vmem:[%s31 + $0x78] sm:$0xff] %v62
      %v64 = vld [vmem:[%s30 + $0x80] sm:$0xff]
      %65 = vst [vmem:[%s31 + $0x80] sm:$0xff] %v64
      %v66 = vld [vmem:[%s30 + $0x88] sm:$0xff]
      %67 = vst [vmem:[%s31 + $0x88] sm:$0xff] %v66
      %v68 = vld [vmem:[%s30 + $0x90] sm:$0xff]
      %69 = vst [vmem:[%s31 + $0x90] sm:$0xff] %v68
      %v70 = vld [vmem:[%s30 + $0x98] sm:$0xff]
      %71 = vst [vmem:[%s31 + $0x98] sm:$0xff] %v70
      %v72 = vld [vmem:[%s30 + $0xa0] sm:$0xff]
      %73 = vst [vmem:[%s31 + $0xa0] sm:$0xff] %v72
      %v74 = vld [vmem:[%s30 + $0xa8] sm:$0xff]
      %75 = vst [vmem:[%s31 + $0xa8] sm:$0xff] %v74
      %v76 = vld [vmem:[%s30 + $0xb0] sm:$0xff]
      %77 = vst [vmem:[%s31 + $0xb0] sm:$0xff] %v76
      %v78 = vld [vmem:[%s30 + $0xb8] sm:$0xff]
      %79 = vst [vmem:[%s31 + $0xb8] sm:$0xff] %v78
      %v80 = vld [vmem:[%s30 + $0xc0] sm:$0xff]
      %81 = vst [vmem:[%s31 + $0xc0] sm:$0xff] %v80
      %v82 = vld [vmem:[%s30 + $0xc8] sm:$0xff]
      %83 = vst [vmem:[%s31 + $0xc8] sm:$0xff] %v82
      %v84 = vld [vmem:[%s30 + $0xd0] sm:$0xff]
      %85 = vst [vmem:[%s31 + $0xd0] sm:$0xff] %v84
      %v86 = vld [vmem:[%s30 + $0xd8] sm:$0xff]
      %87 = vst [vmem:[%s31 + $0xd8] sm:$0xff] %v86
      %v88 = vld [vmem:[%s30 + $0xe0] sm:$0xff]
      %89 = vst [vmem:[%s31 + $0xe0] sm:$0xff] %v88
      %v90 = vld [vmem:[%s30 + $0xe8] sm:$0xff]
      %91 = vst [vmem:[%s31 + $0xe8] sm:$0xff] %v90
      %v92 = vld [vmem:[%s30 + $0xf0] sm:$0xff]
      %93 = vst [vmem:[%s31 + $0xf0] sm:$0xff] %v92
      %v94 = vld [vmem:[%s30 + $0xf8] sm:$0xff]
      %95 = vst [vmem:[%s31 + $0xf8] sm:$0xff] %v94
      %v96 = vld [vmem:[%s30 + $0x100] sm:$0xff]
      %97 = vst [vmem:[%s31 + $0x100] sm:$0xff] %v96
      %v98 = vld [vmem:[%s30 + $0x108] sm:$0xff]
      %99 = vst [vmem:[%s31 + $0x108] sm:$0xff] %v98
      %v100 = vld [vmem:[%s30 + $0x110] sm:$0xff]
      %101 = vst [vmem:[%s31 + $0x110] sm:$0xff] %v100
      %v102 = vld [vmem:[%s30 + $0x118] sm:$0xff]
      %103 = vst [vmem:[%s31 + $0x118] sm:$0xff] %v102
      %v104 = vld [vmem:[%s30 + $0x120] sm:$0xff]
      %105 = vst [vmem:[%s31 + $0x120] sm:$0xff] %v104
      %v106 = vld [vmem:[%s30 + $0x128] sm:$0xff]
      %107 = vst [vmem:[%s31 + $0x128] sm:$0xff] %v106
      %v108 = vld [vmem:[%s30 + $0x130] sm:$0xff]
      %109 = vst [vmem:[%s31 + $0x130] sm:$0xff] %v108
      %v110 = vld [vmem:[%s30 + $0x138] sm:$0xff]
      %111 = vst [vmem:[%s31 + $0x138] sm:$0xff] %v110
      %v112 = vld [vmem:[%s30 + $0x140] sm:$0xff]
      %113 = vst [vmem:[%s31 + $0x140] sm:$0xff] %v112
      %v114 = vld [vmem:[%s30 + $0x148] sm:$0xff]
      %115 = vst [vmem:[%s31 + $0x148] sm:$0xff] %v114
      %v116 = vld [vmem:[%s30 + $0x150] sm:$0xff]
      %117 = vst [vmem:[%s31 + $0x150] sm:$0xff] %v116
      %v118 = vld [vmem:[%s30 + $0x158] sm:$0xff]
      %119 = vst [vmem:[%s31 + $0x158] sm:$0xff] %v118
      %v120 = vld [vmem:[%s30 + $0x160] sm:$0xff]
      %121 = vst [vmem:[%s31 + $0x160] sm:$0xff] %v120
      %v122 = vld [vmem:[%s30 + $0x168] sm:$0xff]
      %123 = vst [vmem:[%s31 + $0x168] sm:$0xff] %v122
      %v124 = vld [vmem:[%s30 + $0x170] sm:$0xff]
      %125 = vst [vmem:[%s31 + $0x170] sm:$0xff] %v124
      %v126 = vld [vmem:[%s30 + $0x178] sm:$0xff]
      %127 = vst [vmem:[%s31 + $0x178] sm:$0xff] %v126
      %v128 = vld [vmem:[%s30 + $0x180] sm:$0xff]
      %129 = vst [vmem:[%s31 + $0x180] sm:$0xff] %v128
      %v130 = vld [vmem:[%s30 + $0x188] sm:$0xff]
      %131 = vst [vmem:[%s31 + $0x188] sm:$0xff] %v130
      %v132 = vld [vmem:[%s30 + $0x190] sm:$0xff]
      %133 = vst [vmem:[%s31 + $0x190] sm:$0xff] %v132
      %v134 = vld [vmem:[%s30 + $0x198] sm:$0xff]
      %135 = vst [vmem:[%s31 + $0x198] sm:$0xff] %v134
      %v136 = vld [vmem:[%s30 + $0x1a0] sm:$0xff]
      %137 = vst [vmem:[%s31 + $0x1a0] sm:$0xff] %v136
      %v138 = vld [vmem:[%s30 + $0x1a8] sm:$0xff]
      %139 = vst [vmem:[%s31 + $0x1a8] sm:$0xff] %v138
      %v140 = vld [vmem:[%s30 + $0x1b0] sm:$0xff]
      %141 = vst [vmem:[%s31 + $0x1b0] sm:$0xff] %v140
      %v142 = vld [vmem:[%s30 + $0x1b8] sm:$0xff]
      %143 = vst [vmem:[%s31 + $0x1b8] sm:$0xff] %v142
      %v144 = vld [vmem:[%s30 + $0x1c0] sm:$0xff]
      %145 = vst [vmem:[%s31 + $0x1c0] sm:$0xff] %v144
      %v146 = vld [vmem:[%s30 + $0x1c8] sm:$0xff]
      %147 = vst [vmem:[%s31 + $0x1c8] sm:$0xff] %v146
      %v148 = vld [vmem:[%s30 + $0x1d0] sm:$0xff]
      %149 = vst [vmem:[%s31 + $0x1d0] sm:$0xff] %v148
      %v150 = vld [vmem:[%s30 + $0x1d8] sm:$0xff]
      %151 = vst [vmem:[%s31 + $0x1d8] sm:$0xff] %v150
      %v152 = vld [vmem:[%s30 + $0x1e0] sm:$0xff]
      %153 = vst [vmem:[%s31 + $0x1e0] sm:$0xff] %v152
      %v154 = vld [vmem:[%s30 + $0x1e8] sm:$0xff]
      %155 = vst [vmem:[%s31 + $0x1e8] sm:$0xff] %v154
      %v156 = vld [vmem:[%s30 + $0x1f0] sm:$0xff]
      %157 = vst [vmem:[%s31 + $0x1f0] sm:$0xff] %v156
      %v158 = vld [vmem:[%s30 + $0x1f8] sm:$0xff]
      %159 = vst [vmem:[%s31 + $0x1f8] sm:$0xff] %v158
      %v160 = vld [vmem:[%s30 + $0x200] sm:$0xff]
      %161 = vst [vmem:[%s31 + $0x200] sm:$0xff] %v160
      %v162 = vld [vmem:[%s30 + $0x208] sm:$0xff]
      %163 = vst [vmem:[%s31 + $0x208] sm:$0xff] %v162
      %v164 = vld [vmem:[%s30 + $0x210] sm:$0xff]
      %165 = vst [vmem:[%s31 + $0x210] sm:$0xff] %v164
      %v166 = vld [vmem:[%s30 + $0x218] sm:$0xff]
      %167 = vst [vmem:[%s31 + $0x218] sm:$0xff] %v166
      %v168 = vld [vmem:[%s30 + $0x220] sm:$0xff]
      %169 = vst [vmem:[%s31 + $0x220] sm:$0xff] %v168
      %v170 = vld [vmem:[%s30 + $0x228] sm:$0xff]
      %171 = vst [vmem:[%s31 + $0x228] sm:$0xff] %v170
      %v172 = vld [vmem:[%s30 + $0x230] sm:$0xff]
      %173 = vst [vmem:[%s31 + $0x230] sm:$0xff] %v172
      %v174 = vld [vmem:[%s30 + $0x238] sm:$0xff]
      %175 = vst [vmem:[%s31 + $0x238] sm:$0xff] %v174
      %v176 = vld [vmem:[%s30 + $0x240] sm:$0xff]
      %177 = vst [vmem:[%s31 + $0x240] sm:$0xff] %v176
      %v178 = vld [vmem:[%s30 + $0x248] sm:$0xff]
      %179 = vst [vmem:[%s31 + $0x248] sm:$0xff] %v178
      %v180 = vld [vmem:[%s30 + $0x250] sm:$0xff]
      %181 = vst [vmem:[%s31 + $0x250] sm:$0xff] %v180
      %v182 = vld [vmem:[%s30 + $0x258] sm:$0xff]
      %183 = vst [vmem:[%s31 + $0x258] sm:$0xff] %v182
      %v184 = vld [vmem:[%s30 + $0x260] sm:$0xff]
      %185 = vst [vmem:[%s31 + $0x260] sm:$0xff] %v184
      %v186 = vld [vmem:[%s30 + $0x268] sm:$0xff]
      %187 = vst [vmem:[%s31 + $0x268] sm:$0xff] %v186
      %v188 = vld [vmem:[%s30 + $0x270] sm:$0xff]
      %189 = vst [vmem:[%s31 + $0x270] sm:$0xff] %v188
      %v190 = vld [vmem:[%s30 + $0x278] sm:$0xff]
      %191 = vst [vmem:[%s31 + $0x278] sm:$0xff] %v190
      %v192 = vld [vmem:[%s30 + $0x280] sm:$0xff]
      %193 = vst [vmem:[%s31 + $0x280] sm:$0xff] %v192
      %v194 = vld [vmem:[%s30 + $0x288] sm:$0xff]
      %195 = vst [vmem:[%s31 + $0x288] sm:$0xff] %v194
      %v196 = vld [vmem:[%s30 + $0x290] sm:$0xff]
      %197 = vst [vmem:[%s31 + $0x290] sm:$0xff] %v196
      %v198 = vld [vmem:[%s30 + $0x298] sm:$0xff]
      %199 = vst [vmem:[%s31 + $0x298] sm:$0xff] %v198
      %v200 = vld [vmem:[%s30 + $0x2a0] sm:$0xff]
      %201 = vst [vmem:[%s31 + $0x2a0] sm:$0xff] %v200
      %v202 = vld [vmem:[%s30 + $0x2a8] sm:$0xff]
      %203 = vst [vmem:[%s31 + $0x2a8] sm:$0xff] %v202
      %v204 = vld [vmem:[%s30 + $0x2b0] sm:$0xff]
      %205 = vst [vmem:[%s31 + $0x2b0] sm:$0xff] %v204
      %v206 = vld [vmem:[%s30 + $0x2b8] sm:$0xff]
      %207 = vst [vmem:[%s31 + $0x2b8] sm:$0xff] %v206
      %v208 = vld [vmem:[%s30 + $0x2c0] sm:$0xff]
      %209 = vst [vmem:[%s31 + $0x2c0] sm:$0xff] %v208
      %v210 = vld [vmem:[%s30 + $0x2c8] sm:$0xff]
      %211 = vst [vmem:[%s31 + $0x2c8] sm:$0xff] %v210
      %v212 = vld [vmem:[%s30 + $0x2d0] sm:$0xff]
      %213 = vst [vmem:[%s31 + $0x2d0] sm:$0xff] %v212
      %v214 = vld [vmem:[%s30 + $0x2d8] sm:$0xff]
      %215 = vst [vmem:[%s31 + $0x2d8] sm:$0xff] %v214
      %v216 = vld [vmem:[%s30 + $0x2e0] sm:$0xff]
      %217 = vst [vmem:[%s31 + $0x2e0] sm:$0xff] %v216
      %v218 = vld [vmem:[%s30 + $0x2e8] sm:$0xff]
      %219 = vst [vmem:[%s31 + $0x2e8] sm:$0xff] %v218
      %v220 = vld [vmem:[%s30 + $0x2f0] sm:$0xff]
      %221 = vst [vmem:[%s31 + $0x2f0] sm:$0xff] %v220
      %v222 = vld [vmem:[%s30 + $0x2f8] sm:$0xff]
      %223 = vst [vmem:[%s31 + $0x2f8] sm:$0xff] %v222
    $region30: #{tpu_custom_call.1} parent=24 // loop_footer
      %s29 = sadd.s32 1, %s25
    $region31: #{tpu_custom_call.1} parent=24 // loop_footer_branch
      %24 = sbr.rel target = $region27
    $region32: #{tpu_custom_call.1} parent=24 // loop_exit
      _
  $region25: #{tpu_custom_call.1} parent=0 // pred_fallthru
    _
  // Predicated region
  $region33: #{tpu_custom_call.1} parent=0 // pred_check
    _
  $region34: #{tpu_custom_call.1} parent=0 // pred_check_branch
    %225 = sbr.rel target = $region36
  $region35: #{tpu_custom_call.1} parent=0 // pred_region
    _
  $region36: #{tpu_custom_call.1} parent=0 // pred_fallthru
    _
  // Predicated region
  $region37: #{tpu_custom_call.1} parent=0 // pred_check
    _
  $region38: #{tpu_custom_call.1} parent=0 // pred_check_branch
    %228 = sbr.rel (0) target = $region40
  $region39: #{tpu_custom_call.1} parent=0 // pred_region
    %229 = vsyncadd [#allocation4], 12288
  $region40: #{tpu_custom_call.1} parent=0 // pred_fallthru
    _
  %s230 = scalar_lea.sflag [#allocation4], 1
  // Predicated region
  $region41: #{tpu_custom_call.1} parent=0 // pred_check
    _
  $region42: #{tpu_custom_call.1} parent=0 // pred_check_branch
    %232 = sbr.rel (0) target = $region44
  $region43: #{tpu_custom_call.1} parent=0 // pred_region
    loop: start=0, step=1, limit=1
    $region45: #{tpu_custom_call.1} parent=43 // loop_pre_header
      _
    $region46: #{tpu_custom_call.1} parent=43 // loop_header
      %s234 = sphi 0, %s238
      %p235 = scmp.ge.s32.totalorder %s234, 1
      %s239 = sphi %s6, %s6
      %s240 = sphi [#allocation3], [#allocation3]
    $region47: #{tpu_custom_call.1} parent=43 // loop_header_branch
      %237 = sbr.rel (%p235) target = $region51
    $region48: #{tpu_custom_call.1} parent=43 // loop_body
      %v241 = vld [vmem:[%s239] sm:$0xff]
      %242 = vst [vmem:[%s240] sm:$0xff] %v241
      %v243 = vld [vmem:[%s239 + $0x8] sm:$0xff]
      %244 = vst [vmem:[%s240 + $0x8] sm:$0xff] %v243
      %v245 = vld [vmem:[%s239 + $0x10] sm:$0xff]
      %246 = vst [vmem:[%s240 + $0x10] sm:$0xff] %v245
      %v247 = vld [vmem:[%s239 + $0x18] sm:$0xff]
      %248 = vst [vmem:[%s240 + $0x18] sm:$0xff] %v247
      %v249 = vld [vmem:[%s239 + $0x20] sm:$0xff]
      %250 = vst [vmem:[%s240 + $0x20] sm:$0xff] %v249
      %v251 = vld [vmem:[%s239 + $0x28] sm:$0xff]
      %252 = vst [vmem:[%s240 + $0x28] sm:$0xff] %v251
      %v253 = vld [vmem:[%s239 + $0x30] sm:$0xff]
      %254 = vst [vmem:[%s240 + $0x30] sm:$0xff] %v253
      %v255 = vld [vmem:[%s239 + $0x38] sm:$0xff]
      %256 = vst [vmem:[%s240 + $0x38] sm:$0xff] %v255
      %v257 = vld [vmem:[%s239 + $0x40] sm:$0xff]
      %258 = vst [vmem:[%s240 + $0x40] sm:$0xff] %v257
      %v259 = vld [vmem:[%s239 + $0x48] sm:$0xff]
      %260 = vst [vmem:[%s240 + $0x48] sm:$0xff] %v259
      %v261 = vld [vmem:[%s239 + $0x50] sm:$0xff]
      %262 = vst [vmem:[%s240 + $0x50] sm:$0xff] %v261
      %v263 = vld [vmem:[%s239 + $0x58] sm:$0xff]
      %264 = vst [vmem:[%s240 + $0x58] sm:$0xff] %v263
      %v265 = vld [vmem:[%s239 + $0x60] sm:$0xff]
      %266 = vst [vmem:[%s240 + $0x60] sm:$0xff] %v265
      %v267 = vld [vmem:[%s239 + $0x68] sm:$0xff]
      %268 = vst [vmem:[%s240 + $0x68] sm:$0xff] %v267
      %v269 = vld [vmem:[%s239 + $0x70] sm:$0xff]
      %270 = vst [vmem:[%s240 + $0x70] sm:$0xff] %v269
      %v271 = vld [vmem:[%s239 + $0x78] sm:$0xff]
      %272 = vst [vmem:[%s240 + $0x78] sm:$0xff] %v271
      %v273 = vld [vmem:[%s239 + $0x80] sm:$0xff]
      %274 = vst [vmem:[%s240 + $0x80] sm:$0xff] %v273
      %v275 = vld [vmem:[%s239 + $0x88] sm:$0xff]
      %276 = vst [vmem:[%s240 + $0x88] sm:$0xff] %v275
      %v277 = vld [vmem:[%s239 + $0x90] sm:$0xff]
      %278 = vst [vmem:[%s240 + $0x90] sm:$0xff] %v277
      %v279 = vld [vmem:[%s239 + $0x98] sm:$0xff]
      %280 = vst [vmem:[%s240 + $0x98] sm:$0xff] %v279
      %v281 = vld [vmem:[%s239 + $0xa0] sm:$0xff]
      %282 = vst [vmem:[%s240 + $0xa0] sm:$0xff] %v281
      %v283 = vld [vmem:[%s239 + $0xa8] sm:$0xff]
      %284 = vst [vmem:[%s240 + $0xa8] sm:$0xff] %v283
      %v285 = vld [vmem:[%s239 + $0xb0] sm:$0xff]
      %286 = vst [vmem:[%s240 + $0xb0] sm:$0xff] %v285
      %v287 = vld [vmem:[%s239 + $0xb8] sm:$0xff]
      %288 = vst [vmem:[%s240 + $0xb8] sm:$0xff] %v287
      %v289 = vld [vmem:[%s239 + $0xc0] sm:$0xff]
      %290 = vst [vmem:[%s240 + $0xc0] sm:$0xff] %v289
      %v291 = vld [vmem:[%s239 + $0xc8] sm:$0xff]
      %292 = vst [vmem:[%s240 + $0xc8] sm:$0xff] %v291
      %v293 = vld [vmem:[%s239 + $0xd0] sm:$0xff]
      %294 = vst [vmem:[%s240 + $0xd0] sm:$0xff] %v293
      %v295 = vld [vmem:[%s239 + $0xd8] sm:$0xff]
      %296 = vst [vmem:[%s240 + $0xd8] sm:$0xff] %v295
      %v297 = vld [vmem:[%s239 + $0xe0] sm:$0xff]
      %298 = vst [vmem:[%s240 + $0xe0] sm:$0xff] %v297
      %v299 = vld [vmem:[%s239 + $0xe8] sm:$0xff]
      %300 = vst [vmem:[%s240 + $0xe8] sm:$0xff] %v299
      %v301 = vld [vmem:[%s239 + $0xf0] sm:$0xff]
      %302 = vst [vmem:[%s240 + $0xf0] sm:$0xff] %v301
      %v303 = vld [vmem:[%s239 + $0xf8] sm:$0xff]
      %304 = vst [vmem:[%s240 + $0xf8] sm:$0xff] %v303
      %v305 = vld [vmem:[%s239 + $0x100] sm:$0xff]
      %306 = vst [vmem:[%s240 + $0x100] sm:$0xff] %v305
      %v307 = vld [vmem:[%s239 + $0x108] sm:$0xff]
      %308 = vst [vmem:[%s240 + $0x108] sm:$0xff] %v307
      %v309 = vld [vmem:[%s239 + $0x110] sm:$0xff]
      %310 = vst [vmem:[%s240 + $0x110] sm:$0xff] %v309
      %v311 = vld [vmem:[%s239 + $0x118] sm:$0xff]
      %312 = vst [vmem:[%s240 + $0x118] sm:$0xff] %v311
      %v313 = vld [vmem:[%s239 + $0x120] sm:$0xff]
      %314 = vst [vmem:[%s240 + $0x120] sm:$0xff] %v313
      %v315 = vld [vmem:[%s239 + $0x128] sm:$0xff]
      %316 = vst [vmem:[%s240 + $0x128] sm:$0xff] %v315
      %v317 = vld [vmem:[%s239 + $0x130] sm:$0xff]
      %318 = vst [vmem:[%s240 + $0x130] sm:$0xff] %v317
      %v319 = vld [vmem:[%s239 + $0x138] sm:$0xff]
      %320 = vst [vmem:[%s240 + $0x138] sm:$0xff] %v319
      %v321 = vld [vmem:[%s239 + $0x140] sm:$0xff]
      %322 = vst [vmem:[%s240 + $0x140] sm:$0xff] %v321
      %v323 = vld [vmem:[%s239 + $0x148] sm:$0xff]
      %324 = vst [vmem:[%s240 + $0x148] sm:$0xff] %v323
      %v325 = vld [vmem:[%s239 + $0x150] sm:$0xff]
      %326 = vst [vmem:[%s240 + $0x150] sm:$0xff] %v325
      %v327 = vld [vmem:[%s239 + $0x158] sm:$0xff]
      %328 = vst [vmem:[%s240 + $0x158] sm:$0xff] %v327
      %v329 = vld [vmem:[%s239 + $0x160] sm:$0xff]
      %330 = vst [vmem:[%s240 + $0x160] sm:$0xff] %v329
      %v331 = vld [vmem:[%s239 + $0x168] sm:$0xff]
      %332 = vst [vmem:[%s240 + $0x168] sm:$0xff] %v331
      %v333 = vld [vmem:[%s239 + $0x170] sm:$0xff]
      %334 = vst [vmem:[%s240 + $0x170] sm:$0xff] %v333
      %v335 = vld [vmem:[%s239 + $0x178] sm:$0xff]
      %336 = vst [vmem:[%s240 + $0x178] sm:$0xff] %v335
      %v337 = vld [vmem:[%s239 + $0x180] sm:$0xff]
      %338 = vst [vmem:[%s240 + $0x180] sm:$0xff] %v337
      %v339 = vld [vmem:[%s239 + $0x188] sm:$0xff]
      %340 = vst [vmem:[%s240 + $0x188] sm:$0xff] %v339
      %v341 = vld [vmem:[%s239 + $0x190] sm:$0xff]
      %342 = vst [vmem:[%s240 + $0x190] sm:$0xff] %v341
      %v343 = vld [vmem:[%s239 + $0x198] sm:$0xff]
      %344 = vst [vmem:[%s240 + $0x198] sm:$0xff] %v343
      %v345 = vld [vmem:[%s239 + $0x1a0] sm:$0xff]
      %346 = vst [vmem:[%s240 + $0x1a0] sm:$0xff] %v345
      %v347 = vld [vmem:[%s239 + $0x1a8] sm:$0xff]
      %348 = vst [vmem:[%s240 + $0x1a8] sm:$0xff] %v347
      %v349 = vld [vmem:[%s239 + $0x1b0] sm:$0xff]
      %350 = vst [vmem:[%s240 + $0x1b0] sm:$0xff] %v349
      %v351 = vld [vmem:[%s239 + $0x1b8] sm:$0xff]
      %352 = vst [vmem:[%s240 + $0x1b8] sm:$0xff] %v351
      %v353 = vld [vmem:[%s239 + $0x1c0] sm:$0xff]
      %354 = vst [vmem:[%s240 + $0x1c0] sm:$0xff] %v353
      %v355 = vld [vmem:[%s239 + $0x1c8] sm:$0xff]
      %356 = vst [vmem:[%s240 + $0x1c8] sm:$0xff] %v355
      %v357 = vld [vmem:[%s239 + $0x1d0] sm:$0xff]
      %358 = vst [vmem:[%s240 + $0x1d0] sm:$0xff] %v357
      %v359 = vld [vmem:[%s239 + $0x1d8] sm:$0xff]
      %360 = vst [vmem:[%s240 + $0x1d8] sm:$0xff] %v359
      %v361 = vld [vmem:[%s239 + $0x1e0] sm:$0xff]
      %362 = vst [vmem:[%s240 + $0x1e0] sm:$0xff] %v361
      %v363 = vld [vmem:[%s239 + $0x1e8] sm:$0xff]
      %364 = vst [vmem:[%s240 + $0x1e8] sm:$0xff] %v363
      %v365 = vld [vmem:[%s239 + $0x1f0] sm:$0xff]
      %366 = vst [vmem:[%s240 + $0x1f0] sm:$0xff] %v365
      %v367 = vld [vmem:[%s239 + $0x1f8] sm:$0xff]
      %368 = vst [vmem:[%s240 + $0x1f8] sm:$0xff] %v367
      %v369 = vld [vmem:[%s239 + $0x200] sm:$0xff]
      %370 = vst [vmem:[%s240 + $0x200] sm:$0xff] %v369
      %v371 = vld [vmem:[%s239 + $0x208] sm:$0xff]
      %372 = vst [vmem:[%s240 + $0x208] sm:$0xff] %v371
      %v373 = vld [vmem:[%s239 + $0x210] sm:$0xff]
      %374 = vst [vmem:[%s240 + $0x210] sm:$0xff] %v373
      %v375 = vld [vmem:[%s239 + $0x218] sm:$0xff]
      %376 = vst [vmem:[%s240 + $0x218] sm:$0xff] %v375
      %v377 = vld [vmem:[%s239 + $0x220] sm:$0xff]
      %378 = vst [vmem:[%s240 + $0x220] sm:$0xff] %v377
      %v379 = vld [vmem:[%s239 + $0x228] sm:$0xff]
      %380 = vst [vmem:[%s240 + $0x228] sm:$0xff] %v379
      %v381 = vld [vmem:[%s239 + $0x230] sm:$0xff]
      %382 = vst [vmem:[%s240 + $0x230] sm:$0xff] %v381
      %v383 = vld [vmem:[%s239 + $0x238] sm:$0xff]
      %384 = vst [vmem:[%s240 + $0x238] sm:$0xff] %v383
      %v385 = vld [vmem:[%s239 + $0x240] sm:$0xff]
      %386 = vst [vmem:[%s240 + $0x240] sm:$0xff] %v385
      %v387 = vld [vmem:[%s239 + $0x248] sm:$0xff]
      %388 = vst [vmem:[%s240 + $0x248] sm:$0xff] %v387
      %v389 = vld [vmem:[%s239 + $0x250] sm:$0xff]
      %390 = vst [vmem:[%s240 + $0x250] sm:$0xff] %v389
      %v391 = vld [vmem:[%s239 + $0x258] sm:$0xff]
      %392 = vst [vmem:[%s240 + $0x258] sm:$0xff] %v391
      %v393 = vld [vmem:[%s239 + $0x260] sm:$0xff]
      %394 = vst [vmem:[%s240 + $0x260] sm:$0xff] %v393
      %v395 = vld [vmem:[%s239 + $0x268] sm:$0xff]
      %396 = vst [vmem:[%s240 + $0x268] sm:$0xff] %v395
      %v397 = vld [vmem:[%s239 + $0x270] sm:$0xff]
      %398 = vst [vmem:[%s240 + $0x270] sm:$0xff] %v397
      %v399 = vld [vmem:[%s239 + $0x278] sm:$0xff]
      %400 = vst [vmem:[%s240 + $0x278] sm:$0xff] %v399
      %v401 = vld [vmem:[%s239 + $0x280] sm:$0xff]
      %402 = vst [vmem:[%s240 + $0x280] sm:$0xff] %v401
      %v403 = vld [vmem:[%s239 + $0x288] sm:$0xff]
      %404 = vst [vmem:[%s240 + $0x288] sm:$0xff] %v403
      %v405 = vld [vmem:[%s239 + $0x290] sm:$0xff]
      %406 = vst [vmem:[%s240 + $0x290] sm:$0xff] %v405
      %v407 = vld [vmem:[%s239 + $0x298] sm:$0xff]
      %408 = vst [vmem:[%s240 + $0x298] sm:$0xff] %v407
      %v409 = vld [vmem:[%s239 + $0x2a0] sm:$0xff]
      %410 = vst [vmem:[%s240 + $0x2a0] sm:$0xff] %v409
      %v411 = vld [vmem:[%s239 + $0x2a8] sm:$0xff]
      %412 = vst [vmem:[%s240 + $0x2a8] sm:$0xff] %v411
      %v413 = vld [vmem:[%s239 + $0x2b0] sm:$0xff]
      %414 = vst [vmem:[%s240 + $0x2b0] sm:$0xff] %v413
      %v415 = vld [vmem:[%s239 + $0x2b8] sm:$0xff]
      %416 = vst [vmem:[%s240 + $0x2b8] sm:$0xff] %v415
      %v417 = vld [vmem:[%s239 + $0x2c0] sm:$0xff]
      %418 = vst [vmem:[%s240 + $0x2c0] sm:$0xff] %v417
      %v419 = vld [vmem:[%s239 + $0x2c8] sm:$0xff]
      %420 = vst [vmem:[%s240 + $0x2c8] sm:$0xff] %v419
      %v421 = vld [vmem:[%s239 + $0x2d0] sm:$0xff]
      %422 = vst [vmem:[%s240 + $0x2d0] sm:$0xff] %v421
      %v423 = vld [vmem:[%s239 + $0x2d8] sm:$0xff]
      %424 = vst [vmem:[%s240 + $0x2d8] sm:$0xff] %v423
      %v425 = vld [vmem:[%s239 + $0x2e0] sm:$0xff]
      %426 = vst [vmem:[%s240 + $0x2e0] sm:$0xff] %v425
      %v427 = vld [vmem:[%s239 + $0x2e8] sm:$0xff]
      %428 = vst [vmem:[%s240 + $0x2e8] sm:$0xff] %v427
      %v429 = vld [vmem:[%s239 + $0x2f0] sm:$0xff]
      %430 = vst [vmem:[%s240 + $0x2f0] sm:$0xff] %v429
      %v431 = vld [vmem:[%s239 + $0x2f8] sm:$0xff]
      %432 = vst [vmem:[%s240 + $0x2f8] sm:$0xff] %v431
      %v433 = vld [vmem:[%s239 + $0x300] sm:$0xff]
      %434 = vst [vmem:[%s240 + $0x300] sm:$0xff] %v433
      %v435 = vld [vmem:[%s239 + $0x308] sm:$0xff]
      %436 = vst [vmem:[%s240 + $0x308] sm:$0xff] %v435
      %v437 = vld [vmem:[%s239 + $0x310] sm:$0xff]
      %438 = vst [vmem:[%s240 + $0x310] sm:$0xff] %v437
      %v439 = vld [vmem:[%s239 + $0x318] sm:$0xff]
      %440 = vst [vmem:[%s240 + $0x318] sm:$0xff] %v439
      %v441 = vld [vmem:[%s239 + $0x320] sm:$0xff]
      %442 = vst [vmem:[%s240 + $0x320] sm:$0xff] %v441
      %v443 = vld [vmem:[%s239 + $0x328] sm:$0xff]
      %444 = vst [vmem:[%s240 + $0x328] sm:$0xff] %v443
      %v445 = vld [vmem:[%s239 + $0x330] sm:$0xff]
      %446 = vst [vmem:[%s240 + $0x330] sm:$0xff] %v445
      %v447 = vld [vmem:[%s239 + $0x338] sm:$0xff]
      %448 = vst [vmem:[%s240 + $0x338] sm:$0xff] %v447
      %v449 = vld [vmem:[%s239 + $0x340] sm:$0xff]
      %450 = vst [vmem:[%s240 + $0x340] sm:$0xff] %v449
      %v451 = vld [vmem:[%s239 + $0x348] sm:$0xff]
      %452 = vst [vmem:[%s240 + $0x348] sm:$0xff] %v451
      %v453 = vld [vmem:[%s239 + $0x350] sm:$0xff]
      %454 = vst [vmem:[%s240 + $0x350] sm:$0xff] %v453
      %v455 = vld [vmem:[%s239 + $0x358] sm:$0xff]
      %456 = vst [vmem:[%s240 + $0x358] sm:$0xff] %v455
      %v457 = vld [vmem:[%s239 + $0x360] sm:$0xff]
      %458 = vst [vmem:[%s240 + $0x360] sm:$0xff] %v457
      %v459 = vld [vmem:[%s239 + $0x368] sm:$0xff]
      %460 = vst [vmem:[%s240 + $0x368] sm:$0xff] %v459
      %v461 = vld [vmem:[%s239 + $0x370] sm:$0xff]
      %462 = vst [vmem:[%s240 + $0x370] sm:$0xff] %v461
      %v463 = vld [vmem:[%s239 + $0x378] sm:$0xff]
      %464 = vst [vmem:[%s240 + $0x378] sm:$0xff] %v463
      %v465 = vld [vmem:[%s239 + $0x380] sm:$0xff]
      %466 = vst [vmem:[%s240 + $0x380] sm:$0xff] %v465
      %v467 = vld [vmem:[%s239 + $0x388] sm:$0xff]
      %468 = vst [vmem:[%s240 + $0x388] sm:$0xff] %v467
      %v469 = vld [vmem:[%s239 + $0x390] sm:$0xff]
      %470 = vst [vmem:[%s240 + $0x390] sm:$0xff] %v469
      %v471 = vld [vmem:[%s239 + $0x398] sm:$0xff]
      %472 = vst [vmem:[%s240 + $0x398] sm:$0xff] %v471
      %v473 = vld [vmem:[%s239 + $0x3a0] sm:$0xff]
      %474 = vst [vmem:[%s240 + $0x3a0] sm:$0xff] %v473
      %v475 = vld [vmem:[%s239 + $0x3a8] sm:$0xff]
      %476 = vst [vmem:[%s240 + $0x3a8] sm:$0xff] %v475
      %v477 = vld [vmem:[%s239 + $0x3b0] sm:$0xff]
      %478 = vst [vmem:[%s240 + $0x3b0] sm:$0xff] %v477
      %v479 = vld [vmem:[%s239 + $0x3b8] sm:$0xff]
      %480 = vst [vmem:[%s240 + $0x3b8] sm:$0xff] %v479
      %v481 = vld [vmem:[%s239 + $0x3c0] sm:$0xff]
      %482 = vst [vmem:[%s240 + $0x3c0] sm:$0xff] %v481
      %v483 = vld [vmem:[%s239 + $0x3c8] sm:$0xff]
      %484 = vst [vmem:[%s240 + $0x3c8] sm:$0xff] %v483
      %v485 = vld [vmem:[%s239 + $0x3d0] sm:$0xff]
      %486 = vst [vmem:[%s240 + $0x3d0] sm:$0xff] %v485
      %v487 = vld [vmem:[%s239 + $0x3d8] sm:$0xff]
      %488 = vst [vmem:[%s240 + $0x3d8] sm:$0xff] %v487
      %v489 = vld [vmem:[%s239 + $0x3e0] sm:$0xff]
      %490 = vst [vmem:[%s240 + $0x3e0] sm:$0xff] %v489
      %v491 = vld [vmem:[%s239 + $0x3e8] sm:$0xff]
      %492 = vst [vmem:[%s240 + $0x3e8] sm:$0xff] %v491
      %v493 = vld [vmem:[%s239 + $0x3f0] sm:$0xff]
      %494 = vst [vmem:[%s240 + $0x3f0] sm:$0xff] %v493
      %v495 = vld [vmem:[%s239 + $0x3f8] sm:$0xff]
      %496 = vst [vmem:[%s240 + $0x3f8] sm:$0xff] %v495
      %v497 = vld [vmem:[%s239 + $0x400] sm:$0xff]
      %498 = vst [vmem:[%s240 + $0x400] sm:$0xff] %v497
      %v499 = vld [vmem:[%s239 + $0x408] sm:$0xff]
      %500 = vst [vmem:[%s240 + $0x408] sm:$0xff] %v499
      %v501 = vld [vmem:[%s239 + $0x410] sm:$0xff]
      %502 = vst [vmem:[%s240 + $0x410] sm:$0xff] %v501
      %v503 = vld [vmem:[%s239 + $0x418] sm:$0xff]
      %504 = vst [vmem:[%s240 + $0x418] sm:$0xff] %v503
      %v505 = vld [vmem:[%s239 + $0x420] sm:$0xff]
      %506 = vst [vmem:[%s240 + $0x420] sm:$0xff] %v505
      %v507 = vld [vmem:[%s239 + $0x428] sm:$0xff]
      %508 = vst [vmem:[%s240 + $0x428] sm:$0xff] %v507
      %v509 = vld [vmem:[%s239 + $0x430] sm:$0xff]
      %510 = vst [vmem:[%s240 + $0x430] sm:$0xff] %v509
      %v511 = vld [vmem:[%s239 + $0x438] sm:$0xff]
      %512 = vst [vmem:[%s240 + $0x438] sm:$0xff] %v511
      %v513 = vld [vmem:[%s239 + $0x440] sm:$0xff]
      %514 = vst [vmem:[%s240 + $0x440] sm:$0xff] %v513
      %v515 = vld [vmem:[%s239 + $0x448] sm:$0xff]
      %516 = vst [vmem:[%s240 + $0x448] sm:$0xff] %v515
      %v517 = vld [vmem:[%s239 + $0x450] sm:$0xff]
      %518 = vst [vmem:[%s240 + $0x450] sm:$0xff] %v517
      %v519 = vld [vmem:[%s239 + $0x458] sm:$0xff]
      %520 = vst [vmem:[%s240 + $0x458] sm:$0xff] %v519
      %v521 = vld [vmem:[%s239 + $0x460] sm:$0xff]
      %522 = vst [vmem:[%s240 + $0x460] sm:$0xff] %v521
      %v523 = vld [vmem:[%s239 + $0x468] sm:$0xff]
      %524 = vst [vmem:[%s240 + $0x468] sm:$0xff] %v523
      %v525 = vld [vmem:[%s239 + $0x470] sm:$0xff]
      %526 = vst [vmem:[%s240 + $0x470] sm:$0xff] %v525
      %v527 = vld [vmem:[%s239 + $0x478] sm:$0xff]
      %528 = vst [vmem:[%s240 + $0x478] sm:$0xff] %v527
      %v529 = vld [vmem:[%s239 + $0x480] sm:$0xff]
      %530 = vst [vmem:[%s240 + $0x480] sm:$0xff] %v529
      %v531 = vld [vmem:[%s239 + $0x488] sm:$0xff]
      %532 = vst [vmem:[%s240 + $0x488] sm:$0xff] %v531
      %v533 = vld [vmem:[%s239 + $0x490] sm:$0xff]
      %534 = vst [vmem:[%s240 + $0x490] sm:$0xff] %v533
      %v535 = vld [vmem:[%s239 + $0x498] sm:$0xff]
      %536 = vst [vmem:[%s240 + $0x498] sm:$0xff] %v535
      %v537 = vld [vmem:[%s239 + $0x4a0] sm:$0xff]
      %538 = vst [vmem:[%s240 + $0x4a0] sm:$0xff] %v537
      %v539 = vld [vmem:[%s239 + $0x4a8] sm:$0xff]
      %540 = vst [vmem:[%s240 + $0x4a8] sm:$0xff] %v539
      %v541 = vld [vmem:[%s239 + $0x4b0] sm:$0xff]
      %542 = vst [vmem:[%s240 + $0x4b0] sm:$0xff] %v541
      %v543 = vld [vmem:[%s239 + $0x4b8] sm:$0xff]
      %544 = vst [vmem:[%s240 + $0x4b8] sm:$0xff] %v543
      %v545 = vld [vmem:[%s239 + $0x4c0] sm:$0xff]
      %546 = vst [vmem:[%s240 + $0x4c0] sm:$0xff] %v545
      %v547 = vld [vmem:[%s239 + $0x4c8] sm:$0xff]
      %548 = vst [vmem:[%s240 + $0x4c8] sm:$0xff] %v547
      %v549 = vld [vmem:[%s239 + $0x4d0] sm:$0xff]
      %550 = vst [vmem:[%s240 + $0x4d0] sm:$0xff] %v549
      %v551 = vld [vmem:[%s239 + $0x4d8] sm:$0xff]
      %552 = vst [vmem:[%s240 + $0x4d8] sm:$0xff] %v551
      %v553 = vld [vmem:[%s239 + $0x4e0] sm:$0xff]
      %554 = vst [vmem:[%s240 + $0x4e0] sm:$0xff] %v553
      %v555 = vld [vmem:[%s239 + $0x4e8] sm:$0xff]
      %556 = vst [vmem:[%s240 + $0x4e8] sm:$0xff] %v555
      %v557 = vld [vmem:[%s239 + $0x4f0] sm:$0xff]
      %558 = vst [vmem:[%s240 + $0x4f0] sm:$0xff] %v557
      %v559 = vld [vmem:[%s239 + $0x4f8] sm:$0xff]
      %560 = vst [vmem:[%s240 + $0x4f8] sm:$0xff] %v559
      %v561 = vld [vmem:[%s239 + $0x500] sm:$0xff]
      %562 = vst [vmem:[%s240 + $0x500] sm:$0xff] %v561
      %v563 = vld [vmem:[%s239 + $0x508] sm:$0xff]
      %564 = vst [vmem:[%s240 + $0x508] sm:$0xff] %v563
      %v565 = vld [vmem:[%s239 + $0x510] sm:$0xff]
      %566 = vst [vmem:[%s240 + $0x510] sm:$0xff] %v565
      %v567 = vld [vmem:[%s239 + $0x518] sm:$0xff]
      %568 = vst [vmem:[%s240 + $0x518] sm:$0xff] %v567
      %v569 = vld [vmem:[%s239 + $0x520] sm:$0xff]
      %570 = vst [vmem:[%s240 + $0x520] sm:$0xff] %v569
      %v571 = vld [vmem:[%s239 + $0x528] sm:$0xff]
      %572 = vst [vmem:[%s240 + $0x528] sm:$0xff] %v571
      %v573 = vld [vmem:[%s239 + $0x530] sm:$0xff]
      %574 = vst [vmem:[%s240 + $0x530] sm:$0xff] %v573
      %v575 = vld [vmem:[%s239 + $0x538] sm:$0xff]
      %576 = vst [vmem:[%s240 + $0x538] sm:$0xff] %v575
      %v577 = vld [vmem:[%s239 + $0x540] sm:$0xff]
      %578 = vst [vmem:[%s240 + $0x540] sm:$0xff] %v577
      %v579 = vld [vmem:[%s239 + $0x548] sm:$0xff]
      %580 = vst [vmem:[%s240 + $0x548] sm:$0xff] %v579
      %v581 = vld [vmem:[%s239 + $0x550] sm:$0xff]
      %582 = vst [vmem:[%s240 + $0x550] sm:$0xff] %v581
      %v583 = vld [vmem:[%s239 + $0x558] sm:$0xff]
      %584 = vst [vmem:[%s240 + $0x558] sm:$0xff] %v583
      %v585 = vld [vmem:[%s239 + $0x560] sm:$0xff]
      %586 = vst [vmem:[%s240 + $0x560] sm:$0xff] %v585
      %v587 = vld [vmem:[%s239 + $0x568] sm:$0xff]
      %588 = vst [vmem:[%s240 + $0x568] sm:$0xff] %v587
      %v589 = vld [vmem:[%s239 + $0x570] sm:$0xff]
      %590 = vst [vmem:[%s240 + $0x570] sm:$0xff] %v589
      %v591 = vld [vmem:[%s239 + $0x578] sm:$0xff]
      %592 = vst [vmem:[%s240 + $0x578] sm:$0xff] %v591
      %v593 = vld [vmem:[%s239 + $0x580] sm:$0xff]
      %594 = vst [vmem:[%s240 + $0x580] sm:$0xff] %v593
      %v595 = vld [vmem:[%s239 + $0x588] sm:$0xff]
      %596 = vst [vmem:[%s240 + $0x588] sm:$0xff] %v595
      %v597 = vld [vmem:[%s239 + $0x590] sm:$0xff]
      %598 = vst [vmem:[%s240 + $0x590] sm:$0xff] %v597
      %v599 = vld [vmem:[%s239 + $0x598] sm:$0xff]
      %600 = vst [vmem:[%s240 + $0x598] sm:$0xff] %v599
      %v601 = vld [vmem:[%s239 + $0x5a0] sm:$0xff]
      %602 = vst [vmem:[%s240 + $0x5a0] sm:$0xff] %v601
      %v603 = vld [vmem:[%s239 + $0x5a8] sm:$0xff]
      %604 = vst [vmem:[%s240 + $0x5a8] sm:$0xff] %v603
      %v605 = vld [vmem:[%s239 + $0x5b0] sm:$0xff]
      %606 = vst [vmem:[%s240 + $0x5b0] sm:$0xff] %v605
      %v607 = vld [vmem:[%s239 + $0x5b8] sm:$0xff]
      %608 = vst [vmem:[%s240 + $0x5b8] sm:$0xff] %v607
      %v609 = vld [vmem:[%s239 + $0x5c0] sm:$0xff]
      %610 = vst [vmem:[%s240 + $0x5c0] sm:$0xff] %v609
      %v611 = vld [vmem:[%s239 + $0x5c8] sm:$0xff]
      %612 = vst [vmem:[%s240 + $0x5c8] sm:$0xff] %v611
      %v613 = vld [vmem:[%s239 + $0x5d0] sm:$0xff]
      %614 = vst [vmem:[%s240 + $0x5d0] sm:$0xff] %v613
      %v615 = vld [vmem:[%s239 + $0x5d8] sm:$0xff]
      %616 = vst [vmem:[%s240 + $0x5d8] sm:$0xff] %v615
      %v617 = vld [vmem:[%s239 + $0x5e0] sm:$0xff]
      %618 = vst [vmem:[%s240 + $0x5e0] sm:$0xff] %v617
      %v619 = vld [vmem:[%s239 + $0x5e8] sm:$0xff]
      %620 = vst [vmem:[%s240 + $0x5e8] sm:$0xff] %v619
      %v621 = vld [vmem:[%s239 + $0x5f0] sm:$0xff]
      %622 = vst [vmem:[%s240 + $0x5f0] sm:$0xff] %v621
      %v623 = vld [vmem:[%s239 + $0x5f8] sm:$0xff]
      %624 = vst [vmem:[%s240 + $0x5f8] sm:$0xff] %v623
      %v625 = vld [vmem:[%s239 + $0x600] sm:$0xff]
      %626 = vst [vmem:[%s240 + $0x600] sm:$0xff] %v625
      %v627 = vld [vmem:[%s239 + $0x608] sm:$0xff]
      %628 = vst [vmem:[%s240 + $0x608] sm:$0xff] %v627
      %v629 = vld [vmem:[%s239 + $0x610] sm:$0xff]
      %630 = vst [vmem:[%s240 + $0x610] sm:$0xff] %v629
      %v631 = vld [vmem:[%s239 + $0x618] sm:$0xff]
      %632 = vst [vmem:[%s240 + $0x618] sm:$0xff] %v631
      %v633 = vld [vmem:[%s239 + $0x620] sm:$0xff]
      %634 = vst [vmem:[%s240 + $0x620] sm:$0xff] %v633
      %v635 = vld [vmem:[%s239 + $0x628] sm:$0xff]
      %636 = vst [vmem:[%s240 + $0x628] sm:$0xff] %v635
      %v637 = vld [vmem:[%s239 + $0x630] sm:$0xff]
      %638 = vst [vmem:[%s240 + $0x630] sm:$0xff] %v637
      %v639 = vld [vmem:[%s239 + $0x638] sm:$0xff]
      %640 = vst [vmem:[%s240 + $0x638] sm:$0xff] %v639
      %v641 = vld [vmem:[%s239 + $0x640] sm:$0xff]
      %642 = vst [vmem:[%s240 + $0x640] sm:$0xff] %v641
      %v643 = vld [vmem:[%s239 + $0x648] sm:$0xff]
      %644 = vst [vmem:[%s240 + $0x648] sm:$0xff] %v643
      %v645 = vld [vmem:[%s239 + $0x650] sm:$0xff]
      %646 = vst [vmem:[%s240 + $0x650] sm:$0xff] %v645
      %v647 = vld [vmem:[%s239 + $0x658] sm:$0xff]
      %648 = vst [vmem:[%s240 + $0x658] sm:$0xff] %v647
      %v649 = vld [vmem:[%s239 + $0x660] sm:$0xff]
      %650 = vst [vmem:[%s240 + $0x660] sm:$0xff] %v649
      %v651 = vld [vmem:[%s239 + $0x668] sm:$0xff]
      %652 = vst [vmem:[%s240 + $0x668] sm:$0xff] %v651
      %v653 = vld [vmem:[%s239 + $0x670] sm:$0xff]
      %654 = vst [vmem:[%s240 + $0x670] sm:$0xff] %v653
      %v655 = vld [vmem:[%s239 + $0x678] sm:$0xff]
      %656 = vst [vmem:[%s240 + $0x678] sm:$0xff] %v655
      %v657 = vld [vmem:[%s239 + $0x680] sm:$0xff]
      %658 = vst [vmem:[%s240 + $0x680] sm:$0xff] %v657
      %v659 = vld [vmem:[%s239 + $0x688] sm:$0xff]
      %660 = vst [vmem:[%s240 + $0x688] sm:$0xff] %v659
      %v661 = vld [vmem:[%s239 + $0x690] sm:$0xff]
      %662 = vst [vmem:[%s240 + $0x690] sm:$0xff] %v661
      %v663 = vld [vmem:[%s239 + $0x698] sm:$0xff]
      %664 = vst [vmem:[%s240 + $0x698] sm:$0xff] %v663
      %v665 = vld [vmem:[%s239 + $0x6a0] sm:$0xff]
      %666 = vst [vmem:[%s240 + $0x6a0] sm:$0xff] %v665
      %v667 = vld [vmem:[%s239 + $0x6a8] sm:$0xff]
      %668 = vst [vmem:[%s240 + $0x6a8] sm:$0xff] %v667
      %v669 = vld [vmem:[%s239 + $0x6b0] sm:$0xff]
      %670 = vst [vmem:[%s240 + $0x6b0] sm:$0xff] %v669
      %v671 = vld [vmem:[%s239 + $0x6b8] sm:$0xff]
      %672 = vst [vmem:[%s240 + $0x6b8] sm:$0xff] %v671
      %v673 = vld [vmem:[%s239 + $0x6c0] sm:$0xff]
      %674 = vst [vmem:[%s240 + $0x6c0] sm:$0xff] %v673
      %v675 = vld [vmem:[%s239 + $0x6c8] sm:$0xff]
      %676 = vst [vmem:[%s240 + $0x6c8] sm:$0xff] %v675
      %v677 = vld [vmem:[%s239 + $0x6d0] sm:$0xff]
      %678 = vst [vmem:[%s240 + $0x6d0] sm:$0xff] %v677
      %v679 = vld [vmem:[%s239 + $0x6d8] sm:$0xff]
      %680 = vst [vmem:[%s240 + $0x6d8] sm:$0xff] %v679
      %v681 = vld [vmem:[%s239 + $0x6e0] sm:$0xff]
      %682 = vst [vmem:[%s240 + $0x6e0] sm:$0xff] %v681
      %v683 = vld [vmem:[%s239 + $0x6e8] sm:$0xff]
      %684 = vst [vmem:[%s240 + $0x6e8] sm:$0xff] %v683
      %v685 = vld [vmem:[%s239 + $0x6f0] sm:$0xff]
      %686 = vst [vmem:[%s240 + $0x6f0] sm:$0xff] %v685
      %v687 = vld [vmem:[%s239 + $0x6f8] sm:$0xff]
      %688 = vst [vmem:[%s240 + $0x6f8] sm:$0xff] %v687
      %v689 = vld [vmem:[%s239 + $0x700] sm:$0xff]
      %690 = vst [vmem:[%s240 + $0x700] sm:$0xff] %v689
      %v691 = vld [vmem:[%s239 + $0x708] sm:$0xff]
      %692 = vst [vmem:[%s240 + $0x708] sm:$0xff] %v691
      %v693 = vld [vmem:[%s239 + $0x710] sm:$0xff]
      %694 = vst [vmem:[%s240 + $0x710] sm:$0xff] %v693
      %v695 = vld [vmem:[%s239 + $0x718] sm:$0xff]
      %696 = vst [vmem:[%s240 + $0x718] sm:$0xff] %v695
      %v697 = vld [vmem:[%s239 + $0x720] sm:$0xff]
      %698 = vst [vmem:[%s240 + $0x720] sm:$0xff] %v697
      %v699 = vld [vmem:[%s239 + $0x728] sm:$0xff]
      %700 = vst [vmem:[%s240 + $0x728] sm:$0xff] %v699
      %v701 = vld [vmem:[%s239 + $0x730] sm:$0xff]
      %702 = vst [vmem:[%s240 + $0x730] sm:$0xff] %v701
      %v703 = vld [vmem:[%s239 + $0x738] sm:$0xff]
      %704 = vst [vmem:[%s240 + $0x738] sm:$0xff] %v703
      %v705 = vld [vmem:[%s239 + $0x740] sm:$0xff]
      %706 = vst [vmem:[%s240 + $0x740] sm:$0xff] %v705
      %v707 = vld [vmem:[%s239 + $0x748] sm:$0xff]
      %708 = vst [vmem:[%s240 + $0x748] sm:$0xff] %v707
      %v709 = vld [vmem:[%s239 + $0x750] sm:$0xff]
      %710 = vst [vmem:[%s240 + $0x750] sm:$0xff] %v709
      %v711 = vld [vmem:[%s239 + $0x758] sm:$0xff]
      %712 = vst [vmem:[%s240 + $0x758] sm:$0xff] %v711
      %v713 = vld [vmem:[%s239 + $0x760] sm:$0xff]
      %714 = vst [vmem:[%s240 + $0x760] sm:$0xff] %v713
      %v715 = vld [vmem:[%s239 + $0x768] sm:$0xff]
      %716 = vst [vmem:[%s240 + $0x768] sm:$0xff] %v715
      %v717 = vld [vmem:[%s239 + $0x770] sm:$0xff]
      %718 = vst [vmem:[%s240 + $0x770] sm:$0xff] %v717
      %v719 = vld [vmem:[%s239 + $0x778] sm:$0xff]
      %720 = vst [vmem:[%s240 + $0x778] sm:$0xff] %v719
      %v721 = vld [vmem:[%s239 + $0x780] sm:$0xff]
      %722 = vst [vmem:[%s240 + $0x780] sm:$0xff] %v721
      %v723 = vld [vmem:[%s239 + $0x788] sm:$0xff]
      %724 = vst [vmem:[%s240 + $0x788] sm:$0xff] %v723
      %v725 = vld [vmem:[%s239 + $0x790] sm:$0xff]
      %726 = vst [vmem:[%s240 + $0x790] sm:$0xff] %v725
      %v727 = vld [vmem:[%s239 + $0x798] sm:$0xff]
      %728 = vst [vmem:[%s240 + $0x798] sm:$0xff] %v727
      %v729 = vld [vmem:[%s239 + $0x7a0] sm:$0xff]
      %730 = vst [vmem:[%s240 + $0x7a0] sm:$0xff] %v729
      %v731 = vld [vmem:[%s239 + $0x7a8] sm:$0xff]
      %732 = vst [vmem:[%s240 + $0x7a8] sm:$0xff] %v731
      %v733 = vld [vmem:[%s239 + $0x7b0] sm:$0xff]
      %734 = vst [vmem:[%s240 + $0x7b0] sm:$0xff] %v733
      %v735 = vld [vmem:[%s239 + $0x7b8] sm:$0xff]
      %736 = vst [vmem:[%s240 + $0x7b8] sm:$0xff] %v735
      %v737 = vld [vmem:[%s239 + $0x7c0] sm:$0xff]
      %738 = vst [vmem:[%s240 + $0x7c0] sm:$0xff] %v737
      %v739 = vld [vmem:[%s239 + $0x7c8] sm:$0xff]
      %740 = vst [vmem:[%s240 + $0x7c8] sm:$0xff] %v739
      %v741 = vld [vmem:[%s239 + $0x7d0] sm:$0xff]
      %742 = vst [vmem:[%s240 + $0x7d0] sm:$0xff] %v741
      %v743 = vld [vmem:[%s239 + $0x7d8] sm:$0xff]
      %744 = vst [vmem:[%s240 + $0x7d8] sm:$0xff] %v743
      %v745 = vld [vmem:[%s239 + $0x7e0] sm:$0xff]
      %746 = vst [vmem:[%s240 + $0x7e0] sm:$0xff] %v745
      %v747 = vld [vmem:[%s239 + $0x7e8] sm:$0xff]
      %748 = vst [vmem:[%s240 + $0x7e8] sm:$0xff] %v747
      %v749 = vld [vmem:[%s239 + $0x7f0] sm:$0xff]
      %750 = vst [vmem:[%s240 + $0x7f0] sm:$0xff] %v749
      %v751 = vld [vmem:[%s239 + $0x7f8] sm:$0xff]
      %752 = vst [vmem:[%s240 + $0x7f8] sm:$0xff] %v751
    $region49: #{tpu_custom_call.1} parent=43 // loop_footer
      %s238 = sadd.s32 1, %s234
    $region50: #{tpu_custom_call.1} parent=43 // loop_footer_branch
      %233 = sbr.rel target = $region46
    $region51: #{tpu_custom_call.1} parent=43 // loop_exit
      _
  $region44: #{tpu_custom_call.1} parent=0 // pred_fallthru
    _
  // Predicated region
  $region52: #{tpu_custom_call.1} parent=0 // pred_check
    _
  $region53: #{tpu_custom_call.1} parent=0 // pred_check_branch
    %754 = sbr.rel target = $region55
  $region54: #{tpu_custom_call.1} parent=0 // pred_region
    _
  $region55: #{tpu_custom_call.1} parent=0 // pred_fallthru
    _
  // Predicated region
  $region56: #{tpu_custom_call.1} parent=0 // pred_check
    _
  $region57: #{tpu_custom_call.1} parent=0 // pred_check_branch
    %757 = sbr.rel (0) target = $region59
  $region58: #{tpu_custom_call.1} parent=0 // pred_region
    %758 = vsyncadd %s230, 32768
  $region59: #{tpu_custom_call.1} parent=0 // pred_fallthru
    _
  %v759 = vld [vmem:[%s0] sm:$0xff]
  %v760 = vld [vmem:[%s0 + $0x8] sm:$0xff]
  %v761 = vld [vmem:[%s1] sm:$0xff]
  %v762 = vld [vmem:[%s1 + $0x8] sm:$0xff]
  %v763 = vld [vmem:[%s1 + $0x10] sm:$0xff]
  %v764 = vld [vmem:[%s1 + $0x20] sm:$0xff]
  %v765 = vld [vmem:[%s1 + $0x30] sm:$0xff]
  %v766 = vld [vmem:[%s2] sm:$0xff]
  %v767 = vld [vmem:[%s2 + $0x8] sm:$0xff]
  %v768 = vld [vmem:[%s2 + $0x10] sm:$0xff]
  %v769 = vld [vmem:[%s2 + $0x18] sm:$0xff]
  %v770 = vld [vmem:[%s2 + $0x20] sm:$0xff]
  %v771 = vld [vmem:[%s2 + $0x28] sm:$0xff]
  %v772 = vld [vmem:[%s2 + $0x30] sm:$0xff]
  %v773 = vld [vmem:[%s2 + $0x38] sm:$0xff]
  %v774 = vld [vmem:[%s2 + $0x40] sm:$0xff]
  %v775 = vld [vmem:[%s2 + $0x48] sm:$0xff]
  %v776 = vld [vmem:[%s2 + $0x50] sm:$0xff]
  %v777 = vld [vmem:[%s2 + $0x58] sm:$0xff]
  %v778 = vperm.slane %v761, 0
  %v779 = vperm.slane %v762, 0
  %vm780 = vcmask 392192
  %v782 = vsel %vm780, %v759, 0
  %v785 = vsel %vm780, %v760, 0
  %787 = vmatpush.msra.mxu0 0.0
  %788 = vmatpush.msra.mxu0 0.0
  %789 = vmatpush.msra.mxu0 0.0
  %790 = vmatpush.msra.mxu0 0.0
  %791 = vmatpush.msra.mxu0 0.0
  %792 = vmatpush.msra.mxu0 0.0
  %793 = vmatpush.msra.mxu0 0.0
  %794 = vmatpush.msra.mxu0 0.0
  %795 = vmatpush.msra.mxu0 0.0
  %796 = vmatpush.msra.mxu0 0.0
  %797 = vmatpush.msra.mxu0 %v776
  %798 = vmatpush.msra.mxu0 %v774
  %799 = vmatpush.msra.mxu0 %v772
  %800 = vmatpush.msra.mxu0 %v770
  %801 = vmatpush.msra.mxu0 %v768
  %802 = vmatpush.msra.mxu0 %v766
  %803 = vmatmul.f32.gmra.mxu0 %v782
  %v804 = vpop.f32.mrf.mxu0
  %v805 = vadd.f32 %v778, %v804
  %806 = vmatmul.f32.gmra.mxu0 %v785
  %v807 = vpop.f32.mrf.mxu0
  %v808 = vadd.f32 %v778, %v807
  %809 = vdwg.mxu0
  %810 = vmatpush.msra.mxu0 0.0
  %811 = vmatpush.msra.mxu0 0.0
  %812 = vmatpush.msra.mxu0 0.0
  %813 = vmatpush.msra.mxu0 0.0
  %814 = vmatpush.msra.mxu0 0.0
  %815 = vmatpush.msra.mxu0 0.0
  %816 = vmatpush.msra.mxu0 0.0
  %817 = vmatpush.msra.mxu0 0.0
  %818 = vmatpush.msra.mxu0 0.0
  %819 = vmatpush.msra.mxu0 0.0
  %820 = vmatpush.msra.mxu0 %v777
  %821 = vmatpush.msra.mxu0 %v775
  %822 = vmatpush.msra.mxu0 %v773
  %823 = vmatpush.msra.mxu0 %v771
  %824 = vmatpush.msra.mxu0 %v769
  %825 = vmatpush.msra.mxu0 %v767
  %826 = vmatmul.f32.gmra.mxu0 %v782
  %v827 = vpop.f32.mrf.mxu0
  %v828 = vadd.f32 %v779, %v827
  %829 = vmatmul.f32.gmra.mxu0 %v785
  %v830 = vpop.f32.mrf.mxu0
  %v831 = vadd.f32 %v779, %v830
  %832 = vdwg.mxu0
  %835 = vrot.lane.b32.xlu0 %v805, 104
  %v836 = vpop.permute.xlu0 %835
  %837 = vrot.lane.b32.xlu0 %v808, 104
  %v838 = vpop.permute.xlu0 %837
  %839 = vrot.lane.b32.xlu0 %v805, 80
  %v840 = vpop.permute.xlu0 %839
  %841 = vrot.lane.b32.xlu0 %v808, 80
  %v842 = vpop.permute.xlu0 %841
  %843 = vrot.lane.b32.xlu0 %v805, 56
  %v844 = vpop.permute.xlu0 %843
  %845 = vrot.lane.b32.xlu0 %v808, 56
  %v846 = vpop.permute.xlu0 %845
  %847 = vrot.lane.b32.xlu0 %v805, 32
  %v848 = vpop.permute.xlu0 %847
  %849 = vrot.lane.b32.xlu0 %v808, 32
  %v850 = vpop.permute.xlu0 %849
  %853 = vrot.lane.b32.xlu0 %v805, 8
  %v854 = vpop.permute.xlu0 %853
  %855 = vrot.lane.b32.xlu0 %v828, 8
  %v856 = vpop.permute.xlu0 %855
  %857 = vrot.lane.b32.xlu0 %v808, 8
  %v858 = vpop.permute.xlu0 %857
  %859 = vrot.lane.b32.xlu0 %v831, 8
  %v860 = vpop.permute.xlu0 %859
  %vm861 = vcmask 64512
  %v862 = vsel %vm861, %v854, %v856
  %v863 = vsel %vm861, %v858, %v860
  %v864 = vlaneseq
  %v865 = vshrl.u32 %v864, 7
  %v866 = vadd.s32 %v865, 8
  %v867 = vlaneseq
  %v868 = vand.u32 %v867, 127
  %v869 = vsub.s32 %v865, %v868
  %v870 = vsub.s32 %v866, %v868
  %v871 = vcvt.s32.f32 %v869
  %v872 = vcvt.s32.f32 %v870
  %v873 = vmul.f32 %v871, 0.5
  %v874 = vmul.f32 %v872, 0.5
  %v875 = vfloor.f32 %v873
  %v876 = vfloor.f32 %v874
  %vm877 = vcmp.eq.f32.partialorder %v873, %v875
  %vm878 = vcmp.eq.f32.partialorder %v874, %v876
  %v879 = vsel %vm877, 0.0, -1e+09
  %v880 = vsel %vm878, 0.0, -1e+09
  %881 = vrot.lane.b32.xlu0 %v805, 120
  %v882 = vpop.permute.xlu0 %881
  %883 = vrot.lane.b32.xlu0 %v808, 120
  %v884 = vpop.permute.xlu0 %883
  %v885 = vsel %vm861, %v805, 0
  %v887 = vsel %vm861, %v808, 0
  %v889 = vsel %vm861, %v882, 0
  %v891 = vsel %vm861, %v884, 0
  %893 = vmatpush.xpose.msra.mxu0 0.0
  %894 = vmatpush.xpose.msra.mxu0 0.0
  %895 = vmatpush.xpose.msra.mxu0 0.0
  %896 = vmatpush.xpose.msra.mxu0 0.0
  %897 = vmatpush.xpose.msra.mxu0 0.0
  %898 = vmatpush.xpose.msra.mxu0 0.0
  %899 = vmatpush.xpose.msra.mxu0 0.0
  %900 = vmatpush.xpose.msra.mxu0 0.0
  %901 = vmatpush.xpose.msra.mxu0 0.0
  %902 = vmatpush.xpose.msra.mxu0 0.0
  %903 = vmatpush.xpose.msra.mxu0 0.0
  %904 = vmatpush.xpose.msra.mxu0 0.0
  %905 = vmatpush.xpose.msra.mxu0 0.0
  %906 = vmatpush.xpose.msra.mxu0 0.0
  %907 = vmatpush.xpose.msra.mxu0 %v891
  %908 = vmatpush.xpose.msra.mxu0 %v889
  %909 = vmatmul.f32.gmra.mxu0 %v885
  %v910 = vpop.f32.mrf.mxu0
  %v911 = vadd.f32 %v879, %v910
  %912 = vmatmul.f32.gmra.mxu0 %v887
  %v913 = vpop.f32.mrf.mxu0
  %v914 = vadd.f32 %v880, %v913
  %915 = vdwg.mxu0
  %916 = vrot.lane.b32.xlu0 %v836, 120
  %v917 = vpop.permute.xlu0 %916
  %918 = vrot.lane.b32.xlu0 %v838, 120
  %v919 = vpop.permute.xlu0 %918
  %v920 = vsel %vm861, %v836, 0
  %v922 = vsel %vm861, %v838, 0
  %v924 = vsel %vm861, %v917, 0
  %v926 = vsel %vm861, %v919, 0
  %928 = vmatpush.xpose.msra.mxu0 0.0
  %929 = vmatpush.xpose.msra.mxu0 0.0
  %930 = vmatpush.xpose.msra.mxu0 0.0
  %931 = vmatpush.xpose.msra.mxu0 0.0
  %932 = vmatpush.xpose.msra.mxu0 0.0
  %933 = vmatpush.xpose.msra.mxu0 0.0
  %934 = vmatpush.xpose.msra.mxu0 0.0
  %935 = vmatpush.xpose.msra.mxu0 0.0
  %936 = vmatpush.xpose.msra.mxu0 0.0
  %937 = vmatpush.xpose.msra.mxu0 0.0
  %938 = vmatpush.xpose.msra.mxu0 0.0
  %939 = vmatpush.xpose.msra.mxu0 0.0
  %940 = vmatpush.xpose.msra.mxu0 0.0
  %941 = vmatpush.xpose.msra.mxu0 0.0
  %942 = vmatpush.xpose.msra.mxu0 %v926
  %943 = vmatpush.xpose.msra.mxu0 %v924
  %944 = vmatmul.f32.gmra.mxu0 %v920
  %v945 = vpop.f32.mrf.mxu0
  %v946 = vadd.f32 %v879, %v945
  %947 = vmatmul.f32.gmra.mxu0 %v922
  %v948 = vpop.f32.mrf.mxu0
  %v949 = vadd.f32 %v880, %v948
  %950 = vdwg.mxu0
  %951 = vrot.lane.b32.xlu0 %v840, 120
  %v952 = vpop.permute.xlu0 %951
  %953 = vrot.lane.b32.xlu0 %v842, 120
  %v954 = vpop.permute.xlu0 %953
  %v955 = vsel %vm861, %v840, 0
  %v957 = vsel %vm861, %v842, 0
  %v959 = vsel %vm861, %v952, 0
  %v961 = vsel %vm861, %v954, 0
  %963 = vmatpush.xpose.msra.mxu0 0.0
  %964 = vmatpush.xpose.msra.mxu0 0.0
  %965 = vmatpush.xpose.msra.mxu0 0.0
  %966 = vmatpush.xpose.msra.mxu0 0.0
  %967 = vmatpush.xpose.msra.mxu0 0.0
  %968 = vmatpush.xpose.msra.mxu0 0.0
  %969 = vmatpush.xpose.msra.mxu0 0.0
  %970 = vmatpush.xpose.msra.mxu0 0.0
  %971 = vmatpush.xpose.msra.mxu0 0.0
  %972 = vmatpush.xpose.msra.mxu0 0.0
  %973 = vmatpush.xpose.msra.mxu0 0.0
  %974 = vmatpush.xpose.msra.mxu0 0.0
  %975 = vmatpush.xpose.msra.mxu0 0.0
  %976 = vmatpush.xpose.msra.mxu0 0.0
  %977 = vmatpush.xpose.msra.mxu0 %v961
  %978 = vmatpush.xpose.msra.mxu0 %v959
  %979 = vmatmul.f32.gmra.mxu0 %v955
  %v980 = vpop.f32.mrf.mxu0
  %v981 = vadd.f32 %v879, %v980
  %982 = vmatmul.f32.gmra.mxu0 %v957
  %v983 = vpop.f32.mrf.mxu0
  %v984 = vadd.f32 %v880, %v983
  %985 = vdwg.mxu0
  %986 = vrot.lane.b32.xlu0 %v844, 120
  %v987 = vpop.permute.xlu0 %986
  %988 = vrot.lane.b32.xlu0 %v846, 120
  %v989 = vpop.permute.xlu0 %988
  %v990 = vsel %vm861, %v844, 0
  %v992 = vsel %vm861, %v846, 0
  %v994 = vsel %vm861, %v987, 0
  %v996 = vsel %vm861, %v989, 0
  %998 = vmatpush.xpose.msra.mxu0 0.0
  %999 = vmatpush.xpose.msra.mxu0 0.0
  %1000 = vmatpush.xpose.msra.mxu0 0.0
  %1001 = vmatpush.xpose.msra.mxu0 0.0
  %1002 = vmatpush.xpose.msra.mxu0 0.0
  %1003 = vmatpush.xpose.msra.mxu0 0.0
  %1004 = vmatpush.xpose.msra.mxu0 0.0
  %1005 = vmatpush.xpose.msra.mxu0 0.0
  %1006 = vmatpush.xpose.msra.mxu0 0.0
  %1007 = vmatpush.xpose.msra.mxu0 0.0
  %1008 = vmatpush.xpose.msra.mxu0 0.0
  %1009 = vmatpush.xpose.msra.mxu0 0.0
  %1010 = vmatpush.xpose.msra.mxu0 0.0
  %1011 = vmatpush.xpose.msra.mxu0 0.0
  %1012 = vmatpush.xpose.msra.mxu0 %v996
  %1013 = vmatpush.xpose.msra.mxu0 %v994
  %1014 = vmatmul.f32.gmra.mxu0 %v990
  %v1015 = vpop.f32.mrf.mxu0
  %v1016 = vadd.f32 %v879, %v1015
  %1017 = vmatmul.f32.gmra.mxu0 %v992
  %v1018 = vpop.f32.mrf.mxu0
  %v1019 = vadd.f32 %v880, %v1018
  %1020 = vdwg.mxu0
  %1021 = vrot.lane.b32.xlu0 %v848, 120
  %v1022 = vpop.permute.xlu0 %1021
  %1023 = vrot.lane.b32.xlu0 %v850, 120
  %v1024 = vpop.permute.xlu0 %1023
  %v1025 = vsel %vm861, %v848, 0
  %v1027 = vsel %vm861, %v850, 0
  %v1029 = vsel %vm861, %v1022, 0
  %v1031 = vsel %vm861, %v1024, 0
  %1033 = vmatpush.xpose.msra.mxu0 0.0
  %1034 = vmatpush.xpose.msra.mxu0 0.0
  %1035 = vmatpush.xpose.msra.mxu0 0.0
  %1036 = vmatpush.xpose.msra.mxu0 0.0
  %1037 = vmatpush.xpose.msra.mxu0 0.0
  %1038 = vmatpush.xpose.msra.mxu0 0.0
  %1039 = vmatpush.xpose.msra.mxu0 0.0
  %1040 = vmatpush.xpose.msra.mxu0 0.0
  %1041 = vmatpush.xpose.msra.mxu0 0.0
  %1042 = vmatpush.xpose.msra.mxu0 0.0
  %1043 = vmatpush.xpose.msra.mxu0 0.0
  %1044 = vmatpush.xpose.msra.mxu0 0.0
  %1045 = vmatpush.xpose.msra.mxu0 0.0
  %1046 = vmatpush.xpose.msra.mxu0 0.0
  %1047 = vmatpush.xpose.msra.mxu0 %v1031
  %1048 = vmatpush.xpose.msra.mxu0 %v1029
  %1049 = vmatmul.f32.gmra.mxu0 %v1025
  %v1050 = vpop.f32.mrf.mxu0
  %v1051 = vadd.f32 %v879, %v1050
  %1052 = vmatmul.f32.gmra.mxu0 %v1027
  %v1053 = vpop.f32.mrf.mxu0
  %v1054 = vadd.f32 %v880, %v1053
  %1055 = vdwg.mxu0
  %1056 = vrot.lane.b32.xlu0 %v862, 120
  %v1057 = vpop.permute.xlu0 %1056
  %1058 = vrot.lane.b32.xlu0 %v863, 120
  %v1059 = vpop.permute.xlu0 %1058
  %v1060 = vsel %vm861, %v862, 0
  %v1062 = vsel %vm861, %v863, 0
  %v1064 = vsel %vm861, %v1057, 0
  %v1066 = vsel %vm861, %v1059, 0
  %1068 = vmatpush.xpose.msra.mxu0 0.0
  %1069 = vmatpush.xpose.msra.mxu0 0.0
  %1070 = vmatpush.xpose.msra.mxu0 0.0
  %1071 = vmatpush.xpose.msra.mxu0 0.0
  %1072 = vmatpush.xpose.msra.mxu0 0.0
  %1073 = vmatpush.xpose.msra.mxu0 0.0
  %1074 = vmatpush.xpose.msra.mxu0 0.0
  %1075 = vmatpush.xpose.msra.mxu0 0.0
  %1076 = vmatpush.xpose.msra.mxu0 0.0
  %1077 = vmatpush.xpose.msra.mxu0 0.0
  %1078 = vmatpush.xpose.msra.mxu0 0.0
  %1079 = vmatpush.xpose.msra.mxu0 0.0
  %1080 = vmatpush.xpose.msra.mxu0 0.0
  %1081 = vmatpush.xpose.msra.mxu0 0.0
  %1082 = vmatpush.xpose.msra.mxu0 %v1066
  %1083 = vmatpush.xpose.msra.mxu0 %v1064
  %1084 = vmatmul.f32.gmra.mxu0 %v1060
  %v1085 = vpop.f32.mrf.mxu0
  %v1086 = vadd.f32 %v879, %v1085
  %1087 = vmatmul.f32.gmra.mxu0 %v1062
  %v1088 = vpop.f32.mrf.mxu0
  %v1089 = vadd.f32 %v880, %v1088
  %1090 = vdwg.mxu0
  %vm1091 = vcmask 130048
  %v1092 = vsel %vm1091, %v911, -inf
  %1093 = vmax.xlane.f32.xlu0 %v1092
  %v1094 = vpop.xlane.xlu0 %1093
  %v1095 = vsel %vm1091, %v914, -inf
  %1096 = vmax.xlane.f32.xlu0 %v1095
  %v1097 = vpop.xlane.xlu0 %1096
  %v1098 = vsel %vm1091, %v946, -inf
  %1099 = vmax.xlane.f32.xlu0 %v1098
  %v1100 = vpop.xlane.xlu0 %1099
  %v1101 = vsel %vm1091, %v949, -inf
  %1102 = vmax.xlane.f32.xlu0 %v1101
  %v1103 = vpop.xlane.xlu0 %1102
  %v1104 = vsel %vm1091, %v981, -inf
  %1105 = vmax.xlane.f32.xlu0 %v1104
  %v1106 = vpop.xlane.xlu0 %1105
  %v1107 = vsel %vm1091, %v984, -inf
  %1108 = vmax.xlane.f32.xlu0 %v1107
  %v1109 = vpop.xlane.xlu0 %1108
  %v1110 = vsel %vm1091, %v1016, -inf
  %1111 = vmax.xlane.f32.xlu0 %v1110
  %v1112 = vpop.xlane.xlu0 %1111
  %v1113 = vsel %vm1091, %v1019, -inf
  %1114 = vmax.xlane.f32.xlu0 %v1113
  %v1115 = vpop.xlane.xlu0 %1114
  %v1116 = vsel %vm1091, %v1051, -inf
  %1117 = vmax.xlane.f32.xlu0 %v1116
  %v1118 = vpop.xlane.xlu0 %1117
  %v1119 = vsel %vm1091, %v1054, -inf
  %1120 = vmax.xlane.f32.xlu0 %v1119
  %v1121 = vpop.xlane.xlu0 %1120
  %v1122 = vsel %vm1091, %v1086, -inf
  %1123 = vmax.xlane.f32.xlu0 %v1122
  %v1124 = vpop.xlane.xlu0 %1123
  %v1125 = vsel %vm1091, %v1089, -inf
  %1126 = vmax.xlane.f32.xlu0 %v1125
  %v1127 = vpop.xlane.xlu0 %1126
  %v1128 = vsub.f32 %v911, %v1094
  %v1129 = vsub.f32 %v914, %v1097
  %v1130 = vsub.f32 %v946, %v1100
  %v1131 = vsub.f32 %v949, %v1103
  %v1132 = vsub.f32 %v981, %v1106
  %v1133 = vsub.f32 %v984, %v1109
  %v1134 = vsub.f32 %v1016, %v1112
  %v1135 = vsub.f32 %v1019, %v1115
  %v1136 = vsub.f32 %v1051, %v1118
  %v1137 = vsub.f32 %v1054, %v1121
  %v1138 = vsub.f32 %v1086, %v1124
  %v1139 = vsub.f32 %v1089, %v1127
  %v1140 = vmul.f32 %v1128, 1.442695
  %v1141 = vpow.pop %v1140
  %v1142 = vmul.f32 %v1129, 1.442695
  %v1143 = vpow.pop %v1142
  %v1144 = vmul.f32 %v1130, 1.442695
  %v1145 = vpow.pop %v1144
  %v1146 = vmul.f32 %v1131, 1.442695
  %v1147 = vpow.pop %v1146
  %v1148 = vmul.f32 %v1132, 1.442695
  %v1149 = vpow.pop %v1148
  %v1150 = vmul.f32 %v1133, 1.442695
  %v1151 = vpow.pop %v1150
  %v1152 = vmul.f32 %v1134, 1.442695
  %v1153 = vpow.pop %v1152
  %v1154 = vmul.f32 %v1135, 1.442695
  %v1155 = vpow.pop %v1154
  %v1156 = vmul.f32 %v1136, 1.442695
  %v1157 = vpow.pop %v1156
  %v1158 = vmul.f32 %v1137, 1.442695
  %v1159 = vpow.pop %v1158
  %v1160 = vmul.f32 %v1138, 1.442695
  %v1161 = vpow.pop %v1160
  %v1162 = vmul.f32 %v1139, 1.442695
  %v1163 = vpow.pop %v1162
  %v1164 = vsel %vm1091, %v1141, 0.0
  %1165 = vadd.xlane.f32.xlu0 %v1164
  %v1166 = vpop.xlane.xlu0 %1165
  %v1167 = vsel %vm1091, %v1143, 0.0
  %1168 = vadd.xlane.f32.xlu0 %v1167
  %v1169 = vpop.xlane.xlu0 %1168
  %v1170 = vsel %vm1091, %v1145, 0.0
  %1171 = vadd.xlane.f32.xlu0 %v1170
  %v1172 = vpop.xlane.xlu0 %1171
  %v1173 = vsel %vm1091, %v1147, 0.0
  %1174 = vadd.xlane.f32.xlu0 %v1173
  %v1175 = vpop.xlane.xlu0 %1174
  %v1176 = vsel %vm1091, %v1149, 0.0
  %1177 = vadd.xlane.f32.xlu0 %v1176
  %v1178 = vpop.xlane.xlu0 %1177
  %v1179 = vsel %vm1091, %v1151, 0.0
  %1180 = vadd.xlane.f32.xlu0 %v1179
  %v1181 = vpop.xlane.xlu0 %1180
  %v1182 = vsel %vm1091, %v1153, 0.0
  %1183 = vadd.xlane.f32.xlu0 %v1182
  %v1184 = vpop.xlane.xlu0 %1183
  %v1185 = vsel %vm1091, %v1155, 0.0
  %1186 = vadd.xlane.f32.xlu0 %v1185
  %v1187 = vpop.xlane.xlu0 %1186
  %v1188 = vsel %vm1091, %v1157, 0.0
  %1189 = vadd.xlane.f32.xlu0 %v1188
  %v1190 = vpop.xlane.xlu0 %1189
  %v1191 = vsel %vm1091, %v1159, 0.0
  %1192 = vadd.xlane.f32.xlu0 %v1191
  %v1193 = vpop.xlane.xlu0 %1192
  %v1194 = vsel %vm1091, %v1161, 0.0
  %1195 = vadd.xlane.f32.xlu0 %v1194
  %v1196 = vpop.xlane.xlu0 %1195
  %v1197 = vsel %vm1091, %v1163, 0.0
  %1198 = vadd.xlane.f32.xlu0 %v1197
  %v1199 = vpop.xlane.xlu0 %1198
  %v1200 = vrcp.pop %v1166
  %v1201 = vmul.f32 %v1166, %v1200
  %v1202 = vsub.f32 1.0, %v1201
  %v1203 = vmul.f32 %v1200, %v1202
  %v1204 = vadd.f32 %v1200, %v1203
  %vm1205 = vweird.f32 %v1166
  %vm1206 = vweird.f32 %v1200
  %vm1207 = vmor %vm1205, %vm1206
  %v1208 = vsel %vm1207, %v1200, %v1204
  %v1209 = vand.u32 2147483647, %v1166
  %vm1210 = vcmp.eq.f32.partialorder %v1209, 8.507059e+37
  %v1211 = vand.u32 %v1166, 2147483648
  %v1212 = vor.u32 1.1754944e-38, %v1211
  %v1213 = vsel %vm1210, %v1212, %v1208
  %v1214 = vmul.f32 %v1141, %v1213
  %v1215 = vrcp.pop %v1169
  %v1216 = vmul.f32 %v1169, %v1215
  %v1217 = vsub.f32 1.0, %v1216
  %v1218 = vmul.f32 %v1215, %v1217
  %v1219 = vadd.f32 %v1215, %v1218
  %vm1220 = vweird.f32 %v1169
  %vm1221 = vweird.f32 %v1215
  %vm1222 = vmor %vm1220, %vm1221
  %v1223 = vsel %vm1222, %v1215, %v1219
  %v1224 = vand.u32 2147483647, %v1169
  %vm1225 = vcmp.eq.f32.partialorder %v1224, 8.507059e+37
  %v1226 = vand.u32 %v1169, 2147483648
  %v1227 = vor.u32 1.1754944e-38, %v1226
  %v1228 = vsel %vm1225, %v1227, %v1223
  %v1229 = vmul.f32 %v1143, %v1228
  %v1230 = vrcp.pop %v1172
  %v1231 = vmul.f32 %v1172, %v1230
  %v1232 = vsub.f32 1.0, %v1231
  %v1233 = vmul.f32 %v1230, %v1232
  %v1234 = vadd.f32 %v1230, %v1233
  %vm1235 = vweird.f32 %v1172
  %vm1236 = vweird.f32 %v1230
  %vm1237 = vmor %vm1235, %vm1236
  %v1238 = vsel %vm1237, %v1230, %v1234
  %v1239 = vand.u32 2147483647, %v1172
  %vm1240 = vcmp.eq.f32.partialorder %v1239, 8.507059e+37
  %v1241 = vand.u32 %v1172, 2147483648
  %v1242 = vor.u32 1.1754944e-38, %v1241
  %v1243 = vsel %vm1240, %v1242, %v1238
  %v1244 = vmul.f32 %v1145, %v1243
  %v1245 = vrcp.pop %v1175
  %v1246 = vmul.f32 %v1175, %v1245
  %v1247 = vsub.f32 1.0, %v1246
  %v1248 = vmul.f32 %v1245, %v1247
  %v1249 = vadd.f32 %v1245, %v1248
  %vm1250 = vweird.f32 %v1175
  %vm1251 = vweird.f32 %v1245
  %vm1252 = vmor %vm1250, %vm1251
  %v1253 = vsel %vm1252, %v1245, %v1249
  %v1254 = vand.u32 2147483647, %v1175
  %vm1255 = vcmp.eq.f32.partialorder %v1254, 8.507059e+37
  %v1256 = vand.u32 %v1175, 2147483648
  %v1257 = vor.u32 1.1754944e-38, %v1256
  %v1258 = vsel %vm1255, %v1257, %v1253
  %v1259 = vmul.f32 %v1147, %v1258
  %v1260 = vrcp.pop %v1178
  %v1261 = vmul.f32 %v1178, %v1260
  %v1262 = vsub.f32 1.0, %v1261
  %v1263 = vmul.f32 %v1260, %v1262
  %v1264 = vadd.f32 %v1260, %v1263
  %vm1265 = vweird.f32 %v1178
  %vm1266 = vweird.f32 %v1260
  %vm1267 = vmor %vm1265, %vm1266
  %v1268 = vsel %vm1267, %v1260, %v1264
  %v1269 = vand.u32 2147483647, %v1178
  %vm1270 = vcmp.eq.f32.partialorder %v1269, 8.507059e+37
  %v1271 = vand.u32 %v1178, 2147483648
  %v1272 = vor.u32 1.1754944e-38, %v1271
  %v1273 = vsel %vm1270, %v1272, %v1268
  %v1274 = vmul.f32 %v1149, %v1273
  %v1275 = vrcp.pop %v1181
  %v1276 = vmul.f32 %v1181, %v1275
  %v1277 = vsub.f32 1.0, %v1276
  %v1278 = vmul.f32 %v1275, %v1277
  %v1279 = vadd.f32 %v1275, %v1278
  %vm1280 = vweird.f32 %v1181
  %vm1281 = vweird.f32 %v1275
  %vm1282 = vmor %vm1280, %vm1281
  %v1283 = vsel %vm1282, %v1275, %v1279
  %v1284 = vand.u32 2147483647, %v1181
  %vm1285 = vcmp.eq.f32.partialorder %v1284, 8.507059e+37
  %v1286 = vand.u32 %v1181, 2147483648
  %v1287 = vor.u32 1.1754944e-38, %v1286
  %v1288 = vsel %vm1285, %v1287, %v1283
  %v1289 = vmul.f32 %v1151, %v1288
  %v1290 = vrcp.pop %v1184
  %v1291 = vmul.f32 %v1184, %v1290
  %v1292 = vsub.f32 1.0, %v1291
  %v1293 = vmul.f32 %v1290, %v1292
  %v1294 = vadd.f32 %v1290, %v1293
  %vm1295 = vweird.f32 %v1184
  %vm1296 = vweird.f32 %v1290
  %vm1297 = vmor %vm1295, %vm1296
  %v1298 = vsel %vm1297, %v1290, %v1294
  %v1299 = vand.u32 2147483647, %v1184
  %vm1300 = vcmp.eq.f32.partialorder %v1299, 8.507059e+37
  %v1301 = vand.u32 %v1184, 2147483648
  %v1302 = vor.u32 1.1754944e-38, %v1301
  %v1303 = vsel %vm1300, %v1302, %v1298
  %v1304 = vmul.f32 %v1153, %v1303
  %v1305 = vrcp.pop %v1187
  %v1306 = vmul.f32 %v1187, %v1305
  %v1307 = vsub.f32 1.0, %v1306
  %v1308 = vmul.f32 %v1305, %v1307
  %v1309 = vadd.f32 %v1305, %v1308
  %vm1310 = vweird.f32 %v1187
  %vm1311 = vweird.f32 %v1305
  %vm1312 = vmor %vm1310, %vm1311
  %v1313 = vsel %vm1312, %v1305, %v1309
  %v1314 = vand.u32 2147483647, %v1187
  %vm1315 = vcmp.eq.f32.partialorder %v1314, 8.507059e+37
  %v1316 = vand.u32 %v1187, 2147483648
  %v1317 = vor.u32 1.1754944e-38, %v1316
  %v1318 = vsel %vm1315, %v1317, %v1313
  %v1319 = vmul.f32 %v1155, %v1318
  %v1320 = vrcp.pop %v1190
  %v1321 = vmul.f32 %v1190, %v1320
  %v1322 = vsub.f32 1.0, %v1321
  %v1323 = vmul.f32 %v1320, %v1322
  %v1324 = vadd.f32 %v1320, %v1323
  %vm1325 = vweird.f32 %v1190
  %vm1326 = vweird.f32 %v1320
  %vm1327 = vmor %vm1325, %vm1326
  %v1328 = vsel %vm1327, %v1320, %v1324
  %v1329 = vand.u32 2147483647, %v1190
  %vm1330 = vcmp.eq.f32.partialorder %v1329, 8.507059e+37
  %v1331 = vand.u32 %v1190, 2147483648
  %v1332 = vor.u32 1.1754944e-38, %v1331
  %v1333 = vsel %vm1330, %v1332, %v1328
  %v1334 = vmul.f32 %v1157, %v1333
  %v1335 = vrcp.pop %v1193
  %v1336 = vmul.f32 %v1193, %v1335
  %v1337 = vsub.f32 1.0, %v1336
  %v1338 = vmul.f32 %v1335, %v1337
  %v1339 = vadd.f32 %v1335, %v1338
  %vm1340 = vweird.f32 %v1193
  %vm1341 = vweird.f32 %v1335
  %vm1342 = vmor %vm1340, %vm1341
  %v1343 = vsel %vm1342, %v1335, %v1339
  %v1344 = vand.u32 2147483647, %v1193
  %vm1345 = vcmp.eq.f32.partialorder %v1344, 8.507059e+37
  %v1346 = vand.u32 %v1193, 2147483648
  %v1347 = vor.u32 1.1754944e-38, %v1346
  %v1348 = vsel %vm1345, %v1347, %v1343
  %v1349 = vmul.f32 %v1159, %v1348
  %v1350 = vrcp.pop %v1196
  %v1351 = vmul.f32 %v1196, %v1350
  %v1352 = vsub.f32 1.0, %v1351
  %v1353 = vmul.f32 %v1350, %v1352
  %v1354 = vadd.f32 %v1350, %v1353
  %vm1355 = vweird.f32 %v1196
  %vm1356 = vweird.f32 %v1350
  %vm1357 = vmor %vm1355, %vm1356
  %v1358 = vsel %vm1357, %v1350, %v1354
  %v1359 = vand.u32 2147483647, %v1196
  %vm1360 = vcmp.eq.f32.partialorder %v1359, 8.507059e+37
  %v1361 = vand.u32 %v1196, 2147483648
  %v1362 = vor.u32 1.1754944e-38, %v1361
  %v1363 = vsel %vm1360, %v1362, %v1358
  %v1364 = vmul.f32 %v1161, %v1363
  %v1365 = vrcp.pop %v1199
  %v1366 = vmul.f32 %v1199, %v1365
  %v1367 = vsub.f32 1.0, %v1366
  %v1368 = vmul.f32 %v1365, %v1367
  %v1369 = vadd.f32 %v1365, %v1368
  %vm1370 = vweird.f32 %v1199
  %vm1371 = vweird.f32 %v1365
  %vm1372 = vmor %vm1370, %vm1371
  %v1373 = vsel %vm1372, %v1365, %v1369
  %v1374 = vand.u32 2147483647, %v1199
  %vm1375 = vcmp.eq.f32.partialorder %v1374, 8.507059e+37
  %v1376 = vand.u32 %v1199, 2147483648
  %v1377 = vor.u32 1.1754944e-38, %v1376
  %v1378 = vsel %vm1375, %v1377, %v1373
  %v1379 = vmul.f32 %v1163, %v1378
  %1380 = vrot.lane.b32.xlu0 %v805, 112
  %v1381 = vpop.permute.xlu0 %1380
  %1382 = vrot.lane.b32.xlu0 %v808, 112
  %v1383 = vpop.permute.xlu0 %1382
  %v1387 = vsel %vm1091, %v1214, 0
  %v1390 = vsel %vm1091, %v1229, 0
  %1392 = vmatpush.msra.mxu0 0.0
  %1393 = vmatpush.msra.mxu0 0.0
  %1394 = vmatpush.msra.mxu0 0.0
  %1395 = vmatpush.msra.mxu0 0.0
  %1396 = vmatpush.msra.mxu0 0.0
  %1397 = vmatpush.msra.mxu0 0.0
  %1398 = vmatpush.msra.mxu0 0.0
  %1399 = vmatpush.msra.mxu0 0.0
  %1400 = vmatpush.msra.mxu0 0.0
  %1401 = vmatpush.msra.mxu0 0.0
  %1402 = vmatpush.msra.mxu0 0.0
  %1403 = vmatpush.msra.mxu0 0.0
  %1404 = vmatpush.msra.mxu0 0.0
  %1405 = vmatpush.msra.mxu0 0.0
  %1406 = vmatpush.msra.mxu0 %v1383
  %1407 = vmatpush.msra.mxu0 %v1381
  %1408 = vmatmul.f32.gmra.mxu0 %v1387
  %v1409 = vpop.f32.mrf.mxu0
  %v1410 = vadd.f32 0.0, %v1409
  %1411 = vmatmul.f32.gmra.mxu0 %v1390
  %v1412 = vpop.f32.mrf.mxu0
  %v1413 = vadd.f32 0.0, %v1412
  %1414 = vdwg.mxu0
  %1415 = vrot.lane.b32.xlu0 %v836, 112
  %v1416 = vpop.permute.xlu0 %1415
  %1417 = vrot.lane.b32.xlu0 %v838, 112
  %v1418 = vpop.permute.xlu0 %1417
  %v1422 = vsel %vm1091, %v1244, 0
  %v1425 = vsel %vm1091, %v1259, 0
  %1427 = vmatpush.msra.mxu0 0.0
  %1428 = vmatpush.msra.mxu0 0.0
  %1429 = vmatpush.msra.mxu0 0.0
  %1430 = vmatpush.msra.mxu0 0.0
  %1431 = vmatpush.msra.mxu0 0.0
  %1432 = vmatpush.msra.mxu0 0.0
  %1433 = vmatpush.msra.mxu0 0.0
  %1434 = vmatpush.msra.mxu0 0.0
  %1435 = vmatpush.msra.mxu0 0.0
  %1436 = vmatpush.msra.mxu0 0.0
  %1437 = vmatpush.msra.mxu0 0.0
  %1438 = vmatpush.msra.mxu0 0.0
  %1439 = vmatpush.msra.mxu0 0.0
  %1440 = vmatpush.msra.mxu0 0.0
  %1441 = vmatpush.msra.mxu0 %v1418
  %1442 = vmatpush.msra.mxu0 %v1416
  %1443 = vmatmul.f32.gmra.mxu0 %v1422
  %v1444 = vpop.f32.mrf.mxu0
  %v1445 = vadd.f32 0.0, %v1444
  %1446 = vmatmul.f32.gmra.mxu0 %v1425
  %v1447 = vpop.f32.mrf.mxu0
  %v1448 = vadd.f32 0.0, %v1447
  %1449 = vdwg.mxu0
  %1450 = vrot.lane.b32.xlu0 %v840, 112
  %v1451 = vpop.permute.xlu0 %1450
  %1452 = vrot.lane.b32.xlu0 %v842, 112
  %v1453 = vpop.permute.xlu0 %1452
  %v1457 = vsel %vm1091, %v1274, 0
  %v1460 = vsel %vm1091, %v1289, 0
  %1462 = vmatpush.msra.mxu0 0.0
  %1463 = vmatpush.msra.mxu0 0.0
  %1464 = vmatpush.msra.mxu0 0.0
  %1465 = vmatpush.msra.mxu0 0.0
  %1466 = vmatpush.msra.mxu0 0.0
  %1467 = vmatpush.msra.mxu0 0.0
  %1468 = vmatpush.msra.mxu0 0.0
  %1469 = vmatpush.msra.mxu0 0.0
  %1470 = vmatpush.msra.mxu0 0.0
  %1471 = vmatpush.msra.mxu0 0.0
  %1472 = vmatpush.msra.mxu0 0.0
  %1473 = vmatpush.msra.mxu0 0.0
  %1474 = vmatpush.msra.mxu0 0.0
  %1475 = vmatpush.msra.mxu0 0.0
  %1476 = vmatpush.msra.mxu0 %v1453
  %1477 = vmatpush.msra.mxu0 %v1451
  %1478 = vmatmul.f32.gmra.mxu0 %v1457
  %v1479 = vpop.f32.mrf.mxu0
  %v1480 = vadd.f32 0.0, %v1479
  %1481 = vmatmul.f32.gmra.mxu0 %v1460
  %v1482 = vpop.f32.mrf.mxu0
  %v1483 = vadd.f32 0.0, %v1482
  %1484 = vdwg.mxu0
  %1485 = vrot.lane.b32.xlu0 %v844, 112
  %v1486 = vpop.permute.xlu0 %1485
  %1487 = vrot.lane.b32.xlu0 %v846, 112
  %v1488 = vpop.permute.xlu0 %1487
  %v1492 = vsel %vm1091, %v1304, 0
  %v1495 = vsel %vm1091, %v1319, 0
  %1497 = vmatpush.msra.mxu0 0.0
  %1498 = vmatpush.msra.mxu0 0.0
  %1499 = vmatpush.msra.mxu0 0.0
  %1500 = vmatpush.msra.mxu0 0.0
  %1501 = vmatpush.msra.mxu0 0.0
  %1502 = vmatpush.msra.mxu0 0.0
  %1503 = vmatpush.msra.mxu0 0.0
  %1504 = vmatpush.msra.mxu0 0.0
  %1505 = vmatpush.msra.mxu0 0.0
  %1506 = vmatpush.msra.mxu0 0.0
  %1507 = vmatpush.msra.mxu0 0.0
  %1508 = vmatpush.msra.mxu0 0.0
  %1509 = vmatpush.msra.mxu0 0.0
  %1510 = vmatpush.msra.mxu0 0.0
  %1511 = vmatpush.msra.mxu0 %v1488
  %1512 = vmatpush.msra.mxu0 %v1486
  %1513 = vmatmul.f32.gmra.mxu0 %v1492
  %v1514 = vpop.f32.mrf.mxu0
  %v1515 = vadd.f32 0.0, %v1514
  %1516 = vmatmul.f32.gmra.mxu0 %v1495
  %v1517 = vpop.f32.mrf.mxu0
  %v1518 = vadd.f32 0.0, %v1517
  %1519 = vdwg.mxu0
  %1520 = vrot.lane.b32.xlu0 %v848, 112
  %v1521 = vpop.permute.xlu0 %1520
  %1522 = vrot.lane.b32.xlu0 %v850, 112
  %v1523 = vpop.permute.xlu0 %1522
  %v1527 = vsel %vm1091, %v1334, 0
  %v1530 = vsel %vm1091, %v1349, 0
  %1532 = vmatpush.msra.mxu0 0.0
  %1533 = vmatpush.msra.mxu0 0.0
  %1534 = vmatpush.msra.mxu0 0.0
  %1535 = vmatpush.msra.mxu0 0.0
  %1536 = vmatpush.msra.mxu0 0.0
  %1537 = vmatpush.msra.mxu0 0.0
  %1538 = vmatpush.msra.mxu0 0.0
  %1539 = vmatpush.msra.mxu0 0.0
  %1540 = vmatpush.msra.mxu0 0.0
  %1541 = vmatpush.msra.mxu0 0.0
  %1542 = vmatpush.msra.mxu0 0.0
  %1543 = vmatpush.msra.mxu0 0.0
  %1544 = vmatpush.msra.mxu0 0.0
  %1545 = vmatpush.msra.mxu0 0.0
  %1546 = vmatpush.msra.mxu0 %v1523
  %1547 = vmatpush.msra.mxu0 %v1521
  %1548 = vmatmul.f32.gmra.mxu0 %v1527
  %v1549 = vpop.f32.mrf.mxu0
  %v1550 = vadd.f32 0.0, %v1549
  %1551 = vmatmul.f32.gmra.mxu0 %v1530
  %v1552 = vpop.f32.mrf.mxu0
  %v1553 = vadd.f32 0.0, %v1552
  %1554 = vdwg.mxu0
  %1555 = vrot.lane.b32.xlu0 %v862, 112
  %v1556 = vpop.permute.xlu0 %1555
  %1557 = vrot.lane.b32.xlu0 %v863, 112
  %v1558 = vpop.permute.xlu0 %1557
  %v1562 = vsel %vm1091, %v1364, 0
  %v1565 = vsel %vm1091, %v1379, 0
  %1567 = vmatpush.msra.mxu0 0.0
  %1568 = vmatpush.msra.mxu0 0.0
  %1569 = vmatpush.msra.mxu0 0.0
  %1570 = vmatpush.msra.mxu0 0.0
  %1571 = vmatpush.msra.mxu0 0.0
  %1572 = vmatpush.msra.mxu0 0.0
  %1573 = vmatpush.msra.mxu0 0.0
  %1574 = vmatpush.msra.mxu0 0.0
  %1575 = vmatpush.msra.mxu0 0.0
  %1576 = vmatpush.msra.mxu0 0.0
  %1577 = vmatpush.msra.mxu0 0.0
  %1578 = vmatpush.msra.mxu0 0.0
  %1579 = vmatpush.msra.mxu0 0.0
  %1580 = vmatpush.msra.mxu0 0.0
  %1581 = vmatpush.msra.mxu0 %v1558
  %1582 = vmatpush.msra.mxu0 %v1556
  %1583 = vmatmul.f32.gmra.mxu0 %v1562
  %v1584 = vpop.f32.mrf.mxu0
  %v1585 = vadd.f32 0.0, %v1584
  %1586 = vmatmul.f32.gmra.mxu0 %v1565
  %v1587 = vpop.f32.mrf.mxu0
  %v1588 = vadd.f32 0.0, %v1587
  %1589 = vdwg.mxu0
  %1592 = vrot.lane.b32.xlu0 %v1445, 8
  %v1593 = vpop.permute.xlu0 %1592
  %1594 = vrot.lane.b32.xlu0 %v1448, 8
  %v1595 = vpop.permute.xlu0 %1594
  %1600 = vrot.lane.b32.xlu0 %v1480, 16
  %v1601 = vpop.permute.xlu0 %1600
  %1602 = vrot.lane.b32.xlu0 %v1483, 16
  %v1603 = vpop.permute.xlu0 %1602
  %1608 = vrot.lane.b32.xlu0 %v1515, 24
  %v1609 = vpop.permute.xlu0 %1608
  %1610 = vrot.lane.b32.xlu0 %v1518, 24
  %v1611 = vpop.permute.xlu0 %1610
  %1616 = vrot.lane.b32.xlu0 %v1550, 32
  %v1617 = vpop.permute.xlu0 %1616
  %1618 = vrot.lane.b32.xlu0 %v1553, 32
  %v1619 = vpop.permute.xlu0 %1618
  %1624 = vrot.lane.b32.xlu0 %v1585, 40
  %v1625 = vpop.permute.xlu0 %1624
  %1626 = vrot.lane.b32.xlu0 %v1588, 40
  %v1627 = vpop.permute.xlu0 %1626
  %v1630 = vsel %vm861, %v1410, %v1593
  %v1631 = vsel %vm861, %v1413, %v1595
  %v1632 = vsel %vm1091, %v1630, %v1601
  %v1633 = vsel %vm1091, %v1631, %v1603
  %vm1634 = vcmask 195584
  %v1635 = vsel %vm1634, %v1632, %v1609
  %v1636 = vsel %vm1634, %v1633, %v1611
  %vm1637 = vcmask 261120
  %v1638 = vsel %vm1637, %v1635, %v1617
  %v1639 = vsel %vm1637, %v1636, %v1619
  %vm1640 = vcmask 326656
  %v1641 = vsel %vm1640, %v1638, %v1625
  %v1642 = vsel %vm1640, %v1639, %v1627
  %v1643 = vld [vmem:[%s3] sm:$0xff]
  %v1644 = vld [vmem:[%s3 + $0x8] sm:$0xff]
  %v1645 = vld [vmem:[%s3 + $0x10] sm:$0xff]
  %v1646 = vld [vmem:[%s3 + $0x18] sm:$0xff]
  %v1647 = vld [vmem:[%s3 + $0x20] sm:$0xff]
  %v1648 = vld [vmem:[%s3 + $0x28] sm:$0xff]
  %v1649 = vperm.slane %v761, 1
  %v1651 = vsel %vm780, %v1641, 0
  %v1654 = vsel %vm780, %v1642, 0
  %1656 = vmatpush.msra.mxu0 0.0
  %1657 = vmatpush.msra.mxu0 0.0
  %1658 = vmatpush.msra.mxu0 0.0
  %1659 = vmatpush.msra.mxu0 0.0
  %1660 = vmatpush.msra.mxu0 0.0
  %1661 = vmatpush.msra.mxu0 0.0
  %1662 = vmatpush.msra.mxu0 0.0
  %1663 = vmatpush.msra.mxu0 0.0
  %1664 = vmatpush.msra.mxu0 0.0
  %1665 = vmatpush.msra.mxu0 0.0
  %1666 = vmatpush.msra.mxu0 %v1648
  %1667 = vmatpush.msra.mxu0 %v1647
  %1668 = vmatpush.msra.mxu0 %v1646
  %1669 = vmatpush.msra.mxu0 %v1645
  %1670 = vmatpush.msra.mxu0 %v1644
  %1671 = vmatpush.msra.mxu0 %v1643
  %1672 = vmatmul.f32.gmra.mxu0 %v1651
  %v1673 = vpop.f32.mrf.mxu0
  %v1674 = vadd.f32 %v1649, %v1673
  %1675 = vmatmul.f32.gmra.mxu0 %v1654
  %v1676 = vpop.f32.mrf.mxu0
  %v1677 = vadd.f32 %v1649, %v1676
  %1678 = vdwg.mxu0
  %v1679 = vadd.f32 %v759, %v1674
  %v1680 = vadd.f32 %v760, %v1677
  %v1681 = vsel %vm780, %v1679, 0.0
  %1682 = vadd.xlane.f32.xlu0 %v1681
  %v1683 = vpop.xlane.xlu0 %1682
  %v1684 = vsel %vm780, %v1680, 0.0
  %1685 = vadd.xlane.f32.xlu0 %v1684
  %v1686 = vpop.xlane.xlu0 %1685
  %v1687 = vrcp.pop 48.0
  %v1688 = vmul.f32 48.0, %v1687
  %v1689 = vsub.f32 1.0, %v1688
  %v1690 = vmul.f32 %v1687, %v1689
  %v1691 = vadd.f32 %v1687, %v1690
  %vm1692 = vweird.f32 %v1687
  %v1693 = vsel %vm1692, %v1687, %v1691
  %v1694 = vmul.f32 %v1683, %v1693
  %v1695 = vmul.f32 %v1686, %v1693
  %v1696 = vsub.f32 %v1679, %v1694
  %v1697 = vsub.f32 %v1680, %v1695
  %v1698 = vmul.f32 %v1696, %v1696
  %v1699 = vmul.f32 %v1697, %v1697
  %v1700 = vsel %vm780, %v1698, 0.0
  %1701 = vadd.xlane.f32.xlu0 %v1700
  %v1702 = vpop.xlane.xlu0 %1701
  %v1703 = vsel %vm780, %v1699, 0.0
  %1704 = vadd.xlane.f32.xlu0 %v1703
  %v1705 = vpop.xlane.xlu0 %1704
  %v1706 = vmul.f32 %v1702, %v1693
  %v1707 = vmul.f32 %v1705, %v1693
  %v1708 = vadd.f32 %v1706, 1e-05
  %v1709 = vadd.f32 %v1707, 1e-05
  %v1710 = vrsqrt.pop %v1708
  %v1711 = vmul.f32 %v1710, %v1708
  %v1712 = vmul.f32 %v1711, %v1710
  %v1713 = vmul.f32 0.5, %v1712
  %v1714 = vsub.f32 1.5, %v1713
  %v1715 = vmul.f32 %v1710, %v1714
  %vm1716 = vweird.f32 %v1708
  %vm1717 = vweird.f32 %v1710
  %vm1718 = vmor %vm1716, %vm1717
  %v1719 = vsel %vm1718, %v1710, %v1715
  %v1720 = vrsqrt.pop %v1709
  %v1721 = vmul.f32 %v1720, %v1709
  %v1722 = vmul.f32 %v1721, %v1720
  %v1723 = vmul.f32 0.5, %v1722
  %v1724 = vsub.f32 1.5, %v1723
  %v1725 = vmul.f32 %v1720, %v1724
  %vm1726 = vweird.f32 %v1709
  %vm1727 = vweird.f32 %v1720
  %vm1728 = vmor %vm1726, %vm1727
  %v1729 = vsel %vm1728, %v1720, %v1725
  %v1730 = vmul.f32 %v1696, %v1719
  %v1731 = vmul.f32 %v1697, %v1729
  %v1732 = vperm.slane %v761, 2
  %v1733 = vmul.f32 %v1730, %v1732
  %v1734 = vmul.f32 %v1731, %v1732
  %v1735 = vperm.slane %v761, 3
  %v1736 = vadd.f32 %v1733, %v1735
  %v1737 = vadd.f32 %v1734, %v1735
  %s1738 = smul.u32 8, 6
  %s1739 = smul.u32 %s1738, 16
  %s1740 = sshll.u32 %s1739, 4
  %1741 = dma.done [#allocation4], %s1740
  %v1742 = vld [vmem:[#allocation2] sm:$0xff]
  %v1743 = vld [vmem:[#allocation2 + $0x8] sm:$0xff]
  %v1744 = vld [vmem:[#allocation2 + $0x10] sm:$0xff]
  %v1745 = vld [vmem:[#allocation2 + $0x18] sm:$0xff]
  %v1746 = vld [vmem:[#allocation2 + $0x20] sm:$0xff]
  %v1747 = vld [vmem:[#allocation2 + $0x28] sm:$0xff]
  %v1748 = vld [vmem:[#allocation2 + $0x30] sm:$0xff]
  %v1749 = vld [vmem:[#allocation2 + $0x38] sm:$0xff]
  %v1750 = vld [vmem:[#allocation2 + $0x40] sm:$0xff]
  %v1751 = vld [vmem:[#allocation2 + $0x48] sm:$0xff]
  %v1752 = vld [vmem:[#allocation2 + $0x50] sm:$0xff]
  %v1753 = vld [vmem:[#allocation2 + $0x58] sm:$0xff]
  %v1754 = vld [vmem:[#allocation2 + $0x60] sm:$0xff]
  %v1755 = vld [vmem:[#allocation2 + $0x68] sm:$0xff]
  %v1756 = vld [vmem:[#allocation2 + $0x70] sm:$0xff]
  %v1757 = vld [vmem:[#allocation2 + $0x78] sm:$0xff]
  %v1758 = vld [vmem:[#allocation2 + $0x80] sm:$0xff]
  %v1759 = vld [vmem:[#allocation2 + $0x88] sm:$0xff]
  %v1760 = vld [vmem:[#allocation2 + $0x90] sm:$0xff]
  %v1761 = vld [vmem:[#allocation2 + $0x98] sm:$0xff]
  %v1762 = vld [vmem:[#allocation2 + $0xa0] sm:$0xff]
  %v1763 = vld [vmem:[#allocation2 + $0xa8] sm:$0xff]
  %v1764 = vld [vmem:[#allocation2 + $0xb0] sm:$0xff]
  %v1765 = vld [vmem:[#allocation2 + $0xb8] sm:$0xff]
  %v1766 = vld [vmem:[#allocation2 + $0xc0] sm:$0xff]
  %v1767 = vld [vmem:[#allocation2 + $0xc8] sm:$0xff]
  %v1768 = vld [vmem:[#allocation2 + $0xd0] sm:$0xff]
  %v1769 = vld [vmem:[#allocation2 + $0xd8] sm:$0xff]
  %v1770 = vld [vmem:[#allocation2 + $0xe0] sm:$0xff]
  %v1771 = vld [vmem:[#allocation2 + $0xe8] sm:$0xff]
  %v1772 = vld [vmem:[#allocation2 + $0xf0] sm:$0xff]
  %v1773 = vld [vmem:[#allocation2 + $0xf8] sm:$0xff]
  %v1774 = vld [vmem:[#allocation2 + $0x100] sm:$0xff]
  %v1775 = vld [vmem:[#allocation2 + $0x108] sm:$0xff]
  %v1776 = vld [vmem:[#allocation2 + $0x110] sm:$0xff]
  %v1777 = vld [vmem:[#allocation2 + $0x118] sm:$0xff]
  %v1778 = vld [vmem:[#allocation2 + $0x120] sm:$0xff]
  %v1779 = vld [vmem:[#allocation2 + $0x128] sm:$0xff]
  %v1780 = vld [vmem:[#allocation2 + $0x130] sm:$0xff]
  %v1781 = vld [vmem:[#allocation2 + $0x138] sm:$0xff]
  %v1782 = vld [vmem:[#allocation2 + $0x140] sm:$0xff]
  %v1783 = vld [vmem:[#allocation2 + $0x148] sm:$0xff]
  %v1784 = vld [vmem:[#allocation2 + $0x150] sm:$0xff]
  %v1785 = vld [vmem:[#allocation2 + $0x158] sm:$0xff]
  %v1786 = vld [vmem:[#allocation2 + $0x160] sm:$0xff]
  %v1787 = vld [vmem:[#allocation2 + $0x168] sm:$0xff]
  %v1788 = vld [vmem:[#allocation2 + $0x170] sm:$0xff]
  %v1789 = vld [vmem:[#allocation2 + $0x178] sm:$0xff]
  %v1790 = vld [vmem:[#allocation2 + $0x180] sm:$0xff]
  %v1791 = vld [vmem:[#allocation2 + $0x188] sm:$0xff]
  %v1792 = vld [vmem:[#allocation2 + $0x190] sm:$0xff]
  %v1793 = vld [vmem:[#allocation2 + $0x198] sm:$0xff]
  %v1794 = vld [vmem:[#allocation2 + $0x1a0] sm:$0xff]
  %v1795 = vld [vmem:[#allocation2 + $0x1a8] sm:$0xff]
  %v1796 = vld [vmem:[#allocation2 + $0x1b0] sm:$0xff]
  %v1797 = vld [vmem:[#allocation2 + $0x1b8] sm:$0xff]
  %v1798 = vld [vmem:[#allocation2 + $0x1c0] sm:$0xff]
  %v1799 = vld [vmem:[#allocation2 + $0x1c8] sm:$0xff]
  %v1800 = vld [vmem:[#allocation2 + $0x1d0] sm:$0xff]
  %v1801 = vld [vmem:[#allocation2 + $0x1d8] sm:$0xff]
  %v1802 = vld [vmem:[#allocation2 + $0x1e0] sm:$0xff]
  %v1803 = vld [vmem:[#allocation2 + $0x1e8] sm:$0xff]
  %v1804 = vld [vmem:[#allocation2 + $0x1f0] sm:$0xff]
  %v1805 = vld [vmem:[#allocation2 + $0x1f8] sm:$0xff]
  %v1806 = vld [vmem:[#allocation2 + $0x200] sm:$0xff]
  %v1807 = vld [vmem:[#allocation2 + $0x208] sm:$0xff]
  %v1808 = vld [vmem:[#allocation2 + $0x210] sm:$0xff]
  %v1809 = vld [vmem:[#allocation2 + $0x218] sm:$0xff]
  %v1810 = vld [vmem:[#allocation2 + $0x220] sm:$0xff]
  %v1811 = vld [vmem:[#allocation2 + $0x228] sm:$0xff]
  %v1812 = vld [vmem:[#allocation2 + $0x230] sm:$0xff]
  %v1813 = vld [vmem:[#allocation2 + $0x238] sm:$0xff]
  %v1814 = vld [vmem:[#allocation2 + $0x240] sm:$0xff]
  %v1815 = vld [vmem:[#allocation2 + $0x248] sm:$0xff]
  %v1816 = vld [vmem:[#allocation2 + $0x250] sm:$0xff]
  %v1817 = vld [vmem:[#allocation2 + $0x258] sm:$0xff]
  %v1818 = vld [vmem:[#allocation2 + $0x260] sm:$0xff]
  %v1819 = vld [vmem:[#allocation2 + $0x268] sm:$0xff]
  %v1820 = vld [vmem:[#allocation2 + $0x270] sm:$0xff]
  %v1821 = vld [vmem:[#allocation2 + $0x278] sm:$0xff]
  %v1822 = vld [vmem:[#allocation2 + $0x280] sm:$0xff]
  %v1823 = vld [vmem:[#allocation2 + $0x288] sm:$0xff]
  %v1824 = vld [vmem:[#allocation2 + $0x290] sm:$0xff]
  %v1825 = vld [vmem:[#allocation2 + $0x298] sm:$0xff]
  %v1826 = vld [vmem:[#allocation2 + $0x2a0] sm:$0xff]
  %v1827 = vld [vmem:[#allocation2 + $0x2a8] sm:$0xff]
  %v1828 = vld [vmem:[#allocation2 + $0x2b0] sm:$0xff]
  %v1829 = vld [vmem:[#allocation2 + $0x2b8] sm:$0xff]
  %v1830 = vld [vmem:[#allocation2 + $0x2c0] sm:$0xff]
  %v1831 = vld [vmem:[#allocation2 + $0x2c8] sm:$0xff]
  %v1832 = vld [vmem:[#allocation2 + $0x2d0] sm:$0xff]
  %v1833 = vld [vmem:[#allocation2 + $0x2d8] sm:$0xff]
  %v1834 = vld [vmem:[#allocation2 + $0x2e0] sm:$0xff]
  %v1835 = vld [vmem:[#allocation2 + $0x2e8] sm:$0xff]
  %v1836 = vld [vmem:[#allocation2 + $0x2f0] sm:$0xff]
  %v1837 = vld [vmem:[#allocation2 + $0x2f8] sm:$0xff]
  %v1838 = vld [vmem:[%s4] sm:$0xff]
  %v1839 = vld [vmem:[%s4 + $0x8] sm:$0xff]
  %v1842 = vperm.slane %v1838, 0
  %v1843 = vperm.slane %v1838, 1
  %v1844 = vperm.slane %v1838, 2
  %v1845 = vperm.slane %v1838, 3
  %v1846 = vperm.slane %v1838, 4
  %v1847 = vperm.slane %v1838, 5
  %v1848 = vperm.slane %v1838, 6
  %v1849 = vperm.slane %v1838, 7
  %v1850 = vperm.slane %v1839, 0
  %v1851 = vperm.slane %v1839, 1
  %v1852 = vperm.slane %v1839, 2
  %v1853 = vperm.slane %v1839, 3
  %v1854 = vperm.slane %v1839, 4
  %v1855 = vperm.slane %v1839, 5
  %v1856 = vperm.slane %v1839, 6
  %v1857 = vperm.slane %v1839, 7
  %v1875 = vsel %vm780, %v1736, 0
  %v1878 = vsel %vm780, %v1737, 0
  %1880 = vmatpush.msra.mxu0 0.0
  %1881 = vmatpush.msra.mxu0 0.0
  %1882 = vmatpush.msra.mxu0 0.0
  %1883 = vmatpush.msra.mxu0 0.0
  %1884 = vmatpush.msra.mxu0 0.0
  %1885 = vmatpush.msra.mxu0 0.0
  %1886 = vmatpush.msra.mxu0 0.0
  %1887 = vmatpush.msra.mxu0 0.0
  %1888 = vmatpush.msra.mxu0 0.0
  %1889 = vmatpush.msra.mxu0 0.0
  %1890 = vmatpush.msra.mxu0 %v1822
  %1891 = vmatpush.msra.mxu0 %v1806
  %1892 = vmatpush.msra.mxu0 %v1790
  %1893 = vmatpush.msra.mxu0 %v1774
  %1894 = vmatpush.msra.mxu0 %v1758
  %1895 = vmatpush.msra.mxu0 %v1742
  %1896 = vmatmul.f32.gmra.mxu0 %v1875
  %v1897 = vpop.f32.mrf.mxu0
  %v1898 = vadd.f32 %v1842, %v1897
  %1899 = vmatmul.f32.gmra.mxu0 %v1878
  %v1900 = vpop.f32.mrf.mxu0
  %v1901 = vadd.f32 %v1842, %v1900
  %1902 = vdwg.mxu0
  %1903 = vmatpush.msra.mxu0 0.0
  %1904 = vmatpush.msra.mxu0 0.0
  %1905 = vmatpush.msra.mxu0 0.0
  %1906 = vmatpush.msra.mxu0 0.0
  %1907 = vmatpush.msra.mxu0 0.0
  %1908 = vmatpush.msra.mxu0 0.0
  %1909 = vmatpush.msra.mxu0 0.0
  %1910 = vmatpush.msra.mxu0 0.0
  %1911 = vmatpush.msra.mxu0 0.0
  %1912 = vmatpush.msra.mxu0 0.0
  %1913 = vmatpush.msra.mxu0 %v1823
  %1914 = vmatpush.msra.mxu0 %v1807
  %1915 = vmatpush.msra.mxu0 %v1791
  %1916 = vmatpush.msra.mxu0 %v1775
  %1917 = vmatpush.msra.mxu0 %v1759
  %1918 = vmatpush.msra.mxu0 %v1743
  %1919 = vmatmul.f32.gmra.mxu0 %v1875
  %v1920 = vpop.f32.mrf.mxu0
  %v1921 = vadd.f32 %v1843, %v1920
  %1922 = vmatmul.f32.gmra.mxu0 %v1878
  %v1923 = vpop.f32.mrf.mxu0
  %v1924 = vadd.f32 %v1843, %v1923
  %1925 = vdwg.mxu0
  %1926 = vmatpush.msra.mxu0 0.0
  %1927 = vmatpush.msra.mxu0 0.0
  %1928 = vmatpush.msra.mxu0 0.0
  %1929 = vmatpush.msra.mxu0 0.0
  %1930 = vmatpush.msra.mxu0 0.0
  %1931 = vmatpush.msra.mxu0 0.0
  %1932 = vmatpush.msra.mxu0 0.0
  %1933 = vmatpush.msra.mxu0 0.0
  %1934 = vmatpush.msra.mxu0 0.0
  %1935 = vmatpush.msra.mxu0 0.0
  %1936 = vmatpush.msra.mxu0 %v1824
  %1937 = vmatpush.msra.mxu0 %v1808
  %1938 = vmatpush.msra.mxu0 %v1792
  %1939 = vmatpush.msra.mxu0 %v1776
  %1940 = vmatpush.msra.mxu0 %v1760
  %1941 = vmatpush.msra.mxu0 %v1744
  %1942 = vmatmul.f32.gmra.mxu0 %v1875
  %v1943 = vpop.f32.mrf.mxu0
  %v1944 = vadd.f32 %v1844, %v1943
  %1945 = vmatmul.f32.gmra.mxu0 %v1878
  %v1946 = vpop.f32.mrf.mxu0
  %v1947 = vadd.f32 %v1844, %v1946
  %1948 = vdwg.mxu0
  %1949 = vmatpush.msra.mxu0 0.0
  %1950 = vmatpush.msra.mxu0 0.0
  %1951 = vmatpush.msra.mxu0 0.0
  %1952 = vmatpush.msra.mxu0 0.0
  %1953 = vmatpush.msra.mxu0 0.0
  %1954 = vmatpush.msra.mxu0 0.0
  %1955 = vmatpush.msra.mxu0 0.0
  %1956 = vmatpush.msra.mxu0 0.0
  %1957 = vmatpush.msra.mxu0 0.0
  %1958 = vmatpush.msra.mxu0 0.0
  %1959 = vmatpush.msra.mxu0 %v1825
  %1960 = vmatpush.msra.mxu0 %v1809
  %1961 = vmatpush.msra.mxu0 %v1793
  %1962 = vmatpush.msra.mxu0 %v1777
  %1963 = vmatpush.msra.mxu0 %v1761
  %1964 = vmatpush.msra.mxu0 %v1745
  %1965 = vmatmul.f32.gmra.mxu0 %v1875
  %v1966 = vpop.f32.mrf.mxu0
  %v1967 = vadd.f32 %v1845, %v1966
  %1968 = vmatmul.f32.gmra.mxu0 %v1878
  %v1969 = vpop.f32.mrf.mxu0
  %v1970 = vadd.f32 %v1845, %v1969
  %1971 = vdwg.mxu0
  %1972 = vmatpush.msra.mxu0 0.0
  %1973 = vmatpush.msra.mxu0 0.0
  %1974 = vmatpush.msra.mxu0 0.0
  %1975 = vmatpush.msra.mxu0 0.0
  %1976 = vmatpush.msra.mxu0 0.0
  %1977 = vmatpush.msra.mxu0 0.0
  %1978 = vmatpush.msra.mxu0 0.0
  %1979 = vmatpush.msra.mxu0 0.0
  %1980 = vmatpush.msra.mxu0 0.0
  %1981 = vmatpush.msra.mxu0 0.0
  %1982 = vmatpush.msra.mxu0 %v1826
  %1983 = vmatpush.msra.mxu0 %v1810
  %1984 = vmatpush.msra.mxu0 %v1794
  %1985 = vmatpush.msra.mxu0 %v1778
  %1986 = vmatpush.msra.mxu0 %v1762
  %1987 = vmatpush.msra.mxu0 %v1746
  %1988 = vmatmul.f32.gmra.mxu0 %v1875
  %v1989 = vpop.f32.mrf.mxu0
  %v1990 = vadd.f32 %v1846, %v1989
  %1991 = vmatmul.f32.gmra.mxu0 %v1878
  %v1992 = vpop.f32.mrf.mxu0
  %v1993 = vadd.f32 %v1846, %v1992
  %1994 = vdwg.mxu0
  %1995 = vmatpush.msra.mxu0 0.0
  %1996 = vmatpush.msra.mxu0 0.0
  %1997 = vmatpush.msra.mxu0 0.0
  %1998 = vmatpush.msra.mxu0 0.0
  %1999 = vmatpush.msra.mxu0 0.0
  %2000 = vmatpush.msra.mxu0 0.0
  %2001 = vmatpush.msra.mxu0 0.0
  %2002 = vmatpush.msra.mxu0 0.0
  %2003 = vmatpush.msra.mxu0 0.0
  %2004 = vmatpush.msra.mxu0 0.0
  %2005 = vmatpush.msra.mxu0 %v1827
  %2006 = vmatpush.msra.mxu0 %v1811
  %2007 = vmatpush.msra.mxu0 %v1795
  %2008 = vmatpush.msra.mxu0 %v1779
  %2009 = vmatpush.msra.mxu0 %v1763
  %2010 = vmatpush.msra.mxu0 %v1747
  %2011 = vmatmul.f32.gmra.mxu0 %v1875
  %v2012 = vpop.f32.mrf.mxu0
  %v2013 = vadd.f32 %v1847, %v2012
  %2014 = vmatmul.f32.gmra.mxu0 %v1878
  %v2015 = vpop.f32.mrf.mxu0
  %v2016 = vadd.f32 %v1847, %v2015
  %2017 = vdwg.mxu0
  %2018 = vmatpush.msra.mxu0 0.0
  %2019 = vmatpush.msra.mxu0 0.0
  %2020 = vmatpush.msra.mxu0 0.0
  %2021 = vmatpush.msra.mxu0 0.0
  %2022 = vmatpush.msra.mxu0 0.0
  %2023 = vmatpush.msra.mxu0 0.0
  %2024 = vmatpush.msra.mxu0 0.0
  %2025 = vmatpush.msra.mxu0 0.0
  %2026 = vmatpush.msra.mxu0 0.0
  %2027 = vmatpush.msra.mxu0 0.0
  %2028 = vmatpush.msra.mxu0 %v1828
  %2029 = vmatpush.msra.mxu0 %v1812
  %2030 = vmatpush.msra.mxu0 %v1796
  %2031 = vmatpush.msra.mxu0 %v1780
  %2032 = vmatpush.msra.mxu0 %v1764
  %2033 = vmatpush.msra.mxu0 %v1748
  %2034 = vmatmul.f32.gmra.mxu0 %v1875
  %v2035 = vpop.f32.mrf.mxu0
  %v2036 = vadd.f32 %v1848, %v2035
  %2037 = vmatmul.f32.gmra.mxu0 %v1878
  %v2038 = vpop.f32.mrf.mxu0
  %v2039 = vadd.f32 %v1848, %v2038
  %2040 = vdwg.mxu0
  %2041 = vmatpush.msra.mxu0 0.0
  %2042 = vmatpush.msra.mxu0 0.0
  %2043 = vmatpush.msra.mxu0 0.0
  %2044 = vmatpush.msra.mxu0 0.0
  %2045 = vmatpush.msra.mxu0 0.0
  %2046 = vmatpush.msra.mxu0 0.0
  %2047 = vmatpush.msra.mxu0 0.0
  %2048 = vmatpush.msra.mxu0 0.0
  %2049 = vmatpush.msra.mxu0 0.0
  %2050 = vmatpush.msra.mxu0 0.0
  %2051 = vmatpush.msra.mxu0 %v1829
  %2052 = vmatpush.msra.mxu0 %v1813
  %2053 = vmatpush.msra.mxu0 %v1797
  %2054 = vmatpush.msra.mxu0 %v1781
  %2055 = vmatpush.msra.mxu0 %v1765
  %2056 = vmatpush.msra.mxu0 %v1749
  %2057 = vmatmul.f32.gmra.mxu0 %v1875
  %v2058 = vpop.f32.mrf.mxu0
  %v2059 = vadd.f32 %v1849, %v2058
  %2060 = vmatmul.f32.gmra.mxu0 %v1878
  %v2061 = vpop.f32.mrf.mxu0
  %v2062 = vadd.f32 %v1849, %v2061
  %2063 = vdwg.mxu0
  %2064 = vmatpush.msra.mxu0 0.0
  %2065 = vmatpush.msra.mxu0 0.0
  %2066 = vmatpush.msra.mxu0 0.0
  %2067 = vmatpush.msra.mxu0 0.0
  %2068 = vmatpush.msra.mxu0 0.0
  %2069 = vmatpush.msra.mxu0 0.0
  %2070 = vmatpush.msra.mxu0 0.0
  %2071 = vmatpush.msra.mxu0 0.0
  %2072 = vmatpush.msra.mxu0 0.0
  %2073 = vmatpush.msra.mxu0 0.0
  %2074 = vmatpush.msra.mxu0 %v1830
  %2075 = vmatpush.msra.mxu0 %v1814
  %2076 = vmatpush.msra.mxu0 %v1798
  %2077 = vmatpush.msra.mxu0 %v1782
  %2078 = vmatpush.msra.mxu0 %v1766
  %2079 = vmatpush.msra.mxu0 %v1750
  %2080 = vmatmul.f32.gmra.mxu0 %v1875
  %v2081 = vpop.f32.mrf.mxu0
  %v2082 = vadd.f32 %v1850, %v2081
  %2083 = vmatmul.f32.gmra.mxu0 %v1878
  %v2084 = vpop.f32.mrf.mxu0
  %v2085 = vadd.f32 %v1850, %v2084
  %2086 = vdwg.mxu0
  %2087 = vmatpush.msra.mxu0 0.0
  %2088 = vmatpush.msra.mxu0 0.0
  %2089 = vmatpush.msra.mxu0 0.0
  %2090 = vmatpush.msra.mxu0 0.0
  %2091 = vmatpush.msra.mxu0 0.0
  %2092 = vmatpush.msra.mxu0 0.0
  %2093 = vmatpush.msra.mxu0 0.0
  %2094 = vmatpush.msra.mxu0 0.0
  %2095 = vmatpush.msra.mxu0 0.0
  %2096 = vmatpush.msra.mxu0 0.0
  %2097 = vmatpush.msra.mxu0 %v1831
  %2098 = vmatpush.msra.mxu0 %v1815
  %2099 = vmatpush.msra.mxu0 %v1799
  %2100 = vmatpush.msra.mxu0 %v1783
  %2101 = vmatpush.msra.mxu0 %v1767
  %2102 = vmatpush.msra.mxu0 %v1751
  %2103 = vmatmul.f32.gmra.mxu0 %v1875
  %v2104 = vpop.f32.mrf.mxu0
  %v2105 = vadd.f32 %v1851, %v2104
  %2106 = vmatmul.f32.gmra.mxu0 %v1878
  %v2107 = vpop.f32.mrf.mxu0
  %v2108 = vadd.f32 %v1851, %v2107
  %2109 = vdwg.mxu0
  %2110 = vmatpush.msra.mxu0 0.0
  %2111 = vmatpush.msra.mxu0 0.0
  %2112 = vmatpush.msra.mxu0 0.0
  %2113 = vmatpush.msra.mxu0 0.0
  %2114 = vmatpush.msra.mxu0 0.0
  %2115 = vmatpush.msra.mxu0 0.0
  %2116 = vmatpush.msra.mxu0 0.0
  %2117 = vmatpush.msra.mxu0 0.0
  %2118 = vmatpush.msra.mxu0 0.0
  %2119 = vmatpush.msra.mxu0 0.0
  %2120 = vmatpush.msra.mxu0 %v1832
  %2121 = vmatpush.msra.mxu0 %v1816
  %2122 = vmatpush.msra.mxu0 %v1800
  %2123 = vmatpush.msra.mxu0 %v1784
  %2124 = vmatpush.msra.mxu0 %v1768
  %2125 = vmatpush.msra.mxu0 %v1752
  %2126 = vmatmul.f32.gmra.mxu0 %v1875
  %v2127 = vpop.f32.mrf.mxu0
  %v2128 = vadd.f32 %v1852, %v2127
  %2129 = vmatmul.f32.gmra.mxu0 %v1878
  %v2130 = vpop.f32.mrf.mxu0
  %v2131 = vadd.f32 %v1852, %v2130
  %2132 = vdwg.mxu0
  %2133 = vmatpush.msra.mxu0 0.0
  %2134 = vmatpush.msra.mxu0 0.0
  %2135 = vmatpush.msra.mxu0 0.0
  %2136 = vmatpush.msra.mxu0 0.0
  %2137 = vmatpush.msra.mxu0 0.0
  %2138 = vmatpush.msra.mxu0 0.0
  %2139 = vmatpush.msra.mxu0 0.0
  %2140 = vmatpush.msra.mxu0 0.0
  %2141 = vmatpush.msra.mxu0 0.0
  %2142 = vmatpush.msra.mxu0 0.0
  %2143 = vmatpush.msra.mxu0 %v1833
  %2144 = vmatpush.msra.mxu0 %v1817
  %2145 = vmatpush.msra.mxu0 %v1801
  %2146 = vmatpush.msra.mxu0 %v1785
  %2147 = vmatpush.msra.mxu0 %v1769
  %2148 = vmatpush.msra.mxu0 %v1753
  %2149 = vmatmul.f32.gmra.mxu0 %v1875
  %v2150 = vpop.f32.mrf.mxu0
  %v2151 = vadd.f32 %v1853, %v2150
  %2152 = vmatmul.f32.gmra.mxu0 %v1878
  %v2153 = vpop.f32.mrf.mxu0
  %v2154 = vadd.f32 %v1853, %v2153
  %2155 = vdwg.mxu0
  %2156 = vmatpush.msra.mxu0 0.0
  %2157 = vmatpush.msra.mxu0 0.0
  %2158 = vmatpush.msra.mxu0 0.0
  %2159 = vmatpush.msra.mxu0 0.0
  %2160 = vmatpush.msra.mxu0 0.0
  %2161 = vmatpush.msra.mxu0 0.0
  %2162 = vmatpush.msra.mxu0 0.0
  %2163 = vmatpush.msra.mxu0 0.0
  %2164 = vmatpush.msra.mxu0 0.0
  %2165 = vmatpush.msra.mxu0 0.0
  %2166 = vmatpush.msra.mxu0 %v1834
  %2167 = vmatpush.msra.mxu0 %v1818
  %2168 = vmatpush.msra.mxu0 %v1802
  %2169 = vmatpush.msra.mxu0 %v1786
  %2170 = vmatpush.msra.mxu0 %v1770
  %2171 = vmatpush.msra.mxu0 %v1754
  %2172 = vmatmul.f32.gmra.mxu0 %v1875
  %v2173 = vpop.f32.mrf.mxu0
  %v2174 = vadd.f32 %v1854, %v2173
  %2175 = vmatmul.f32.gmra.mxu0 %v1878
  %v2176 = vpop.f32.mrf.mxu0
  %v2177 = vadd.f32 %v1854, %v2176
  %2178 = vdwg.mxu0
  %2179 = vmatpush.msra.mxu0 0.0
  %2180 = vmatpush.msra.mxu0 0.0
  %2181 = vmatpush.msra.mxu0 0.0
  %2182 = vmatpush.msra.mxu0 0.0
  %2183 = vmatpush.msra.mxu0 0.0
  %2184 = vmatpush.msra.mxu0 0.0
  %2185 = vmatpush.msra.mxu0 0.0
  %2186 = vmatpush.msra.mxu0 0.0
  %2187 = vmatpush.msra.mxu0 0.0
  %2188 = vmatpush.msra.mxu0 0.0
  %2189 = vmatpush.msra.mxu0 %v1835
  %2190 = vmatpush.msra.mxu0 %v1819
  %2191 = vmatpush.msra.mxu0 %v1803
  %2192 = vmatpush.msra.mxu0 %v1787
  %2193 = vmatpush.msra.mxu0 %v1771
  %2194 = vmatpush.msra.mxu0 %v1755
  %2195 = vmatmul.f32.gmra.mxu0 %v1875
  %v2196 = vpop.f32.mrf.mxu0
  %v2197 = vadd.f32 %v1855, %v2196
  %2198 = vmatmul.f32.gmra.mxu0 %v1878
  %v2199 = vpop.f32.mrf.mxu0
  %v2200 = vadd.f32 %v1855, %v2199
  %2201 = vdwg.mxu0
  %2202 = vmatpush.msra.mxu0 0.0
  %2203 = vmatpush.msra.mxu0 0.0
  %2204 = vmatpush.msra.mxu0 0.0
  %2205 = vmatpush.msra.mxu0 0.0
  %2206 = vmatpush.msra.mxu0 0.0
  %2207 = vmatpush.msra.mxu0 0.0
  %2208 = vmatpush.msra.mxu0 0.0
  %2209 = vmatpush.msra.mxu0 0.0
  %2210 = vmatpush.msra.mxu0 0.0
  %2211 = vmatpush.msra.mxu0 0.0
  %2212 = vmatpush.msra.mxu0 %v1836
  %2213 = vmatpush.msra.mxu0 %v1820
  %2214 = vmatpush.msra.mxu0 %v1804
  %2215 = vmatpush.msra.mxu0 %v1788
  %2216 = vmatpush.msra.mxu0 %v1772
  %2217 = vmatpush.msra.mxu0 %v1756
  %2218 = vmatmul.f32.gmra.mxu0 %v1875
  %v2219 = vpop.f32.mrf.mxu0
  %v2220 = vadd.f32 %v1856, %v2219
  %2221 = vmatmul.f32.gmra.mxu0 %v1878
  %v2222 = vpop.f32.mrf.mxu0
  %v2223 = vadd.f32 %v1856, %v2222
  %2224 = vdwg.mxu0
  %2225 = vmatpush.msra.mxu0 0.0
  %2226 = vmatpush.msra.mxu0 0.0
  %2227 = vmatpush.msra.mxu0 0.0
  %2228 = vmatpush.msra.mxu0 0.0
  %2229 = vmatpush.msra.mxu0 0.0
  %2230 = vmatpush.msra.mxu0 0.0
  %2231 = vmatpush.msra.mxu0 0.0
  %2232 = vmatpush.msra.mxu0 0.0
  %2233 = vmatpush.msra.mxu0 0.0
  %2234 = vmatpush.msra.mxu0 0.0
  %2235 = vmatpush.msra.mxu0 %v1837
  %2236 = vmatpush.msra.mxu0 %v1821
  %2237 = vmatpush.msra.mxu0 %v1805
  %2238 = vmatpush.msra.mxu0 %v1789
  %2239 = vmatpush.msra.mxu0 %v1773
  %2240 = vmatpush.msra.mxu0 %v1757
  %2241 = vmatmul.f32.gmra.mxu0 %v1875
  %v2242 = vpop.f32.mrf.mxu0
  %v2243 = vadd.f32 %v1857, %v2242
  %2244 = vmatmul.f32.gmra.mxu0 %v1878
  %v2245 = vpop.f32.mrf.mxu0
  %v2246 = vadd.f32 %v1857, %v2245
  %2247 = vdwg.mxu0
  %v2248 = vmax.f32 %v1898, 0.0
  %v2249 = vmax.f32 %v1921, 0.0
  %v2250 = vmax.f32 %v1944, 0.0
  %v2251 = vmax.f32 %v1967, 0.0
  %v2252 = vmax.f32 %v1990, 0.0
  %v2253 = vmax.f32 %v2013, 0.0
  %v2254 = vmax.f32 %v2036, 0.0
  %v2255 = vmax.f32 %v2059, 0.0
  %v2256 = vmax.f32 %v2082, 0.0
  %v2257 = vmax.f32 %v2105, 0.0
  %v2258 = vmax.f32 %v2128, 0.0
  %v2259 = vmax.f32 %v2151, 0.0
  %v2260 = vmax.f32 %v2174, 0.0
  %v2261 = vmax.f32 %v2197, 0.0
  %v2262 = vmax.f32 %v2220, 0.0
  %v2263 = vmax.f32 %v2243, 0.0
  %v2264 = vmax.f32 %v1901, 0.0
  %v2265 = vmax.f32 %v1924, 0.0
  %v2266 = vmax.f32 %v1947, 0.0
  %v2267 = vmax.f32 %v1970, 0.0
  %v2268 = vmax.f32 %v1993, 0.0
  %v2269 = vmax.f32 %v2016, 0.0
  %v2270 = vmax.f32 %v2039, 0.0
  %v2271 = vmax.f32 %v2062, 0.0
  %v2272 = vmax.f32 %v2085, 0.0
  %v2273 = vmax.f32 %v2108, 0.0
  %v2274 = vmax.f32 %v2131, 0.0
  %v2275 = vmax.f32 %v2154, 0.0
  %v2276 = vmax.f32 %v2177, 0.0
  %v2277 = vmax.f32 %v2200, 0.0
  %v2278 = vmax.f32 %v2223, 0.0
  %v2279 = vmax.f32 %v2246, 0.0
  %s2280 = smul.u32 2048, 1
  %s2281 = sshll.u32 %s2280, 4
  %2282 = dma.done %s230, %s2281
  %v2283 = vld [vmem:[#allocation3] sm:$0xff]
  %v2284 = vld [vmem:[#allocation3 + $0x8] sm:$0xff]
  %v2285 = vld [vmem:[#allocation3 + $0x10] sm:$0xff]
  %v2286 = vld [vmem:[#allocation3 + $0x18] sm:$0xff]
  %v2287 = vld [vmem:[#allocation3 + $0x20] sm:$0xff]
  %v2288 = vld [vmem:[#allocation3 + $0x28] sm:$0xff]
  %v2289 = vld [vmem:[#allocation3 + $0x30] sm:$0xff]
  %v2290 = vld [vmem:[#allocation3 + $0x38] sm:$0xff]
  %v2291 = vld [vmem:[#allocation3 + $0x40] sm:$0xff]
  %v2292 = vld [vmem:[#allocation3 + $0x48] sm:$0xff]
  %v2293 = vld [vmem:[#allocation3 + $0x50] sm:$0xff]
  %v2294 = vld [vmem:[#allocation3 + $0x58] sm:$0xff]
  %v2295 = vld [vmem:[#allocation3 + $0x60] sm:$0xff]
  %v2296 = vld [vmem:[#allocation3 + $0x68] sm:$0xff]
  %v2297 = vld [vmem:[#allocation3 + $0x70] sm:$0xff]
  %v2298 = vld [vmem:[#allocation3 + $0x78] sm:$0xff]
  %v2299 = vld [vmem:[#allocation3 + $0x80] sm:$0xff]
  %v2300 = vld [vmem:[#allocation3 + $0x88] sm:$0xff]
  %v2301 = vld [vmem:[#allocation3 + $0x90] sm:$0xff]
  %v2302 = vld [vmem:[#allocation3 + $0x98] sm:$0xff]
  %v2303 = vld [vmem:[#allocation3 + $0xa0] sm:$0xff]
  %v2304 = vld [vmem:[#allocation3 + $0xa8] sm:$0xff]
  %v2305 = vld [vmem:[#allocation3 + $0xb0] sm:$0xff]
  %v2306 = vld [vmem:[#allocation3 + $0xb8] sm:$0xff]
  %v2307 = vld [vmem:[#allocation3 + $0xc0] sm:$0xff]
  %v2308 = vld [vmem:[#allocation3 + $0xc8] sm:$0xff]
  %v2309 = vld [vmem:[#allocation3 + $0xd0] sm:$0xff]
  %v2310 = vld [vmem:[#allocation3 + $0xd8] sm:$0xff]
  %v2311 = vld [vmem:[#allocation3 + $0xe0] sm:$0xff]
  %v2312 = vld [vmem:[#allocation3 + $0xe8] sm:$0xff]
  %v2313 = vld [vmem:[#allocation3 + $0xf0] sm:$0xff]
  %v2314 = vld [vmem:[#allocation3 + $0xf8] sm:$0xff]
  %v2315 = vld [vmem:[#allocation3 + $0x100] sm:$0xff]
  %v2316 = vld [vmem:[#allocation3 + $0x108] sm:$0xff]
  %v2317 = vld [vmem:[#allocation3 + $0x110] sm:$0xff]
  %v2318 = vld [vmem:[#allocation3 + $0x118] sm:$0xff]
  %v2319 = vld [vmem:[#allocation3 + $0x120] sm:$0xff]
  %v2320 = vld [vmem:[#allocation3 + $0x128] sm:$0xff]
  %v2321 = vld [vmem:[#allocation3 + $0x130] sm:$0xff]
  %v2322 = vld [vmem:[#allocation3 + $0x138] sm:$0xff]
  %v2323 = vld [vmem:[#allocation3 + $0x140] sm:$0xff]
  %v2324 = vld [vmem:[#allocation3 + $0x148] sm:$0xff]
  %v2325 = vld [vmem:[#allocation3 + $0x150] sm:$0xff]
  %v2326 = vld [vmem:[#allocation3 + $0x158] sm:$0xff]
  %v2327 = vld [vmem:[#allocation3 + $0x160] sm:$0xff]
  %v2328 = vld [vmem:[#allocation3 + $0x168] sm:$0xff]
  %v2329 = vld [vmem:[#allocation3 + $0x170] sm:$0xff]
  %v2330 = vld [vmem:[#allocation3 + $0x178] sm:$0xff]
  %v2331 = vld [vmem:[#allocation3 + $0x180] sm:$0xff]
  %v2332 = vld [vmem:[#allocation3 + $0x188] sm:$0xff]
  %v2333 = vld [vmem:[#allocation3 + $0x190] sm:$0xff]
  %v2334 = vld [vmem:[#allocation3 + $0x198] sm:$0xff]
  %v2335 = vld [vmem:[#allocation3 + $0x1a0] sm:$0xff]
  %v2336 = vld [vmem:[#allocation3 + $0x1a8] sm:$0xff]
  %v2337 = vld [vmem:[#allocation3 + $0x1b0] sm:$0xff]
  %v2338 = vld [vmem:[#allocation3 + $0x1b8] sm:$0xff]
  %v2339 = vld [vmem:[#allocation3 + $0x1c0] sm:$0xff]
  %v2340 = vld [vmem:[#allocation3 + $0x1c8] sm:$0xff]
  %v2341 = vld [vmem:[#allocation3 + $0x1d0] sm:$0xff]
  %v2342 = vld [vmem:[#allocation3 + $0x1d8] sm:$0xff]
  %v2343 = vld [vmem:[#allocation3 + $0x1e0] sm:$0xff]
  %v2344 = vld [vmem:[#allocation3 + $0x1e8] sm:$0xff]
  %v2345 = vld [vmem:[#allocation3 + $0x1f0] sm:$0xff]
  %v2346 = vld [vmem:[#allocation3 + $0x1f8] sm:$0xff]
  %v2347 = vld [vmem:[#allocation3 + $0x200] sm:$0xff]
  %v2348 = vld [vmem:[#allocation3 + $0x208] sm:$0xff]
  %v2349 = vld [vmem:[#allocation3 + $0x210] sm:$0xff]
  %v2350 = vld [vmem:[#allocation3 + $0x218] sm:$0xff]
  %v2351 = vld [vmem:[#allocation3 + $0x220] sm:$0xff]
  %v2352 = vld [vmem:[#allocation3 + $0x228] sm:$0xff]
  %v2353 = vld [vmem:[#allocation3 + $0x230] sm:$0xff]
  %v2354 = vld [vmem:[#allocation3 + $0x238] sm:$0xff]
  %v2355 = vld [vmem:[#allocation3 + $0x240] sm:$0xff]
  %v2356 = vld [vmem:[#allocation3 + $0x248] sm:$0xff]
  %v2357 = vld [vmem:[#allocation3 + $0x250] sm:$0xff]
  %v2358 = vld [vmem:[#allocation3 + $0x258] sm:$0xff]
  %v2359 = vld [vmem:[#allocation3 + $0x260] sm:$0xff]
  %v2360 = vld [vmem:[#allocation3 + $0x268] sm:$0xff]
  %v2361 = vld [vmem:[#allocation3 + $0x270] sm:$0xff]
  %v2362 = vld [vmem:[#allocation3 + $0x278] sm:$0xff]
  %v2363 = vld [vmem:[#allocation3 + $0x280] sm:$0xff]
  %v2364 = vld [vmem:[#allocation3 + $0x288] sm:$0xff]
  %v2365 = vld [vmem:[#allocation3 + $0x290] sm:$0xff]
  %v2366 = vld [vmem:[#allocation3 + $0x298] sm:$0xff]
  %v2367 = vld [vmem:[#allocation3 + $0x2a0] sm:$0xff]
  %v2368 = vld [vmem:[#allocation3 + $0x2a8] sm:$0xff]
  %v2369 = vld [vmem:[#allocation3 + $0x2b0] sm:$0xff]
  %v2370 = vld [vmem:[#allocation3 + $0x2b8] sm:$0xff]
  %v2371 = vld [vmem:[#allocation3 + $0x2c0] sm:$0xff]
  %v2372 = vld [vmem:[#allocation3 + $0x2c8] sm:$0xff]
  %v2373 = vld [vmem:[#allocation3 + $0x2d0] sm:$0xff]
  %v2374 = vld [vmem:[#allocation3 + $0x2d8] sm:$0xff]
  %v2375 = vld [vmem:[#allocation3 + $0x2e0] sm:$0xff]
  %v2376 = vld [vmem:[#allocation3 + $0x2e8] sm:$0xff]
  %v2377 = vld [vmem:[#allocation3 + $0x2f0] sm:$0xff]
  %v2378 = vld [vmem:[#allocation3 + $0x2f8] sm:$0xff]
  %v2379 = vld [vmem:[#allocation3 + $0x300] sm:$0xff]
  %v2380 = vld [vmem:[#allocation3 + $0x308] sm:$0xff]
  %v2381 = vld [vmem:[#allocation3 + $0x310] sm:$0xff]
  %v2382 = vld [vmem:[#allocation3 + $0x318] sm:$0xff]
  %v2383 = vld [vmem:[#allocation3 + $0x320] sm:$0xff]
  %v2384 = vld [vmem:[#allocation3 + $0x328] sm:$0xff]
  %v2385 = vld [vmem:[#allocation3 + $0x330] sm:$0xff]
  %v2386 = vld [vmem:[#allocation3 + $0x338] sm:$0xff]
  %v2387 = vld [vmem:[#allocation3 + $0x340] sm:$0xff]
  %v2388 = vld [vmem:[#allocation3 + $0x348] sm:$0xff]
  %v2389 = vld [vmem:[#allocation3 + $0x350] sm:$0xff]
  %v2390 = vld [vmem:[#allocation3 + $0x358] sm:$0xff]
  %v2391 = vld [vmem:[#allocation3 + $0x360] sm:$0xff]
  %v2392 = vld [vmem:[#allocation3 + $0x368] sm:$0xff]
  %v2393 = vld [vmem:[#allocation3 + $0x370] sm:$0xff]
  %v2394 = vld [vmem:[#allocation3 + $0x378] sm:$0xff]
  %v2395 = vld [vmem:[#allocation3 + $0x380] sm:$0xff]
  %v2396 = vld [vmem:[#allocation3 + $0x388] sm:$0xff]
  %v2397 = vld [vmem:[#allocation3 + $0x390] sm:$0xff]
  %v2398 = vld [vmem:[#allocation3 + $0x398] sm:$0xff]
  %v2399 = vld [vmem:[#allocation3 + $0x3a0] sm:$0xff]
  %v2400 = vld [vmem:[#allocation3 + $0x3a8] sm:$0xff]
  %v2401 = vld [vmem:[#allocation3 + $0x3b0] sm:$0xff]
  %v2402 = vld [vmem:[#allocation3 + $0x3b8] sm:$0xff]
  %v2403 = vld [vmem:[#allocation3 + $0x3c0] sm:$0xff]
  %v2404 = vld [vmem:[#allocation3 + $0x3c8] sm:$0xff]
  %v2405 = vld [vmem:[#allocation3 + $0x3d0] sm:$0xff]
  %v2406 = vld [vmem:[#allocation3 + $0x3d8] sm:$0xff]
  %v2407 = vld [vmem:[#allocation3 + $0x3e0] sm:$0xff]
  %v2408 = vld [vmem:[#allocation3 + $0x3e8] sm:$0xff]
  %v2409 = vld [vmem:[#allocation3 + $0x3f0] sm:$0xff]
  %v2410 = vld [vmem:[#allocation3 + $0x3f8] sm:$0xff]
  %v2411 = vld [vmem:[#allocation3 + $0x400] sm:$0xff]
  %v2412 = vld [vmem:[#allocation3 + $0x408] sm:$0xff]
  %v2413 = vld [vmem:[#allocation3 + $0x410] sm:$0xff]
  %v2414 = vld [vmem:[#allocation3 + $0x418] sm:$0xff]
  %v2415 = vld [vmem:[#allocation3 + $0x420] sm:$0xff]
  %v2416 = vld [vmem:[#allocation3 + $0x428] sm:$0xff]
  %v2417 = vld [vmem:[#allocation3 + $0x430] sm:$0xff]
  %v2418 = vld [vmem:[#allocation3 + $0x438] sm:$0xff]
  %v2419 = vld [vmem:[#allocation3 + $0x440] sm:$0xff]
  %v2420 = vld [vmem:[#allocation3 + $0x448] sm:$0xff]
  %v2421 = vld [vmem:[#allocation3 + $0x450] sm:$0xff]
  %v2422 = vld [vmem:[#allocation3 + $0x458] sm:$0xff]
  %v2423 = vld [vmem:[#allocation3 + $0x460] sm:$0xff]
  %v2424 = vld [vmem:[#allocation3 + $0x468] sm:$0xff]
  %v2425 = vld [vmem:[#allocation3 + $0x470] sm:$0xff]
  %v2426 = vld [vmem:[#allocation3 + $0x478] sm:$0xff]
  %v2427 = vld [vmem:[#allocation3 + $0x480] sm:$0xff]
  %v2428 = vld [vmem:[#allocation3 + $0x488] sm:$0xff]
  %v2429 = vld [vmem:[#allocation3 + $0x490] sm:$0xff]
  %v2430 = vld [vmem:[#allocation3 + $0x498] sm:$0xff]
  %v2431 = vld [vmem:[#allocation3 + $0x4a0] sm:$0xff]
  %v2432 = vld [vmem:[#allocation3 + $0x4a8] sm:$0xff]
  %v2433 = vld [vmem:[#allocation3 + $0x4b0] sm:$0xff]
  %v2434 = vld [vmem:[#allocation3 + $0x4b8] sm:$0xff]
  %v2435 = vld [vmem:[#allocation3 + $0x4c0] sm:$0xff]
  %v2436 = vld [vmem:[#allocation3 + $0x4c8] sm:$0xff]
  %v2437 = vld [vmem:[#allocation3 + $0x4d0] sm:$0xff]
  %v2438 = vld [vmem:[#allocation3 + $0x4d8] sm:$0xff]
  %v2439 = vld [vmem:[#allocation3 + $0x4e0] sm:$0xff]
  %v2440 = vld [vmem:[#allocation3 + $0x4e8] sm:$0xff]
  %v2441 = vld [vmem:[#allocation3 + $0x4f0] sm:$0xff]
  %v2442 = vld [vmem:[#allocation3 + $0x4f8] sm:$0xff]
  %v2443 = vld [vmem:[#allocation3 + $0x500] sm:$0xff]
  %v2444 = vld [vmem:[#allocation3 + $0x508] sm:$0xff]
  %v2445 = vld [vmem:[#allocation3 + $0x510] sm:$0xff]
  %v2446 = vld [vmem:[#allocation3 + $0x518] sm:$0xff]
  %v2447 = vld [vmem:[#allocation3 + $0x520] sm:$0xff]
  %v2448 = vld [vmem:[#allocation3 + $0x528] sm:$0xff]
  %v2449 = vld [vmem:[#allocation3 + $0x530] sm:$0xff]
  %v2450 = vld [vmem:[#allocation3 + $0x538] sm:$0xff]
  %v2451 = vld [vmem:[#allocation3 + $0x540] sm:$0xff]
  %v2452 = vld [vmem:[#allocation3 + $0x548] sm:$0xff]
  %v2453 = vld [vmem:[#allocation3 + $0x550] sm:$0xff]
  %v2454 = vld [vmem:[#allocation3 + $0x558] sm:$0xff]
  %v2455 = vld [vmem:[#allocation3 + $0x560] sm:$0xff]
  %v2456 = vld [vmem:[#allocation3 + $0x568] sm:$0xff]
  %v2457 = vld [vmem:[#allocation3 + $0x570] sm:$0xff]
  %v2458 = vld [vmem:[#allocation3 + $0x578] sm:$0xff]
  %v2459 = vld [vmem:[#allocation3 + $0x580] sm:$0xff]
  %v2460 = vld [vmem:[#allocation3 + $0x588] sm:$0xff]
  %v2461 = vld [vmem:[#allocation3 + $0x590] sm:$0xff]
  %v2462 = vld [vmem:[#allocation3 + $0x598] sm:$0xff]
  %v2463 = vld [vmem:[#allocation3 + $0x5a0] sm:$0xff]
  %v2464 = vld [vmem:[#allocation3 + $0x5a8] sm:$0xff]
  %v2465 = vld [vmem:[#allocation3 + $0x5b0] sm:$0xff]
  %v2466 = vld [vmem:[#allocation3 + $0x5b8] sm:$0xff]
  %v2467 = vld [vmem:[#allocation3 + $0x5c0] sm:$0xff]
  %v2468 = vld [vmem:[#allocation3 + $0x5c8] sm:$0xff]
  %v2469 = vld [vmem:[#allocation3 + $0x5d0] sm:$0xff]
  %v2470 = vld [vmem:[#allocation3 + $0x5d8] sm:$0xff]
  %v2471 = vld [vmem:[#allocation3 + $0x5e0] sm:$0xff]
  %v2472 = vld [vmem:[#allocation3 + $0x5e8] sm:$0xff]
  %v2473 = vld [vmem:[#allocation3 + $0x5f0] sm:$0xff]
  %v2474 = vld [vmem:[#allocation3 + $0x5f8] sm:$0xff]
  %v2475 = vld [vmem:[#allocation3 + $0x600] sm:$0xff]
  %v2476 = vld [vmem:[#allocation3 + $0x608] sm:$0xff]
  %v2477 = vld [vmem:[#allocation3 + $0x610] sm:$0xff]
  %v2478 = vld [vmem:[#allocation3 + $0x618] sm:$0xff]
  %v2479 = vld [vmem:[#allocation3 + $0x620] sm:$0xff]
  %v2480 = vld [vmem:[#allocation3 + $0x628] sm:$0xff]
  %v2481 = vld [vmem:[#allocation3 + $0x630] sm:$0xff]
  %v2482 = vld [vmem:[#allocation3 + $0x638] sm:$0xff]
  %v2483 = vld [vmem:[#allocation3 + $0x640] sm:$0xff]
  %v2484 = vld [vmem:[#allocation3 + $0x648] sm:$0xff]
  %v2485 = vld [vmem:[#allocation3 + $0x650] sm:$0xff]
  %v2486 = vld [vmem:[#allocation3 + $0x658] sm:$0xff]
  %v2487 = vld [vmem:[#allocation3 + $0x660] sm:$0xff]
  %v2488 = vld [vmem:[#allocation3 + $0x668] sm:$0xff]
  %v2489 = vld [vmem:[#allocation3 + $0x670] sm:$0xff]
  %v2490 = vld [vmem:[#allocation3 + $0x678] sm:$0xff]
  %v2491 = vld [vmem:[#allocation3 + $0x680] sm:$0xff]
  %v2492 = vld [vmem:[#allocation3 + $0x688] sm:$0xff]
  %v2493 = vld [vmem:[#allocation3 + $0x690] sm:$0xff]
  %v2494 = vld [vmem:[#allocation3 + $0x698] sm:$0xff]
  %v2495 = vld [vmem:[#allocation3 + $0x6a0] sm:$0xff]
  %v2496 = vld [vmem:[#allocation3 + $0x6a8] sm:$0xff]
  %v2497 = vld [vmem:[#allocation3 + $0x6b0] sm:$0xff]
  %v2498 = vld [vmem:[#allocation3 + $0x6b8] sm:$0xff]
  %v2499 = vld [vmem:[#allocation3 + $0x6c0] sm:$0xff]
  %v2500 = vld [vmem:[#allocation3 + $0x6c8] sm:$0xff]
  %v2501 = vld [vmem:[#allocation3 + $0x6d0] sm:$0xff]
  %v2502 = vld [vmem:[#allocation3 + $0x6d8] sm:$0xff]
  %v2503 = vld [vmem:[#allocation3 + $0x6e0] sm:$0xff]
  %v2504 = vld [vmem:[#allocation3 + $0x6e8] sm:$0xff]
  %v2505 = vld [vmem:[#allocation3 + $0x6f0] sm:$0xff]
  %v2506 = vld [vmem:[#allocation3 + $0x6f8] sm:$0xff]
  %v2507 = vld [vmem:[#allocation3 + $0x700] sm:$0xff]
  %v2508 = vld [vmem:[#allocation3 + $0x708] sm:$0xff]
  %v2509 = vld [vmem:[#allocation3 + $0x710] sm:$0xff]
  %v2510 = vld [vmem:[#allocation3 + $0x718] sm:$0xff]
  %v2511 = vld [vmem:[#allocation3 + $0x720] sm:$0xff]
  %v2512 = vld [vmem:[#allocation3 + $0x728] sm:$0xff]
  %v2513 = vld [vmem:[#allocation3 + $0x730] sm:$0xff]
  %v2514 = vld [vmem:[#allocation3 + $0x738] sm:$0xff]
  %v2515 = vld [vmem:[#allocation3 + $0x740] sm:$0xff]
  %v2516 = vld [vmem:[#allocation3 + $0x748] sm:$0xff]
  %v2517 = vld [vmem:[#allocation3 + $0x750] sm:$0xff]
  %v2518 = vld [vmem:[#allocation3 + $0x758] sm:$0xff]
  %v2519 = vld [vmem:[#allocation3 + $0x760] sm:$0xff]
  %v2520 = vld [vmem:[#allocation3 + $0x768] sm:$0xff]
  %v2521 = vld [vmem:[#allocation3 + $0x770] sm:$0xff]
  %v2522 = vld [vmem:[#allocation3 + $0x778] sm:$0xff]
  %v2523 = vld [vmem:[#allocation3 + $0x780] sm:$0xff]
  %v2524 = vld [vmem:[#allocation3 + $0x788] sm:$0xff]
  %v2525 = vld [vmem:[#allocation3 + $0x790] sm:$0xff]
  %v2526 = vld [vmem:[#allocation3 + $0x798] sm:$0xff]
  %v2527 = vld [vmem:[#allocation3 + $0x7a0] sm:$0xff]
  %v2528 = vld [vmem:[#allocation3 + $0x7a8] sm:$0xff]
  %v2529 = vld [vmem:[#allocation3 + $0x7b0] sm:$0xff]
  %v2530 = vld [vmem:[#allocation3 + $0x7b8] sm:$0xff]
  %v2531 = vld [vmem:[#allocation3 + $0x7c0] sm:$0xff]
  %v2532 = vld [vmem:[#allocation3 + $0x7c8] sm:$0xff]
  %v2533 = vld [vmem:[#allocation3 + $0x7d0] sm:$0xff]
  %v2534 = vld [vmem:[#allocation3 + $0x7d8] sm:$0xff]
  %v2535 = vld [vmem:[#allocation3 + $0x7e0] sm:$0xff]
  %v2536 = vld [vmem:[#allocation3 + $0x7e8] sm:$0xff]
  %v2537 = vld [vmem:[#allocation3 + $0x7f0] sm:$0xff]
  %v2538 = vld [vmem:[#allocation3 + $0x7f8] sm:$0xff]
  %v2539 = vperm.slane %v761, 4
  %2540 = vmatpush.msra.mxu0 %v2298
  %2541 = vmatpush.msra.mxu0 %v2297
  %2542 = vmatpush.msra.mxu0 %v2296
  %2543 = vmatpush.msra.mxu0 %v2295
  %2544 = vmatpush.msra.mxu0 %v2294
  %2545 = vmatpush.msra.mxu0 %v2293
  %2546 = vmatpush.msra.mxu0 %v2292
  %2547 = vmatpush.msra.mxu0 %v2291
  %2548 = vmatpush.msra.mxu0 %v2290
  %2549 = vmatpush.msra.mxu0 %v2289
  %2550 = vmatpush.msra.mxu0 %v2288
  %2551 = vmatpush.msra.mxu0 %v2287
  %2552 = vmatpush.msra.mxu0 %v2286
  %2553 = vmatpush.msra.mxu0 %v2285
  %2554 = vmatpush.msra.mxu0 %v2284
  %2555 = vmatpush.msra.mxu0 %v2283
  %2556 = vmatmul.f32.gmra.mxu0 %v2248
  %v2557 = vpop.f32.mrf.mxu0
  %v2558 = vadd.f32 %v2539, %v2557
  %2559 = vmatmul.f32.gmra.mxu0 %v2264
  %v2560 = vpop.f32.mrf.mxu0
  %v2561 = vadd.f32 %v2539, %v2560
  %2562 = vdwg.mxu0
  %2563 = vmatpush.msra.mxu0 %v2314
  %2564 = vmatpush.msra.mxu0 %v2313
  %2565 = vmatpush.msra.mxu0 %v2312
  %2566 = vmatpush.msra.mxu0 %v2311
  %2567 = vmatpush.msra.mxu0 %v2310
  %2568 = vmatpush.msra.mxu0 %v2309
  %2569 = vmatpush.msra.mxu0 %v2308
  %2570 = vmatpush.msra.mxu0 %v2307
  %2571 = vmatpush.msra.mxu0 %v2306
  %2572 = vmatpush.msra.mxu0 %v2305
  %2573 = vmatpush.msra.mxu0 %v2304
  %2574 = vmatpush.msra.mxu0 %v2303
  %2575 = vmatpush.msra.mxu0 %v2302
  %2576 = vmatpush.msra.mxu0 %v2301
  %2577 = vmatpush.msra.mxu0 %v2300
  %2578 = vmatpush.msra.mxu0 %v2299
  %2579 = vmatmul.f32.gmra.mxu0 %v2249
  %v2580 = vpop.f32.mrf.mxu0
  %v2581 = vadd.f32 %v2558, %v2580
  %2582 = vmatmul.f32.gmra.mxu0 %v2265
  %v2583 = vpop.f32.mrf.mxu0
  %v2584 = vadd.f32 %v2561, %v2583
  %2585 = vdwg.mxu0
  %2586 = vmatpush.msra.mxu0 %v2330
  %2587 = vmatpush.msra.mxu0 %v2329
  %2588 = vmatpush.msra.mxu0 %v2328
  %2589 = vmatpush.msra.mxu0 %v2327
  %2590 = vmatpush.msra.mxu0 %v2326
  %2591 = vmatpush.msra.mxu0 %v2325
  %2592 = vmatpush.msra.mxu0 %v2324
  %2593 = vmatpush.msra.mxu0 %v2323
  %2594 = vmatpush.msra.mxu0 %v2322
  %2595 = vmatpush.msra.mxu0 %v2321
  %2596 = vmatpush.msra.mxu0 %v2320
  %2597 = vmatpush.msra.mxu0 %v2319
  %2598 = vmatpush.msra.mxu0 %v2318
  %2599 = vmatpush.msra.mxu0 %v2317
  %2600 = vmatpush.msra.mxu0 %v2316
  %2601 = vmatpush.msra.mxu0 %v2315
  %2602 = vmatmul.f32.gmra.mxu0 %v2250
  %v2603 = vpop.f32.mrf.mxu0
  %v2604 = vadd.f32 %v2581, %v2603
  %2605 = vmatmul.f32.gmra.mxu0 %v2266
  %v2606 = vpop.f32.mrf.mxu0
  %v2607 = vadd.f32 %v2584, %v2606
  %2608 = vdwg.mxu0
  %2609 = vmatpush.msra.mxu0 %v2346
  %2610 = vmatpush.msra.mxu0 %v2345
  %2611 = vmatpush.msra.mxu0 %v2344
  %2612 = vmatpush.msra.mxu0 %v2343
  %2613 = vmatpush.msra.mxu0 %v2342
  %2614 = vmatpush.msra.mxu0 %v2341
  %2615 = vmatpush.msra.mxu0 %v2340
  %2616 = vmatpush.msra.mxu0 %v2339
  %2617 = vmatpush.msra.mxu0 %v2338
  %2618 = vmatpush.msra.mxu0 %v2337
  %2619 = vmatpush.msra.mxu0 %v2336
  %2620 = vmatpush.msra.mxu0 %v2335
  %2621 = vmatpush.msra.mxu0 %v2334
  %2622 = vmatpush.msra.mxu0 %v2333
  %2623 = vmatpush.msra.mxu0 %v2332
  %2624 = vmatpush.msra.mxu0 %v2331
  %2625 = vmatmul.f32.gmra.mxu0 %v2251
  %v2626 = vpop.f32.mrf.mxu0
  %v2627 = vadd.f32 %v2604, %v2626
  %2628 = vmatmul.f32.gmra.mxu0 %v2267
  %v2629 = vpop.f32.mrf.mxu0
  %v2630 = vadd.f32 %v2607, %v2629
  %2631 = vdwg.mxu0
  %2632 = vmatpush.msra.mxu0 %v2362
  %2633 = vmatpush.msra.mxu0 %v2361
  %2634 = vmatpush.msra.mxu0 %v2360
  %2635 = vmatpush.msra.mxu0 %v2359
  %2636 = vmatpush.msra.mxu0 %v2358
  %2637 = vmatpush.msra.mxu0 %v2357
  %2638 = vmatpush.msra.mxu0 %v2356
  %2639 = vmatpush.msra.mxu0 %v2355
  %2640 = vmatpush.msra.mxu0 %v2354
  %2641 = vmatpush.msra.mxu0 %v2353
  %2642 = vmatpush.msra.mxu0 %v2352
  %2643 = vmatpush.msra.mxu0 %v2351
  %2644 = vmatpush.msra.mxu0 %v2350
  %2645 = vmatpush.msra.mxu0 %v2349
  %2646 = vmatpush.msra.mxu0 %v2348
  %2647 = vmatpush.msra.mxu0 %v2347
  %2648 = vmatmul.f32.gmra.mxu0 %v2252
  %v2649 = vpop.f32.mrf.mxu0
  %v2650 = vadd.f32 %v2627, %v2649
  %2651 = vmatmul.f32.gmra.mxu0 %v2268
  %v2652 = vpop.f32.mrf.mxu0
  %v2653 = vadd.f32 %v2630, %v2652
  %2654 = vdwg.mxu0
  %2655 = vmatpush.msra.mxu0 %v2378
  %2656 = vmatpush.msra.mxu0 %v2377
  %2657 = vmatpush.msra.mxu0 %v2376
  %2658 = vmatpush.msra.mxu0 %v2375
  %2659 = vmatpush.msra.mxu0 %v2374
  %2660 = vmatpush.msra.mxu0 %v2373
  %2661 = vmatpush.msra.mxu0 %v2372
  %2662 = vmatpush.msra.mxu0 %v2371
  %2663 = vmatpush.msra.mxu0 %v2370
  %2664 = vmatpush.msra.mxu0 %v2369
  %2665 = vmatpush.msra.mxu0 %v2368
  %2666 = vmatpush.msra.mxu0 %v2367
  %2667 = vmatpush.msra.mxu0 %v2366
  %2668 = vmatpush.msra.mxu0 %v2365
  %2669 = vmatpush.msra.mxu0 %v2364
  %2670 = vmatpush.msra.mxu0 %v2363
  %2671 = vmatmul.f32.gmra.mxu0 %v2253
  %v2672 = vpop.f32.mrf.mxu0
  %v2673 = vadd.f32 %v2650, %v2672
  %2674 = vmatmul.f32.gmra.mxu0 %v2269
  %v2675 = vpop.f32.mrf.mxu0
  %v2676 = vadd.f32 %v2653, %v2675
  %2677 = vdwg.mxu0
  %2678 = vmatpush.msra.mxu0 %v2394
  %2679 = vmatpush.msra.mxu0 %v2393
  %2680 = vmatpush.msra.mxu0 %v2392
  %2681 = vmatpush.msra.mxu0 %v2391
  %2682 = vmatpush.msra.mxu0 %v2390
  %2683 = vmatpush.msra.mxu0 %v2389
  %2684 = vmatpush.msra.mxu0 %v2388
  %2685 = vmatpush.msra.mxu0 %v2387
  %2686 = vmatpush.msra.mxu0 %v2386
  %2687 = vmatpush.msra.mxu0 %v2385
  %2688 = vmatpush.msra.mxu0 %v2384
  %2689 = vmatpush.msra.mxu0 %v2383
  %2690 = vmatpush.msra.mxu0 %v2382
  %2691 = vmatpush.msra.mxu0 %v2381
  %2692 = vmatpush.msra.mxu0 %v2380
  %2693 = vmatpush.msra.mxu0 %v2379
  %2694 = vmatmul.f32.gmra.mxu0 %v2254
  %v2695 = vpop.f32.mrf.mxu0
  %v2696 = vadd.f32 %v2673, %v2695
  %2697 = vmatmul.f32.gmra.mxu0 %v2270
  %v2698 = vpop.f32.mrf.mxu0
  %v2699 = vadd.f32 %v2676, %v2698
  %2700 = vdwg.mxu0
  %2701 = vmatpush.msra.mxu0 %v2410
  %2702 = vmatpush.msra.mxu0 %v2409
  %2703 = vmatpush.msra.mxu0 %v2408
  %2704 = vmatpush.msra.mxu0 %v2407
  %2705 = vmatpush.msra.mxu0 %v2406
  %2706 = vmatpush.msra.mxu0 %v2405
  %2707 = vmatpush.msra.mxu0 %v2404
  %2708 = vmatpush.msra.mxu0 %v2403
  %2709 = vmatpush.msra.mxu0 %v2402
  %2710 = vmatpush.msra.mxu0 %v2401
  %2711 = vmatpush.msra.mxu0 %v2400
  %2712 = vmatpush.msra.mxu0 %v2399
  %2713 = vmatpush.msra.mxu0 %v2398
  %2714 = vmatpush.msra.mxu0 %v2397
  %2715 = vmatpush.msra.mxu0 %v2396
  %2716 = vmatpush.msra.mxu0 %v2395
  %2717 = vmatmul.f32.gmra.mxu0 %v2255
  %v2718 = vpop.f32.mrf.mxu0
  %v2719 = vadd.f32 %v2696, %v2718
  %2720 = vmatmul.f32.gmra.mxu0 %v2271
  %v2721 = vpop.f32.mrf.mxu0
  %v2722 = vadd.f32 %v2699, %v2721
  %2723 = vdwg.mxu0
  %2724 = vmatpush.msra.mxu0 %v2426
  %2725 = vmatpush.msra.mxu0 %v2425
  %2726 = vmatpush.msra.mxu0 %v2424
  %2727 = vmatpush.msra.mxu0 %v2423
  %2728 = vmatpush.msra.mxu0 %v2422
  %2729 = vmatpush.msra.mxu0 %v2421
  %2730 = vmatpush.msra.mxu0 %v2420
  %2731 = vmatpush.msra.mxu0 %v2419
  %2732 = vmatpush.msra.mxu0 %v2418
  %2733 = vmatpush.msra.mxu0 %v2417
  %2734 = vmatpush.msra.mxu0 %v2416
  %2735 = vmatpush.msra.mxu0 %v2415
  %2736 = vmatpush.msra.mxu0 %v2414
  %2737 = vmatpush.msra.mxu0 %v2413
  %2738 = vmatpush.msra.mxu0 %v2412
  %2739 = vmatpush.msra.mxu0 %v2411
  %2740 = vmatmul.f32.gmra.mxu0 %v2256
  %v2741 = vpop.f32.mrf.mxu0
  %v2742 = vadd.f32 %v2719, %v2741
  %2743 = vmatmul.f32.gmra.mxu0 %v2272
  %v2744 = vpop.f32.mrf.mxu0
  %v2745 = vadd.f32 %v2722, %v2744
  %2746 = vdwg.mxu0
  %2747 = vmatpush.msra.mxu0 %v2442
  %2748 = vmatpush.msra.mxu0 %v2441
  %2749 = vmatpush.msra.mxu0 %v2440
  %2750 = vmatpush.msra.mxu0 %v2439
  %2751 = vmatpush.msra.mxu0 %v2438
  %2752 = vmatpush.msra.mxu0 %v2437
  %2753 = vmatpush.msra.mxu0 %v2436
  %2754 = vmatpush.msra.mxu0 %v2435
  %2755 = vmatpush.msra.mxu0 %v2434
  %2756 = vmatpush.msra.mxu0 %v2433
  %2757 = vmatpush.msra.mxu0 %v2432
  %2758 = vmatpush.msra.mxu0 %v2431
  %2759 = vmatpush.msra.mxu0 %v2430
  %2760 = vmatpush.msra.mxu0 %v2429
  %2761 = vmatpush.msra.mxu0 %v2428
  %2762 = vmatpush.msra.mxu0 %v2427
  %2763 = vmatmul.f32.gmra.mxu0 %v2257
  %v2764 = vpop.f32.mrf.mxu0
  %v2765 = vadd.f32 %v2742, %v2764
  %2766 = vmatmul.f32.gmra.mxu0 %v2273
  %v2767 = vpop.f32.mrf.mxu0
  %v2768 = vadd.f32 %v2745, %v2767
  %2769 = vdwg.mxu0
  %2770 = vmatpush.msra.mxu0 %v2458
  %2771 = vmatpush.msra.mxu0 %v2457
  %2772 = vmatpush.msra.mxu0 %v2456
  %2773 = vmatpush.msra.mxu0 %v2455
  %2774 = vmatpush.msra.mxu0 %v2454
  %2775 = vmatpush.msra.mxu0 %v2453
  %2776 = vmatpush.msra.mxu0 %v2452
  %2777 = vmatpush.msra.mxu0 %v2451
  %2778 = vmatpush.msra.mxu0 %v2450
  %2779 = vmatpush.msra.mxu0 %v2449
  %2780 = vmatpush.msra.mxu0 %v2448
  %2781 = vmatpush.msra.mxu0 %v2447
  %2782 = vmatpush.msra.mxu0 %v2446
  %2783 = vmatpush.msra.mxu0 %v2445
  %2784 = vmatpush.msra.mxu0 %v2444
  %2785 = vmatpush.msra.mxu0 %v2443
  %2786 = vmatmul.f32.gmra.mxu0 %v2258
  %v2787 = vpop.f32.mrf.mxu0
  %v2788 = vadd.f32 %v2765, %v2787
  %2789 = vmatmul.f32.gmra.mxu0 %v2274
  %v2790 = vpop.f32.mrf.mxu0
  %v2791 = vadd.f32 %v2768, %v2790
  %2792 = vdwg.mxu0
  %2793 = vmatpush.msra.mxu0 %v2474
  %2794 = vmatpush.msra.mxu0 %v2473
  %2795 = vmatpush.msra.mxu0 %v2472
  %2796 = vmatpush.msra.mxu0 %v2471
  %2797 = vmatpush.msra.mxu0 %v2470
  %2798 = vmatpush.msra.mxu0 %v2469
  %2799 = vmatpush.msra.mxu0 %v2468
  %2800 = vmatpush.msra.mxu0 %v2467
  %2801 = vmatpush.msra.mxu0 %v2466
  %2802 = vmatpush.msra.mxu0 %v2465
  %2803 = vmatpush.msra.mxu0 %v2464
  %2804 = vmatpush.msra.mxu0 %v2463
  %2805 = vmatpush.msra.mxu0 %v2462
  %2806 = vmatpush.msra.mxu0 %v2461
  %2807 = vmatpush.msra.mxu0 %v2460
  %2808 = vmatpush.msra.mxu0 %v2459
  %2809 = vmatmul.f32.gmra.mxu0 %v2259
  %v2810 = vpop.f32.mrf.mxu0
  %v2811 = vadd.f32 %v2788, %v2810
  %2812 = vmatmul.f32.gmra.mxu0 %v2275
  %v2813 = vpop.f32.mrf.mxu0
  %v2814 = vadd.f32 %v2791, %v2813
  %2815 = vdwg.mxu0
  %2816 = vmatpush.msra.mxu0 %v2490
  %2817 = vmatpush.msra.mxu0 %v2489
  %2818 = vmatpush.msra.mxu0 %v2488
  %2819 = vmatpush.msra.mxu0 %v2487
  %2820 = vmatpush.msra.mxu0 %v2486
  %2821 = vmatpush.msra.mxu0 %v2485
  %2822 = vmatpush.msra.mxu0 %v2484
  %2823 = vmatpush.msra.mxu0 %v2483
  %2824 = vmatpush.msra.mxu0 %v2482
  %2825 = vmatpush.msra.mxu0 %v2481
  %2826 = vmatpush.msra.mxu0 %v2480
  %2827 = vmatpush.msra.mxu0 %v2479
  %2828 = vmatpush.msra.mxu0 %v2478
  %2829 = vmatpush.msra.mxu0 %v2477
  %2830 = vmatpush.msra.mxu0 %v2476
  %2831 = vmatpush.msra.mxu0 %v2475
  %2832 = vmatmul.f32.gmra.mxu0 %v2260
  %v2833 = vpop.f32.mrf.mxu0
  %v2834 = vadd.f32 %v2811, %v2833
  %2835 = vmatmul.f32.gmra.mxu0 %v2276
  %v2836 = vpop.f32.mrf.mxu0
  %v2837 = vadd.f32 %v2814, %v2836
  %2838 = vdwg.mxu0
  %2839 = vmatpush.msra.mxu0 %v2506
  %2840 = vmatpush.msra.mxu0 %v2505
  %2841 = vmatpush.msra.mxu0 %v2504
  %2842 = vmatpush.msra.mxu0 %v2503
  %2843 = vmatpush.msra.mxu0 %v2502
  %2844 = vmatpush.msra.mxu0 %v2501
  %2845 = vmatpush.msra.mxu0 %v2500
  %2846 = vmatpush.msra.mxu0 %v2499
  %2847 = vmatpush.msra.mxu0 %v2498
  %2848 = vmatpush.msra.mxu0 %v2497
  %2849 = vmatpush.msra.mxu0 %v2496
  %2850 = vmatpush.msra.mxu0 %v2495
  %2851 = vmatpush.msra.mxu0 %v2494
  %2852 = vmatpush.msra.mxu0 %v2493
  %2853 = vmatpush.msra.mxu0 %v2492
  %2854 = vmatpush.msra.mxu0 %v2491
  %2855 = vmatmul.f32.gmra.mxu0 %v2261
  %v2856 = vpop.f32.mrf.mxu0
  %v2857 = vadd.f32 %v2834, %v2856
  %2858 = vmatmul.f32.gmra.mxu0 %v2277
  %v2859 = vpop.f32.mrf.mxu0
  %v2860 = vadd.f32 %v2837, %v2859
  %2861 = vdwg.mxu0
  %2862 = vmatpush.msra.mxu0 %v2522
  %2863 = vmatpush.msra.mxu0 %v2521
  %2864 = vmatpush.msra.mxu0 %v2520
  %2865 = vmatpush.msra.mxu0 %v2519
  %2866 = vmatpush.msra.mxu0 %v2518
  %2867 = vmatpush.msra.mxu0 %v2517
  %2868 = vmatpush.msra.mxu0 %v2516
  %2869 = vmatpush.msra.mxu0 %v2515
  %2870 = vmatpush.msra.mxu0 %v2514
  %2871 = vmatpush.msra.mxu0 %v2513
  %2872 = vmatpush.msra.mxu0 %v2512
  %2873 = vmatpush.msra.mxu0 %v2511
  %2874 = vmatpush.msra.mxu0 %v2510
  %2875 = vmatpush.msra.mxu0 %v2509
  %2876 = vmatpush.msra.mxu0 %v2508
  %2877 = vmatpush.msra.mxu0 %v2507
  %2878 = vmatmul.f32.gmra.mxu0 %v2262
  %v2879 = vpop.f32.mrf.mxu0
  %v2880 = vadd.f32 %v2857, %v2879
  %2881 = vmatmul.f32.gmra.mxu0 %v2278
  %v2882 = vpop.f32.mrf.mxu0
  %v2883 = vadd.f32 %v2860, %v2882
  %2884 = vdwg.mxu0
  %2885 = vmatpush.msra.mxu0 %v2538
  %2886 = vmatpush.msra.mxu0 %v2537
  %2887 = vmatpush.msra.mxu0 %v2536
  %2888 = vmatpush.msra.mxu0 %v2535
  %2889 = vmatpush.msra.mxu0 %v2534
  %2890 = vmatpush.msra.mxu0 %v2533
  %2891 = vmatpush.msra.mxu0 %v2532
  %2892 = vmatpush.msra.mxu0 %v2531
  %2893 = vmatpush.msra.mxu0 %v2530
  %2894 = vmatpush.msra.mxu0 %v2529
  %2895 = vmatpush.msra.mxu0 %v2528
  %2896 = vmatpush.msra.mxu0 %v2527
  %2897 = vmatpush.msra.mxu0 %v2526
  %2898 = vmatpush.msra.mxu0 %v2525
  %2899 = vmatpush.msra.mxu0 %v2524
  %2900 = vmatpush.msra.mxu0 %v2523
  %2901 = vmatmul.f32.gmra.mxu0 %v2263
  %v2902 = vpop.f32.mrf.mxu0
  %v2903 = vadd.f32 %v2880, %v2902
  %2904 = vmatmul.f32.gmra.mxu0 %v2279
  %v2905 = vpop.f32.mrf.mxu0
  %v2906 = vadd.f32 %v2883, %v2905
  %2907 = vdwg.mxu0
  %v2908 = vadd.f32 %v1736, %v2903
  %v2909 = vadd.f32 %v1737, %v2906
  %v2910 = vsel %vm780, %v2908, 0.0
  %2911 = vadd.xlane.f32.xlu0 %v2910
  %v2912 = vpop.xlane.xlu0 %2911
  %v2913 = vsel %vm780, %v2909, 0.0
  %2914 = vadd.xlane.f32.xlu0 %v2913
  %v2915 = vpop.xlane.xlu0 %2914
  %v2916 = vmul.f32 %v2912, %v1693
  %v2917 = vmul.f32 %v2915, %v1693
  %v2918 = vsub.f32 %v2908, %v2916
  %v2919 = vsub.f32 %v2909, %v2917
  %v2920 = vmul.f32 %v2918, %v2918
  %v2921 = vmul.f32 %v2919, %v2919
  %v2922 = vsel %vm780, %v2920, 0.0
  %2923 = vadd.xlane.f32.xlu0 %v2922
  %v2924 = vpop.xlane.xlu0 %2923
  %v2925 = vsel %vm780, %v2921, 0.0
  %2926 = vadd.xlane.f32.xlu0 %v2925
  %v2927 = vpop.xlane.xlu0 %2926
  %v2928 = vmul.f32 %v2924, %v1693
  %v2929 = vmul.f32 %v2927, %v1693
  %v2930 = vadd.f32 %v2928, 1e-05
  %v2931 = vadd.f32 %v2929, 1e-05
  %v2932 = vrsqrt.pop %v2930
  %v2933 = vmul.f32 %v2932, %v2930
  %v2934 = vmul.f32 %v2933, %v2932
  %v2935 = vmul.f32 0.5, %v2934
  %v2936 = vsub.f32 1.5, %v2935
  %v2937 = vmul.f32 %v2932, %v2936
  %vm2938 = vweird.f32 %v2930
  %vm2939 = vweird.f32 %v2932
  %vm2940 = vmor %vm2938, %vm2939
  %v2941 = vsel %vm2940, %v2932, %v2937
  %v2942 = vrsqrt.pop %v2931
  %v2943 = vmul.f32 %v2942, %v2931
  %v2944 = vmul.f32 %v2943, %v2942
  %v2945 = vmul.f32 0.5, %v2944
  %v2946 = vsub.f32 1.5, %v2945
  %v2947 = vmul.f32 %v2942, %v2946
  %vm2948 = vweird.f32 %v2931
  %vm2949 = vweird.f32 %v2942
  %vm2950 = vmor %vm2948, %vm2949
  %v2951 = vsel %vm2950, %v2942, %v2947
  %v2952 = vmul.f32 %v2918, %v2941
  %v2953 = vmul.f32 %v2919, %v2951
  %v2954 = vperm.slane %v761, 5
  %v2955 = vmul.f32 %v2952, %v2954
  %v2956 = vmul.f32 %v2953, %v2954
  %v2957 = vperm.slane %v761, 6
  %v2958 = vadd.f32 %v2955, %v2957
  %v2959 = vadd.f32 %v2956, %v2957
  %v2960 = vperm.slane %v763, 1
  %vm2963 = vcmask 1040384
  %v2964 = vrot.slane %v761, 7
  %v2965 = vrot.slane %v763, 7
  %v2966 = vsel %vm2963, %v2964, %v2965
  %v2968 = vsel %vm780, %v2958, 0
  %v2971 = vsel %vm780, %v2959, 0
  %v2973 = vsel %vm780, %v2966, 0
  %2975 = vmatpush.xpose.msra.mxu0 0.0
  %2976 = vmatpush.xpose.msra.mxu0 0.0
  %2977 = vmatpush.xpose.msra.mxu0 0.0
  %2978 = vmatpush.xpose.msra.mxu0 0.0
  %2979 = vmatpush.xpose.msra.mxu0 0.0
  %2980 = vmatpush.xpose.msra.mxu0 0.0
  %2981 = vmatpush.xpose.msra.mxu0 0.0
  %2982 = vmatpush.xpose.msra.mxu0 0.0
  %2983 = vmatpush.xpose.msra.mxu0 0.0
  %2984 = vmatpush.xpose.msra.mxu0 0.0
  %2985 = vmatpush.xpose.msra.mxu0 0.0
  %2986 = vmatpush.xpose.msra.mxu0 0.0
  %2987 = vmatpush.xpose.msra.mxu0 0.0
  %2988 = vmatpush.xpose.msra.mxu0 0.0
  %2989 = vmatpush.xpose.msra.mxu0 0.0
  %2990 = vmatpush.xpose.msra.mxu0 %v2973
  %2991 = vmatmul.f32.gmra.mxu0 %v2968
  %v2992 = vpop.f32.mrf.mxu0
  %v2993 = vadd.f32 %v2960, %v2992
  %2994 = vmatmul.f32.gmra.mxu0 %v2971
  %v2995 = vpop.f32.mrf.mxu0
  %v2996 = vadd.f32 %v2960, %v2995
  %2997 = vdwg.mxu0
  %v2998 = vmax.f32 %v2993, 0.0
  %v2999 = vmax.f32 %v2996, 0.0
  %vm3000 = vcmask 15360
  %v3001 = vsel %vm3000, %v2998, -inf
  %v3002 = vsel %vm3000, %v2999, -inf
  %v3003 = vmax.f32 %v3001, %v3002
  %v3004 = vrot.slane %v3003, 4
  %v3005 = vmax.f32 %v3003, %v3004
  %v3006 = vrot.slane %v3005, 2
  %v3007 = vmax.f32 %v3005, %v3006
  %v3008 = vrot.slane %v3007, 1
  %v3009 = vmax.f32 %v3007, %v3008
  %v3010 = vsub.f32 %v2998, %v3009
  %v3011 = vsub.f32 %v2999, %v3009
  %v3012 = vmul.f32 %v3010, 1.442695
  %v3013 = vpow.pop %v3012
  %v3014 = vmul.f32 %v3011, 1.442695
  %v3015 = vpow.pop %v3014
  %v3016 = vmul.u32 %v865, 2
  %vm3017 = vcmp.ge.s32.totalorder %v868, %v3016
  %v3018 = vadd.s32 %v865, 1
  %v3019 = vmul.u32 %v3018, 2
  %vm3020 = vcmp.lt.s32.totalorder %v868, %v3019
  %vm3021 = vmand %vm3017, %vm3020
  %v3022 = vsel %vm3021, 1.0, 0.0
  %v3024 = vsel %vm1091, %v3022, 0
  %3026 = vmatpush.msra.mxu0 0.0
  %3027 = vmatpush.msra.mxu0 0.0
  %3028 = vmatpush.msra.mxu0 0.0
  %3029 = vmatpush.msra.mxu0 0.0
  %3030 = vmatpush.msra.mxu0 0.0
  %3031 = vmatpush.msra.mxu0 0.0
  %3032 = vmatpush.msra.mxu0 0.0
  %3033 = vmatpush.msra.mxu0 0.0
  %3034 = vmatpush.msra.mxu0 0.0
  %3035 = vmatpush.msra.mxu0 0.0
  %3036 = vmatpush.msra.mxu0 0.0
  %3037 = vmatpush.msra.mxu0 0.0
  %3038 = vmatpush.msra.mxu0 0.0
  %3039 = vmatpush.msra.mxu0 0.0
  %3040 = vmatpush.msra.mxu0 %v3015
  %3041 = vmatpush.msra.mxu0 %v3013
  %3042 = vmatmul.f32.gmra.mxu0 %v3024
  %v3043 = vpop.f32.mrf.mxu0
  %v3044 = vadd.f32 0.0, %v3043
  %3045 = vdwg.mxu0
  %v3046 = vlog2.pop %v3044
  %v3047 = vmul.f32 %v3046, 0.6931472
  %v3048 = vadd.f32 %v3009, %v3047
  %v3049 = vmul.f32 %v2998, %v764
  %v3050 = vmul.f32 %v2999, %v765
  %v3051 = vsel %vm3000, %v3049, 0.0
  %v3052 = vsel %vm3000, %v3050, 0.0
  %v3053 = vadd.f32 %v3051, %v3052
  %v3054 = vrot.slane %v3053, 4
  %v3055 = vadd.f32 %v3053, %v3054
  %v3056 = vrot.slane %v3055, 2
  %v3057 = vadd.f32 %v3055, %v3056
  %v3058 = vrot.slane %v3057, 1
  %v3059 = vadd.f32 %v3057, %v3058
  %v3060 = vsel %vm3000, %v3048, 0.0
  %v3061 = vrot.slane %v3060, 4
  %v3062 = vadd.f32 %v3060, %v3061
  %v3063 = vrot.slane %v3062, 2
  %v3064 = vadd.f32 %v3062, %v3063
  %v3065 = vrot.slane %v3064, 1
  %v3066 = vadd.f32 %v3064, %v3065
  %v3067 = vsub.f32 %v3066, %v3059
  %v3068 = vmul.f32 %v3067, 0.125
  %v3069 = vsel %vm3000, %v3068, 0.0
  %3070 = vadd.xlane.f32.xlu0 %v3069
  %v3071 = vpop.xlane.xlu0 %3070
  %v3072 = vmul.f32 %v3071, 0.5
  %v3073 = vsel %vm3000, %v2998, %v3072
  %v3074 = vsel %vm3000, %v2999, %v3072
  %vm3075 = vcmask 23552
  %3076 = vst.msk [vmem:[%s7] sm:$0xff] %vm3075, %v3073
  %3077 = vst.msk [vmem:[%s7 + $0x8] sm:$0xff] %vm3075, %v3074
  // Predicated region
  $region60: #{tpu_custom_call.1} parent=0 // pred_check
    _
  $region61: #{tpu_custom_call.1} parent=0 // pred_check_branch
    %3079 = sbr.rel (0) target = $region63
  $region62: #{tpu_custom_call.1} parent=0 // pred_region
    _
  $region63: #{tpu_custom_call.1} parent=0 // pred_fallthru
    _
  // Predicated region
  $region64: #{tpu_custom_call.1} parent=0 // pred_check
    _
  $region65: #{tpu_custom_call.1} parent=0 // pred_check_branch
    %3081 = sbr.rel (0) target = $region67
  $region66: #{tpu_custom_call.1} parent=0 // pred_region
    _
  $region67: #{tpu_custom_call.1} parent=0 // pred_fallthru
    _
  %3082 = vsyncmov [#allocation4]
  %s3083 = vpop.sfrf %3082
  %p3084 = scmp.eq.s32.totalorder %s3083, 0
  %p3085 = pneg %p3084
  %3087 = shalt.err (%p3085)
  %s3088 = scalar_lea.sflag [#allocation4], 1
  %3089 = vsyncmov %s3088
  %s3090 = vpop.sfrf %3089
  %p3091 = scmp.eq.s32.totalorder %s3090, 0
  %p3092 = pneg %p3091
  %3094 = shalt.err (%p3092)

</llo_original>
